<compile_context>
chip_gen: v7x
topology: tpu7x:2x2x1
jax: 0.10.0
libtpu: 0.0.40
codegen_flags: <defaults>
</compile_context>

<pallas_src>
import jax
import jax.numpy as jnp
import numpy as np
from jax.experimental import pallas as pl
from jax.experimental.pallas import tpu as pltpu

LEAKY_SLOPE = 0.2
BN_EPS = 1e-5
LN_EPS = 1e-5
N_T_POINTS = 10            # torch.linspace(0, 1, 10)
N_STEPS = N_T_POINTS - 1   # Euler steps (left endpoints t_0 .. t_8)
DT = 1.0 / N_STEPS

PACKED_ROWS_PER_BLOCK = 256   # 1024 (g=4) .. 2048 (g=8) original rows / block


def fastode_kernel(x_ref, wconv_ref, w1_ref, w2_ref, lnm_ref,
                   bns_ref, bnc_ref, vecs_ref, o_ref):
    """One block of packed super-rows (g original rows per lane-dense row).

    x_ref    : (P, g*Cin)   packed input rows, matmul dtype
    wconv_ref: (g*Cin, g*F) block-diagonal Conv1d(k=1) weight, matmul dtype
    w1_ref   : (g*F, g*F)   block-diagonal Linear1 weight, matmul dtype
    w2_ref   : (g*F, g*F)   block-diagonal Linear2 weight, matmul dtype
    lnm_ref  : (g*F, g*F)   block-diagonal ones/F matrix (segmented mean), f32
    bns_ref  : (P, g*F)     folded BatchNorm scale, lane-dense, f32
    bnc_ref  : (P, g*F)     folded BatchNorm shift, lane-dense, f32
    vecs_ref : (2+2*9, g*F) packed rows: [b1, b2, DT*tf_i*ln_gamma (x9),
                                          DT*tf_i*ln_beta (x9)], f32
    o_ref    : (P, g*F)     packed output rows, f32
    """
    cdt = wconv_ref.dtype
    P, GF = o_ref.shape

    # ---- init_conv: Conv1d(kernel=1, bias=False) == per-row matmul (MXU) ----
    y = jnp.dot(x_ref[...], wconv_ref[...],
                preferred_element_type=jnp.float32)          # (P, GF) f32

    # ---- folded BatchNorm1d (eval) + LeakyReLU(0.2), all lane-dense f32 ----
    y = y * bns_ref[...] + bnc_ref[...]
    y = jnp.maximum(y, LEAKY_SLOPE * y)                      # leaky_relu

    w1 = w1_ref[...]
    w2 = w2_ref[...]
    lnm = lnm_ref[...]
    vecs = vecs_ref[...]
    # Loop-invariant bias rows: broadcast ONCE before the unrolled loop
    # (JAX does not CSE broadcast_in_dim across the 9 unrolled steps).
    b1 = jnp.broadcast_to(vecs[0:1, :], (P, GF))
    b2 = jnp.broadcast_to(vecs[1:2, :], (P, GF))
    one_plus_dt = jnp.float32(1.0 + DT)

    # ---- odeint(..., method='euler')[-1]: fully unrolled 9 Euler steps ----
    # TODO(synk): if bundle dumps show MXU weight re-push latency dominating,
    # hold w1/w2 in MXU staging registers across the 9 steps via
    # pltpu.matmul_push_rhs / matmul_acc_lhs / matmul_pop.
    for i in range(N_STEPS):
        # ODEFunc.net: Linear -> SiLU -> (Dropout: identity) -> Linear
        h = jnp.dot(y.astype(cdt), w1, preferred_element_type=jnp.float32) + b1
        h = h * jax.nn.sigmoid(h)                            # SiLU (EUP)
        h = jnp.dot(h.astype(cdt), w2, preferred_element_type=jnp.float32) + b2
        # LayerNorm(filters) over each 32-lane segment: two independent f32
        # MXU matmuls (segmented mean and E[h^2]) + var = E[h^2] - mu^2.
        mu = jnp.dot(h, lnm, preferred_element_type=jnp.float32)
        e2 = jnp.dot(h * h, lnm, preferred_element_type=jnp.float32)
        inv = jax.lax.rsqrt(e2 - mu * mu + LN_EPS)
        hn = (h - mu) * inv
        # Euler update with DT, time factor and LN gamma/beta pre-folded into
        # per-step gain/offset rows:  y <- y*(1+dt) + hn*gain_i + off_i
        gain = vecs[2 + i:3 + i, :]                          # (1, GF) static
        off = vecs[2 + N_STEPS + i:3 + N_STEPS + i, :]       # (1, GF) static
        y = y * one_plus_dt + hn * gain + off

    # Lane-dense (128/256-lane) unmasked store.
    o_ref[...] = y
    # Dropout / Dropout1d / MaxPool1d(kernel_size=1) are identities at
    # inference time; no kernel work needed.


def _device_config():
    """(g lane-packing factor, matmul dtype) per TPU generation."""
    kind = ""
    try:
        dev = jax.devices()[0]
        if dev.platform == "tpu":
            kind = (getattr(dev, "device_kind", "") or "tpu").lower()
    except Exception:
        pass
    if not kind:
        return 4, jnp.float32            # non-TPU fallback (e.g. interpret)
    # TODO(synk): switch to pltpu.get_tpu_info() chip query once field names
    # are relied upon; substring match kept broad so "tpu7x" is detected.
    wide_mxu = any(tag in kind for tag in ("v6", "v7", "7x", "tpu7"))
    g = 8 if wide_mxu else 4             # 256 lanes on v6e/v7x, 128 elsewhere
    # bf16 MXU operands on every TPU generation (f32 accumulation; the
    # "no bf16 VPU" limit on v5e only affects elementwise ops, which stay f32).
    return g, jnp.bfloat16


def fast_ode_forward(x, params, *, g=None, matmul_dtype=None):
    B, T, Cin = x.shape
    F_ = params["wconv"].shape[1]
    if g is None or matmul_dtype is None:
        g_d, dt_d = _device_config()
        g = g_d if g is None else g
        matmul_dtype = dt_d if matmul_dtype is None else matmul_dtype
    GF = g * F_
    n_rows = B * T

    # ---- row tiling: g original rows packed per lane-dense super-row ----
    packed_total = -(-n_rows // g)
    if packed_total <= PACKED_ROWS_PER_BLOCK:
        pblk, nblocks = packed_total, 1            # single block, full array
    else:
        pblk = PACKED_ROWS_PER_BLOCK               # multiple of 8
        nblocks = -(-packed_total // pblk)
    padded_rows = nblocks * pblk * g
    pad = padded_rows - n_rows

    # ---- parameter folding / packing (wrapper-side, params only) ----
    eye_g = jnp.eye(g, dtype=jnp.float32)
    wconv_bd = jnp.kron(eye_g, params["wconv"]).astype(matmul_dtype)
    w1_bd = jnp.kron(eye_g, params["w1"]).astype(matmul_dtype)
    w2_bd = jnp.kron(eye_g, params["w2"]).astype(matmul_dtype)
    lnm = jnp.kron(eye_g, jnp.full((F_, F_), 1.0 / F_, jnp.float32))

    # folded BatchNorm1d (eval): per-frame scale/shift -> per-row, lane-dense
    s = params["bn_gamma"] * jax.lax.rsqrt(params["bn_var"] + BN_EPS)   # (T,)
    c = params["bn_beta"] - s * params["bn_mean"]                       # (T,)
    s_rows = jnp.pad(jnp.tile(s, B), (0, pad))
    c_rows = jnp.pad(jnp.tile(c, B), (0, pad))
    bns = jnp.broadcast_to(s_rows[:, None], (padded_rows, F_)) \
             .reshape(padded_rows // g, GF).astype(jnp.float32)
    bnc = jnp.broadcast_to(c_rows[:, None], (padded_rows, F_)) \
             .reshape(padded_rows // g, GF).astype(jnp.float32)

    # packed per-feature rows: [b1, b2, DT*tf_i*ln_gamma (9), DT*tf_i*ln_beta (9)]
    tf = params["time_factors"]                                         # (9, F)
    gain = (DT * tf) * params["ln_gamma"]                               # (9, F)
    off = (DT * tf) * params["ln_beta"]                                 # (9, F)
    vecs = jnp.concatenate([params["b1"], params["b2"], gain, off], axis=0)
    vecs = jnp.tile(vecs.astype(jnp.float32), (1, g))                   # (20, GF)
    n_vec_rows = vecs.shape[0]

    # packed input rows (cast in wrapper -> halves x DMA in the bf16 path)
    x2d = jnp.pad(x.reshape(n_rows, Cin), ((0, pad), (0, 0)))
    xp = x2d.reshape(padded_rows // g, g * Cin).astype(matmul_dtype)

    in_specs = [
        pl.BlockSpec((pblk, g * Cin), lambda i: (i, 0)),    # x packed rows
        pl.BlockSpec((g * Cin, GF), lambda i: (0, 0)),      # conv weight (bd)
        pl.BlockSpec((GF, GF), lambda i: (0, 0)),           # w1 (bd)
        pl.BlockSpec((GF, GF), lambda i: (0, 0)),           # w2 (bd)
        pl.BlockSpec((GF, GF), lambda i: (0, 0)),           # LN mean matrix
        pl.BlockSpec((pblk, GF), lambda i: (i, 0)),         # BN scale rows
        pl.BlockSpec((pblk, GF), lambda i: (i, 0)),         # BN shift rows
        pl.BlockSpec((n_vec_rows, GF), lambda i: (0, 0)),   # packed vectors
    ]
    out_specs = pl.BlockSpec((pblk, GF), lambda i: (i, 0))

    out_p = pl.pallas_call(
        fastode_kernel,
        out_shape=jax.ShapeDtypeStruct((padded_rows // g, GF), jnp.float32),
        grid=(nblocks,),
        in_specs=in_specs,
        out_specs=out_specs,
        compiler_params=pltpu.CompilerParams(
            dimension_semantics=("parallel",),
            vmem_limit_bytes=32 * 1024 * 1024),
    )(xp, wconv_bd, w1_bd, w2_bd, lnm, bns, bnc, vecs)

    return out_p.reshape(padded_rows, F_)[:n_rows].reshape(B, T, F_)


def fast_ode_reference(x, params, matmul_dtype=jnp.float32):
    """Pure-JAX reference with identical forward semantics (for validation)."""
    B, T, Cin = x.shape
    F_ = params["wconv"].shape[1]
    cdt = matmul_dtype
    wconv = params["wconv"].astype(cdt)
    w1 = params["w1"].astype(cdt)
    w2 = params["w2"].astype(cdt)

    y = jnp.einsum("btc,cf->btf", x.astype(cdt), wconv,
                   preferred_element_type=jnp.float32)
    g_ = params["bn_gamma"].reshape(1, T, 1)
    b_ = params["bn_beta"].reshape(1, T, 1)
    m_ = params["bn_mean"].reshape(1, T, 1)
    v_ = params["bn_var"].reshape(1, T, 1)
    y = g_ * (y - m_) / jnp.sqrt(v_ + BN_EPS) + b_
    y = jnp.where(y >= 0, y, LEAKY_SLOPE * y)

    b1 = params["b1"].reshape(1, 1, F_)
    b2 = params["b2"].reshape(1, 1, F_)
    lng = params["ln_gamma"].reshape(1, 1, F_)
    lnb = params["ln_beta"].reshape(1, 1, F_)
    for i in range(N_STEPS):
        h = jnp.einsum("btf,fg->btg", y.astype(cdt), w1,
                       preferred_element_type=jnp.float32) + b1
        h = h * jax.nn.sigmoid(h)
        h = jnp.einsum("btf,fg->btg", h.astype(cdt), w2,
                       preferred_element_type=jnp.float32) + b2
        mu = jnp.mean(h, axis=-1, keepdims=True)
        var = jnp.mean((h - mu) ** 2, axis=-1, keepdims=True)
        h = (h - mu) / jnp.sqrt(var + LN_EPS)
        h = h * lng + lnb
        f = h * params["time_factors"][i].reshape(1, 1, F_) + y
        y = y + DT * f
    return y


def init_params(key, T, Cin, F_):
    ks = jax.random.split(key, 12)
    params = {
        # Conv1d(kernel=1) weight, stored pre-transposed as (Cin, F)
        "wconv": jax.random.normal(ks[0], (Cin, F_), jnp.float32) / np.sqrt(Cin),
        # BatchNorm1d(num_features=T) eval-mode parameters / running stats
        "bn_gamma": 1.0 + 0.1 * jax.random.normal(ks[1], (T,), jnp.float32),
        "bn_beta": 0.1 * jax.random.normal(ks[2], (T,), jnp.float32),
        "bn_mean": 0.05 * jax.random.normal(ks[3], (T,), jnp.float32),
        "bn_var": 1.0 + 0.1 * jax.random.uniform(ks[4], (T,), jnp.float32),
        # ODEFunc.net Linears, stored pre-transposed as (in, out)
        "w1": jax.random.normal(ks[5], (F_, F_), jnp.float32) / np.sqrt(F_),
        "b1": 0.05 * jax.random.normal(ks[6], (1, F_), jnp.float32),
        "w2": jax.random.normal(ks[7], (F_, F_), jnp.float32) / np.sqrt(F_),
        "b2": 0.05 * jax.random.normal(ks[8], (1, F_), jnp.float32),
        # LayerNorm(filters) affine params
        "ln_gamma": 1.0 + 0.1 * jax.random.normal(ks[9], (1, F_), jnp.float32),
        "ln_beta": 0.1 * jax.random.normal(ks[10], (1, F_), jnp.float32),
    }
    # ODEFunc.time_weight: Linear(1, F) + Sigmoid, evaluated at the 9 Euler
    # left-endpoint time points (scalar t => identical factor per batch row).
    wt = jax.random.normal(ks[11], (F_,), jnp.float32)
    bt = 0.1 * jnp.arange(F_, dtype=jnp.float32) / F_
    t_eval = jnp.linspace(0.0, 1.0, N_T_POINTS)[:N_STEPS]            # (9,)
    params["time_factors"] = jax.nn.sigmoid(
        t_eval[:, None] * wt[None, :] + bt[None, :])                  # (9, F)
    return params


if __name__ == "__main__":
    # FastODE(frame_l=16, joint_n=4, joint_d=4, filters=32)
    # => expects input (B, frame_l // 2, joint_n * joint_d) = (2, 8, 16)
    B, FRAME_L, J_N, J_D, FILTERS = 2, 16, 4, 4, 32
    T = FRAME_L // 2
    Cin = J_N * J_D

    key = jax.random.PRNGKey(0)
    kx, kp = jax.random.split(key)
    x = jax.random.normal(kx, (B, T, Cin), jnp.float32)
    params = init_params(kp, T, Cin, FILTERS)

    g, mm_dtype = _device_config()
    out = fast_ode_forward(x, params, g=g, matmul_dtype=mm_dtype)
    out = jax.block_until_ready(out)

    ref = fast_ode_reference(x, params, matmul_dtype=mm_dtype)
    tol = 1e-4 if mm_dtype == jnp.float32 else 1e-2
    np.testing.assert_allclose(np.asarray(out), np.asarray(ref),
                               rtol=tol, atol=tol)
    assert out.shape == (B, T, FILTERS)
    print("KERNEL_OK")
</pallas_src>

<mosaic_0001>
module attributes {stable_mosaic.version = 11 : i64} {
  func.func @fastode_kernel(%arg0: i32, %arg1: memref<4x64xf32, #tpu.memory_space<vmem>>, %arg2: memref<64x128xf32, #tpu.memory_space<vmem>>, %arg3: memref<128x128xf32, #tpu.memory_space<vmem>>, %arg4: memref<128x128xf32, #tpu.memory_space<vmem>>, %arg5: memref<128x128xf32, #tpu.memory_space<vmem>>, %arg6: memref<4x128xf32, #tpu.memory_space<vmem>>, %arg7: memref<4x128xf32, #tpu.memory_space<vmem>>, %arg8: memref<20x128xf32, #tpu.memory_space<vmem>>, %arg9: memref<4x128xf32, #tpu.memory_space<vmem>>) attributes {dimension_semantics = [#tpu.dimension_semantics<parallel>], iteration_bounds = array<i64: 1>, scalar_prefetch = 0 : i64, scratch_operands = 0 : i64, tpu.core_type = #tpu.core_type<tc>, window_params = [{transform_indices = @transform_0, window_bounds = array<i64: 4, 64>}, {pipeline_mode = #tpu.pipeline_mode<synchronous>, transform_indices = @transform_1, window_bounds = array<i64: 64, 128>}, {pipeline_mode = #tpu.pipeline_mode<synchronous>, transform_indices = @transform_2, window_bounds = array<i64: 128, 128>}, {pipeline_mode = #tpu.pipeline_mode<synchronous>, transform_indices = @transform_3, window_bounds = array<i64: 128, 128>}, {pipeline_mode = #tpu.pipeline_mode<synchronous>, transform_indices = @transform_4, window_bounds = array<i64: 128, 128>}, {transform_indices = @transform_5, window_bounds = array<i64: 4, 128>}, {transform_indices = @transform_6, window_bounds = array<i64: 4, 128>}, {pipeline_mode = #tpu.pipeline_mode<synchronous>, transform_indices = @transform_7, window_bounds = array<i64: 20, 128>}, {transform_indices = @transform_8, window_bounds = array<i64: 4, 128>}]} {
    %c0 = arith.constant 0 : index
    %c0_0 = arith.constant 0 : index
    %0 = vector.load %arg1[%c0, %c0_0] : memref<4x64xf32, #tpu.memory_space<vmem>>, vector<4x64xf32>
    %c0_1 = arith.constant 0 : index
    %c0_2 = arith.constant 0 : index
    %1 = vector.load %arg2[%c0_1, %c0_2] : memref<64x128xf32, #tpu.memory_space<vmem>>, vector<64x128xf32>
    %cst = arith.constant dense<0.000000e+00> : vector<4x128xf32>
    %2 = tpu.matmul %0, %1, %cst {dimension_numbers = #tpu.dot_dimension_numbers<[1], [0], [0], [1], [0, 0, 1, 1], [], []>} : vector<4x64xf32>, vector<64x128xf32>, vector<4x128xf32> -> vector<4x128xf32>
    %c0_3 = arith.constant 0 : index
    %c0_4 = arith.constant 0 : index
    %3 = vector.load %arg6[%c0_3, %c0_4] : memref<4x128xf32, #tpu.memory_space<vmem>>, vector<4x128xf32>
    %4 = arith.mulf %2, %3 : vector<4x128xf32>
    %c0_5 = arith.constant 0 : index
    %c0_6 = arith.constant 0 : index
    %5 = vector.load %arg7[%c0_5, %c0_6] : memref<4x128xf32, #tpu.memory_space<vmem>>, vector<4x128xf32>
    %6 = arith.addf %4, %5 : vector<4x128xf32>
    %cst_7 = arith.constant 2.000000e-01 : f32
    %7 = vector.broadcast %cst_7 : f32 to vector<4x128xf32>
    %8 = arith.mulf %7, %6 : vector<4x128xf32>
    %9 = arith.maximumf %6, %8 : vector<4x128xf32>
    %c0_8 = arith.constant 0 : index
    %c0_9 = arith.constant 0 : index
    %10 = vector.load %arg3[%c0_8, %c0_9] : memref<128x128xf32, #tpu.memory_space<vmem>>, vector<128x128xf32>
    %c0_10 = arith.constant 0 : index
    %c0_11 = arith.constant 0 : index
    %11 = vector.load %arg4[%c0_10, %c0_11] : memref<128x128xf32, #tpu.memory_space<vmem>>, vector<128x128xf32>
    %c0_12 = arith.constant 0 : index
    %c0_13 = arith.constant 0 : index
    %12 = vector.load %arg5[%c0_12, %c0_13] : memref<128x128xf32, #tpu.memory_space<vmem>>, vector<128x128xf32>
    %c0_14 = arith.constant 0 : index
    %c0_15 = arith.constant 0 : index
    %13 = vector.load %arg8[%c0_14, %c0_15] : memref<20x128xf32, #tpu.memory_space<vmem>>, vector<20x128xf32>
    %14 = vector.extract_strided_slice %13 {offsets = [0, 0], sizes = [1, 128], strides = [1, 1]} : vector<20x128xf32> to vector<1x128xf32>
    %15 = vector.shape_cast %14 : vector<1x128xf32> to vector<1x128xf32>
    %16 = vector.broadcast %15 : vector<1x128xf32> to vector<4x128xf32>
    %17 = vector.extract_strided_slice %13 {offsets = [1, 0], sizes = [1, 128], strides = [1, 1]} : vector<20x128xf32> to vector<1x128xf32>
    %18 = vector.shape_cast %17 : vector<1x128xf32> to vector<1x128xf32>
    %19 = vector.broadcast %18 : vector<1x128xf32> to vector<4x128xf32>
    %cst_16 = arith.constant dense<0.000000e+00> : vector<4x128xf32>
    %20 = tpu.matmul %9, %10, %cst_16 {dimension_numbers = #tpu.dot_dimension_numbers<[1], [0], [0], [1], [0, 0, 1, 1], [], []>} : vector<4x128xf32>, vector<128x128xf32>, vector<4x128xf32> -> vector<4x128xf32>
    %21 = arith.addf %20, %16 : vector<4x128xf32>
    %22 = arith.negf %21 : vector<4x128xf32>
    %23 = math.exp %22 : vector<4x128xf32>
    %cst_17 = arith.constant 1.000000e+00 : f32
    %24 = vector.broadcast %cst_17 : f32 to vector<4x128xf32>
    %25 = arith.addf %24, %23 : vector<4x128xf32>
    %26 = arith.divf %24, %25 : vector<4x128xf32>
    %27 = arith.mulf %21, %26 : vector<4x128xf32>
    %cst_18 = arith.constant dense<0.000000e+00> : vector<4x128xf32>
    %28 = tpu.matmul %27, %11, %cst_18 {dimension_numbers = #tpu.dot_dimension_numbers<[1], [0], [0], [1], [0, 0, 1, 1], [], []>} : vector<4x128xf32>, vector<128x128xf32>, vector<4x128xf32> -> vector<4x128xf32>
    %29 = arith.addf %28, %19 : vector<4x128xf32>
    %cst_19 = arith.constant dense<0.000000e+00> : vector<4x128xf32>
    %30 = tpu.matmul %29, %12, %cst_19 {dimension_numbers = #tpu.dot_dimension_numbers<[1], [0], [0], [1], [0, 0, 1, 1], [], []>} : vector<4x128xf32>, vector<128x128xf32>, vector<4x128xf32> -> vector<4x128xf32>
    %31 = arith.mulf %29, %29 : vector<4x128xf32>
    %cst_20 = arith.constant dense<0.000000e+00> : vector<4x128xf32>
    %32 = tpu.matmul %31, %12, %cst_20 {dimension_numbers = #tpu.dot_dimension_numbers<[1], [0], [0], [1], [0, 0, 1, 1], [], []>} : vector<4x128xf32>, vector<128x128xf32>, vector<4x128xf32> -> vector<4x128xf32>
    %33 = arith.mulf %30, %30 : vector<4x128xf32>
    %34 = arith.subf %32, %33 : vector<4x128xf32>
    %cst_21 = arith.constant 9.99999974E-6 : f32
    %35 = vector.broadcast %cst_21 : f32 to vector<4x128xf32>
    %36 = arith.addf %34, %35 : vector<4x128xf32>
    %37 = math.rsqrt %36 : vector<4x128xf32>
    %38 = arith.subf %29, %30 : vector<4x128xf32>
    %39 = arith.mulf %38, %37 : vector<4x128xf32>
    %40 = vector.extract_strided_slice %13 {offsets = [2, 0], sizes = [1, 128], strides = [1, 1]} : vector<20x128xf32> to vector<1x128xf32>
    %41 = vector.extract_strided_slice %13 {offsets = [11, 0], sizes = [1, 128], strides = [1, 1]} : vector<20x128xf32> to vector<1x128xf32>
    %cst_22 = arith.constant 1.11111116 : f32
    %42 = vector.broadcast %cst_22 : f32 to vector<4x128xf32>
    %43 = arith.mulf %9, %42 : vector<4x128xf32>
    %44 = vector.broadcast %40 : vector<1x128xf32> to vector<4x128xf32>
    %45 = arith.mulf %39, %44 : vector<4x128xf32>
    %46 = arith.addf %43, %45 : vector<4x128xf32>
    %47 = vector.broadcast %41 : vector<1x128xf32> to vector<4x128xf32>
    %48 = arith.addf %46, %47 : vector<4x128xf32>
    %cst_23 = arith.constant dense<0.000000e+00> : vector<4x128xf32>
    %49 = tpu.matmul %48, %10, %cst_23 {dimension_numbers = #tpu.dot_dimension_numbers<[1], [0], [0], [1], [0, 0, 1, 1], [], []>} : vector<4x128xf32>, vector<128x128xf32>, vector<4x128xf32> -> vector<4x128xf32>
    %50 = arith.addf %49, %16 : vector<4x128xf32>
    %51 = arith.negf %50 : vector<4x128xf32>
    %52 = math.exp %51 : vector<4x128xf32>
    %cst_24 = arith.constant 1.000000e+00 : f32
    %53 = vector.broadcast %cst_24 : f32 to vector<4x128xf32>
    %54 = arith.addf %53, %52 : vector<4x128xf32>
    %55 = arith.divf %53, %54 : vector<4x128xf32>
    %56 = arith.mulf %50, %55 : vector<4x128xf32>
    %cst_25 = arith.constant dense<0.000000e+00> : vector<4x128xf32>
    %57 = tpu.matmul %56, %11, %cst_25 {dimension_numbers = #tpu.dot_dimension_numbers<[1], [0], [0], [1], [0, 0, 1, 1], [], []>} : vector<4x128xf32>, vector<128x128xf32>, vector<4x128xf32> -> vector<4x128xf32>
    %58 = arith.addf %57, %19 : vector<4x128xf32>
    %cst_26 = arith.constant dense<0.000000e+00> : vector<4x128xf32>
    %59 = tpu.matmul %58, %12, %cst_26 {dimension_numbers = #tpu.dot_dimension_numbers<[1], [0], [0], [1], [0, 0, 1, 1], [], []>} : vector<4x128xf32>, vector<128x128xf32>, vector<4x128xf32> -> vector<4x128xf32>
    %60 = arith.mulf %58, %58 : vector<4x128xf32>
    %cst_27 = arith.constant dense<0.000000e+00> : vector<4x128xf32>
    %61 = tpu.matmul %60, %12, %cst_27 {dimension_numbers = #tpu.dot_dimension_numbers<[1], [0], [0], [1], [0, 0, 1, 1], [], []>} : vector<4x128xf32>, vector<128x128xf32>, vector<4x128xf32> -> vector<4x128xf32>
    %62 = arith.mulf %59, %59 : vector<4x128xf32>
    %63 = arith.subf %61, %62 : vector<4x128xf32>
    %cst_28 = arith.constant 9.99999974E-6 : f32
    %64 = vector.broadcast %cst_28 : f32 to vector<4x128xf32>
    %65 = arith.addf %63, %64 : vector<4x128xf32>
    %66 = math.rsqrt %65 : vector<4x128xf32>
    %67 = arith.subf %58, %59 : vector<4x128xf32>
    %68 = arith.mulf %67, %66 : vector<4x128xf32>
    %69 = vector.extract_strided_slice %13 {offsets = [3, 0], sizes = [1, 128], strides = [1, 1]} : vector<20x128xf32> to vector<1x128xf32>
    %70 = vector.extract_strided_slice %13 {offsets = [12, 0], sizes = [1, 128], strides = [1, 1]} : vector<20x128xf32> to vector<1x128xf32>
    %cst_29 = arith.constant 1.11111116 : f32
    %71 = vector.broadcast %cst_29 : f32 to vector<4x128xf32>
    %72 = arith.mulf %48, %71 : vector<4x128xf32>
    %73 = vector.broadcast %69 : vector<1x128xf32> to vector<4x128xf32>
    %74 = arith.mulf %68, %73 : vector<4x128xf32>
    %75 = arith.addf %72, %74 : vector<4x128xf32>
    %76 = vector.broadcast %70 : vector<1x128xf32> to vector<4x128xf32>
    %77 = arith.addf %75, %76 : vector<4x128xf32>
    %cst_30 = arith.constant dense<0.000000e+00> : vector<4x128xf32>
    %78 = tpu.matmul %77, %10, %cst_30 {dimension_numbers = #tpu.dot_dimension_numbers<[1], [0], [0], [1], [0, 0, 1, 1], [], []>} : vector<4x128xf32>, vector<128x128xf32>, vector<4x128xf32> -> vector<4x128xf32>
    %79 = arith.addf %78, %16 : vector<4x128xf32>
    %80 = arith.negf %79 : vector<4x128xf32>
    %81 = math.exp %80 : vector<4x128xf32>
    %cst_31 = arith.constant 1.000000e+00 : f32
    %82 = vector.broadcast %cst_31 : f32 to vector<4x128xf32>
    %83 = arith.addf %82, %81 : vector<4x128xf32>
    %84 = arith.divf %82, %83 : vector<4x128xf32>
    %85 = arith.mulf %79, %84 : vector<4x128xf32>
    %cst_32 = arith.constant dense<0.000000e+00> : vector<4x128xf32>
    %86 = tpu.matmul %85, %11, %cst_32 {dimension_numbers = #tpu.dot_dimension_numbers<[1], [0], [0], [1], [0, 0, 1, 1], [], []>} : vector<4x128xf32>, vector<128x128xf32>, vector<4x128xf32> -> vector<4x128xf32>
    %87 = arith.addf %86, %19 : vector<4x128xf32>
    %cst_33 = arith.constant dense<0.000000e+00> : vector<4x128xf32>
    %88 = tpu.matmul %87, %12, %cst_33 {dimension_numbers = #tpu.dot_dimension_numbers<[1], [0], [0], [1], [0, 0, 1, 1], [], []>} : vector<4x128xf32>, vector<128x128xf32>, vector<4x128xf32> -> vector<4x128xf32>
    %89 = arith.mulf %87, %87 : vector<4x128xf32>
    %cst_34 = arith.constant dense<0.000000e+00> : vector<4x128xf32>
    %90 = tpu.matmul %89, %12, %cst_34 {dimension_numbers = #tpu.dot_dimension_numbers<[1], [0], [0], [1], [0, 0, 1, 1], [], []>} : vector<4x128xf32>, vector<128x128xf32>, vector<4x128xf32> -> vector<4x128xf32>
    %91 = arith.mulf %88, %88 : vector<4x128xf32>
    %92 = arith.subf %90, %91 : vector<4x128xf32>
    %cst_35 = arith.constant 9.99999974E-6 : f32
    %93 = vector.broadcast %cst_35 : f32 to vector<4x128xf32>
    %94 = arith.addf %92, %93 : vector<4x128xf32>
    %95 = math.rsqrt %94 : vector<4x128xf32>
    %96 = arith.subf %87, %88 : vector<4x128xf32>
    %97 = arith.mulf %96, %95 : vector<4x128xf32>
    %98 = vector.extract_strided_slice %13 {offsets = [4, 0], sizes = [1, 128], strides = [1, 1]} : vector<20x128xf32> to vector<1x128xf32>
    %99 = vector.extract_strided_slice %13 {offsets = [13, 0], sizes = [1, 128], strides = [1, 1]} : vector<20x128xf32> to vector<1x128xf32>
    %cst_36 = arith.constant 1.11111116 : f32
    %100 = vector.broadcast %cst_36 : f32 to vector<4x128xf32>
    %101 = arith.mulf %77, %100 : vector<4x128xf32>
    %102 = vector.broadcast %98 : vector<1x128xf32> to vector<4x128xf32>
    %103 = arith.mulf %97, %102 : vector<4x128xf32>
    %104 = arith.addf %101, %103 : vector<4x128xf32>
    %105 = vector.broadcast %99 : vector<1x128xf32> to vector<4x128xf32>
    %106 = arith.addf %104, %105 : vector<4x128xf32>
    %cst_37 = arith.constant dense<0.000000e+00> : vector<4x128xf32>
    %107 = tpu.matmul %106, %10, %cst_37 {dimension_numbers = #tpu.dot_dimension_numbers<[1], [0], [0], [1], [0, 0, 1, 1], [], []>} : vector<4x128xf32>, vector<128x128xf32>, vector<4x128xf32> -> vector<4x128xf32>
    %108 = arith.addf %107, %16 : vector<4x128xf32>
    %109 = arith.negf %108 : vector<4x128xf32>
    %110 = math.exp %109 : vector<4x128xf32>
    %cst_38 = arith.constant 1.000000e+00 : f32
    %111 = vector.broadcast %cst_38 : f32 to vector<4x128xf32>
    %112 = arith.addf %111, %110 : vector<4x128xf32>
    %113 = arith.divf %111, %112 : vector<4x128xf32>
    %114 = arith.mulf %108, %113 : vector<4x128xf32>
    %cst_39 = arith.constant dense<0.000000e+00> : vector<4x128xf32>
    %115 = tpu.matmul %114, %11, %cst_39 {dimension_numbers = #tpu.dot_dimension_numbers<[1], [0], [0], [1], [0, 0, 1, 1], [], []>} : vector<4x128xf32>, vector<128x128xf32>, vector<4x128xf32> -> vector<4x128xf32>
    %116 = arith.addf %115, %19 : vector<4x128xf32>
    %cst_40 = arith.constant dense<0.000000e+00> : vector<4x128xf32>
    %117 = tpu.matmul %116, %12, %cst_40 {dimension_numbers = #tpu.dot_dimension_numbers<[1], [0], [0], [1], [0, 0, 1, 1], [], []>} : vector<4x128xf32>, vector<128x128xf32>, vector<4x128xf32> -> vector<4x128xf32>
    %118 = arith.mulf %116, %116 : vector<4x128xf32>
    %cst_41 = arith.constant dense<0.000000e+00> : vector<4x128xf32>
    %119 = tpu.matmul %118, %12, %cst_41 {dimension_numbers = #tpu.dot_dimension_numbers<[1], [0], [0], [1], [0, 0, 1, 1], [], []>} : vector<4x128xf32>, vector<128x128xf32>, vector<4x128xf32> -> vector<4x128xf32>
    %120 = arith.mulf %117, %117 : vector<4x128xf32>
    %121 = arith.subf %119, %120 : vector<4x128xf32>
    %cst_42 = arith.constant 9.99999974E-6 : f32
    %122 = vector.broadcast %cst_42 : f32 to vector<4x128xf32>
    %123 = arith.addf %121, %122 : vector<4x128xf32>
    %124 = math.rsqrt %123 : vector<4x128xf32>
    %125 = arith.subf %116, %117 : vector<4x128xf32>
    %126 = arith.mulf %125, %124 : vector<4x128xf32>
    %127 = vector.extract_strided_slice %13 {offsets = [5, 0], sizes = [1, 128], strides = [1, 1]} : vector<20x128xf32> to vector<1x128xf32>
    %128 = vector.extract_strided_slice %13 {offsets = [14, 0], sizes = [1, 128], strides = [1, 1]} : vector<20x128xf32> to vector<1x128xf32>
    %cst_43 = arith.constant 1.11111116 : f32
    %129 = vector.broadcast %cst_43 : f32 to vector<4x128xf32>
    %130 = arith.mulf %106, %129 : vector<4x128xf32>
    %131 = vector.broadcast %127 : vector<1x128xf32> to vector<4x128xf32>
    %132 = arith.mulf %126, %131 : vector<4x128xf32>
    %133 = arith.addf %130, %132 : vector<4x128xf32>
    %134 = vector.broadcast %128 : vector<1x128xf32> to vector<4x128xf32>
    %135 = arith.addf %133, %134 : vector<4x128xf32>
    %cst_44 = arith.constant dense<0.000000e+00> : vector<4x128xf32>
    %136 = tpu.matmul %135, %10, %cst_44 {dimension_numbers = #tpu.dot_dimension_numbers<[1], [0], [0], [1], [0, 0, 1, 1], [], []>} : vector<4x128xf32>, vector<128x128xf32>, vector<4x128xf32> -> vector<4x128xf32>
    %137 = arith.addf %136, %16 : vector<4x128xf32>
    %138 = arith.negf %137 : vector<4x128xf32>
    %139 = math.exp %138 : vector<4x128xf32>
    %cst_45 = arith.constant 1.000000e+00 : f32
    %140 = vector.broadcast %cst_45 : f32 to vector<4x128xf32>
    %141 = arith.addf %140, %139 : vector<4x128xf32>
    %142 = arith.divf %140, %141 : vector<4x128xf32>
    %143 = arith.mulf %137, %142 : vector<4x128xf32>
    %cst_46 = arith.constant dense<0.000000e+00> : vector<4x128xf32>
    %144 = tpu.matmul %143, %11, %cst_46 {dimension_numbers = #tpu.dot_dimension_numbers<[1], [0], [0], [1], [0, 0, 1, 1], [], []>} : vector<4x128xf32>, vector<128x128xf32>, vector<4x128xf32> -> vector<4x128xf32>
    %145 = arith.addf %144, %19 : vector<4x128xf32>
    %cst_47 = arith.constant dense<0.000000e+00> : vector<4x128xf32>
    %146 = tpu.matmul %145, %12, %cst_47 {dimension_numbers = #tpu.dot_dimension_numbers<[1], [0], [0], [1], [0, 0, 1, 1], [], []>} : vector<4x128xf32>, vector<128x128xf32>, vector<4x128xf32> -> vector<4x128xf32>
    %147 = arith.mulf %145, %145 : vector<4x128xf32>
    %cst_48 = arith.constant dense<0.000000e+00> : vector<4x128xf32>
    %148 = tpu.matmul %147, %12, %cst_48 {dimension_numbers = #tpu.dot_dimension_numbers<[1], [0], [0], [1], [0, 0, 1, 1], [], []>} : vector<4x128xf32>, vector<128x128xf32>, vector<4x128xf32> -> vector<4x128xf32>
    %149 = arith.mulf %146, %146 : vector<4x128xf32>
    %150 = arith.subf %148, %149 : vector<4x128xf32>
    %cst_49 = arith.constant 9.99999974E-6 : f32
    %151 = vector.broadcast %cst_49 : f32 to vector<4x128xf32>
    %152 = arith.addf %150, %151 : vector<4x128xf32>
    %153 = math.rsqrt %152 : vector<4x128xf32>
    %154 = arith.subf %145, %146 : vector<4x128xf32>
    %155 = arith.mulf %154, %153 : vector<4x128xf32>
    %156 = vector.extract_strided_slice %13 {offsets = [6, 0], sizes = [1, 128], strides = [1, 1]} : vector<20x128xf32> to vector<1x128xf32>
    %157 = vector.extract_strided_slice %13 {offsets = [15, 0], sizes = [1, 128], strides = [1, 1]} : vector<20x128xf32> to vector<1x128xf32>
    %cst_50 = arith.constant 1.11111116 : f32
    %158 = vector.broadcast %cst_50 : f32 to vector<4x128xf32>
    %159 = arith.mulf %135, %158 : vector<4x128xf32>
    %160 = vector.broadcast %156 : vector<1x128xf32> to vector<4x128xf32>
    %161 = arith.mulf %155, %160 : vector<4x128xf32>
    %162 = arith.addf %159, %161 : vector<4x128xf32>
    %163 = vector.broadcast %157 : vector<1x128xf32> to vector<4x128xf32>
    %164 = arith.addf %162, %163 : vector<4x128xf32>
    %cst_51 = arith.constant dense<0.000000e+00> : vector<4x128xf32>
    %165 = tpu.matmul %164, %10, %cst_51 {dimension_numbers = #tpu.dot_dimension_numbers<[1], [0], [0], [1], [0, 0, 1, 1], [], []>} : vector<4x128xf32>, vector<128x128xf32>, vector<4x128xf32> -> vector<4x128xf32>
    %166 = arith.addf %165, %16 : vector<4x128xf32>
    %167 = arith.negf %166 : vector<4x128xf32>
    %168 = math.exp %167 : vector<4x128xf32>
    %cst_52 = arith.constant 1.000000e+00 : f32
    %169 = vector.broadcast %cst_52 : f32 to vector<4x128xf32>
    %170 = arith.addf %169, %168 : vector<4x128xf32>
    %171 = arith.divf %169, %170 : vector<4x128xf32>
    %172 = arith.mulf %166, %171 : vector<4x128xf32>
    %cst_53 = arith.constant dense<0.000000e+00> : vector<4x128xf32>
    %173 = tpu.matmul %172, %11, %cst_53 {dimension_numbers = #tpu.dot_dimension_numbers<[1], [0], [0], [1], [0, 0, 1, 1], [], []>} : vector<4x128xf32>, vector<128x128xf32>, vector<4x128xf32> -> vector<4x128xf32>
    %174 = arith.addf %173, %19 : vector<4x128xf32>
    %cst_54 = arith.constant dense<0.000000e+00> : vector<4x128xf32>
    %175 = tpu.matmul %174, %12, %cst_54 {dimension_numbers = #tpu.dot_dimension_numbers<[1], [0], [0], [1], [0, 0, 1, 1], [], []>} : vector<4x128xf32>, vector<128x128xf32>, vector<4x128xf32> -> vector<4x128xf32>
    %176 = arith.mulf %174, %174 : vector<4x128xf32>
    %cst_55 = arith.constant dense<0.000000e+00> : vector<4x128xf32>
    %177 = tpu.matmul %176, %12, %cst_55 {dimension_numbers = #tpu.dot_dimension_numbers<[1], [0], [0], [1], [0, 0, 1, 1], [], []>} : vector<4x128xf32>, vector<128x128xf32>, vector<4x128xf32> -> vector<4x128xf32>
    %178 = arith.mulf %175, %175 : vector<4x128xf32>
    %179 = arith.subf %177, %178 : vector<4x128xf32>
    %cst_56 = arith.constant 9.99999974E-6 : f32
    %180 = vector.broadcast %cst_56 : f32 to vector<4x128xf32>
    %181 = arith.addf %179, %180 : vector<4x128xf32>
    %182 = math.rsqrt %181 : vector<4x128xf32>
    %183 = arith.subf %174, %175 : vector<4x128xf32>
    %184 = arith.mulf %183, %182 : vector<4x128xf32>
    %185 = vector.extract_strided_slice %13 {offsets = [7, 0], sizes = [1, 128], strides = [1, 1]} : vector<20x128xf32> to vector<1x128xf32>
    %186 = vector.extract_strided_slice %13 {offsets = [16, 0], sizes = [1, 128], strides = [1, 1]} : vector<20x128xf32> to vector<1x128xf32>
    %cst_57 = arith.constant 1.11111116 : f32
    %187 = vector.broadcast %cst_57 : f32 to vector<4x128xf32>
    %188 = arith.mulf %164, %187 : vector<4x128xf32>
    %189 = vector.broadcast %185 : vector<1x128xf32> to vector<4x128xf32>
    %190 = arith.mulf %184, %189 : vector<4x128xf32>
    %191 = arith.addf %188, %190 : vector<4x128xf32>
    %192 = vector.broadcast %186 : vector<1x128xf32> to vector<4x128xf32>
    %193 = arith.addf %191, %192 : vector<4x128xf32>
    %cst_58 = arith.constant dense<0.000000e+00> : vector<4x128xf32>
    %194 = tpu.matmul %193, %10, %cst_58 {dimension_numbers = #tpu.dot_dimension_numbers<[1], [0], [0], [1], [0, 0, 1, 1], [], []>} : vector<4x128xf32>, vector<128x128xf32>, vector<4x128xf32> -> vector<4x128xf32>
    %195 = arith.addf %194, %16 : vector<4x128xf32>
    %196 = arith.negf %195 : vector<4x128xf32>
    %197 = math.exp %196 : vector<4x128xf32>
    %cst_59 = arith.constant 1.000000e+00 : f32
    %198 = vector.broadcast %cst_59 : f32 to vector<4x128xf32>
    %199 = arith.addf %198, %197 : vector<4x128xf32>
    %200 = arith.divf %198, %199 : vector<4x128xf32>
    %201 = arith.mulf %195, %200 : vector<4x128xf32>
    %cst_60 = arith.constant dense<0.000000e+00> : vector<4x128xf32>
    %202 = tpu.matmul %201, %11, %cst_60 {dimension_numbers = #tpu.dot_dimension_numbers<[1], [0], [0], [1], [0, 0, 1, 1], [], []>} : vector<4x128xf32>, vector<128x128xf32>, vector<4x128xf32> -> vector<4x128xf32>
    %203 = arith.addf %202, %19 : vector<4x128xf32>
    %cst_61 = arith.constant dense<0.000000e+00> : vector<4x128xf32>
    %204 = tpu.matmul %203, %12, %cst_61 {dimension_numbers = #tpu.dot_dimension_numbers<[1], [0], [0], [1], [0, 0, 1, 1], [], []>} : vector<4x128xf32>, vector<128x128xf32>, vector<4x128xf32> -> vector<4x128xf32>
    %205 = arith.mulf %203, %203 : vector<4x128xf32>
    %cst_62 = arith.constant dense<0.000000e+00> : vector<4x128xf32>
    %206 = tpu.matmul %205, %12, %cst_62 {dimension_numbers = #tpu.dot_dimension_numbers<[1], [0], [0], [1], [0, 0, 1, 1], [], []>} : vector<4x128xf32>, vector<128x128xf32>, vector<4x128xf32> -> vector<4x128xf32>
    %207 = arith.mulf %204, %204 : vector<4x128xf32>
    %208 = arith.subf %206, %207 : vector<4x128xf32>
    %cst_63 = arith.constant 9.99999974E-6 : f32
    %209 = vector.broadcast %cst_63 : f32 to vector<4x128xf32>
    %210 = arith.addf %208, %209 : vector<4x128xf32>
    %211 = math.rsqrt %210 : vector<4x128xf32>
    %212 = arith.subf %203, %204 : vector<4x128xf32>
    %213 = arith.mulf %212, %211 : vector<4x128xf32>
    %214 = vector.extract_strided_slice %13 {offsets = [8, 0], sizes = [1, 128], strides = [1, 1]} : vector<20x128xf32> to vector<1x128xf32>
    %215 = vector.extract_strided_slice %13 {offsets = [17, 0], sizes = [1, 128], strides = [1, 1]} : vector<20x128xf32> to vector<1x128xf32>
    %cst_64 = arith.constant 1.11111116 : f32
    %216 = vector.broadcast %cst_64 : f32 to vector<4x128xf32>
    %217 = arith.mulf %193, %216 : vector<4x128xf32>
    %218 = vector.broadcast %214 : vector<1x128xf32> to vector<4x128xf32>
    %219 = arith.mulf %213, %218 : vector<4x128xf32>
    %220 = arith.addf %217, %219 : vector<4x128xf32>
    %221 = vector.broadcast %215 : vector<1x128xf32> to vector<4x128xf32>
    %222 = arith.addf %220, %221 : vector<4x128xf32>
    %cst_65 = arith.constant dense<0.000000e+00> : vector<4x128xf32>
    %223 = tpu.matmul %222, %10, %cst_65 {dimension_numbers = #tpu.dot_dimension_numbers<[1], [0], [0], [1], [0, 0, 1, 1], [], []>} : vector<4x128xf32>, vector<128x128xf32>, vector<4x128xf32> -> vector<4x128xf32>
    %224 = arith.addf %223, %16 : vector<4x128xf32>
    %225 = arith.negf %224 : vector<4x128xf32>
    %226 = math.exp %225 : vector<4x128xf32>
    %cst_66 = arith.constant 1.000000e+00 : f32
    %227 = vector.broadcast %cst_66 : f32 to vector<4x128xf32>
    %228 = arith.addf %227, %226 : vector<4x128xf32>
    %229 = arith.divf %227, %228 : vector<4x128xf32>
    %230 = arith.mulf %224, %229 : vector<4x128xf32>
    %cst_67 = arith.constant dense<0.000000e+00> : vector<4x128xf32>
    %231 = tpu.matmul %230, %11, %cst_67 {dimension_numbers = #tpu.dot_dimension_numbers<[1], [0], [0], [1], [0, 0, 1, 1], [], []>} : vector<4x128xf32>, vector<128x128xf32>, vector<4x128xf32> -> vector<4x128xf32>
    %232 = arith.addf %231, %19 : vector<4x128xf32>
    %cst_68 = arith.constant dense<0.000000e+00> : vector<4x128xf32>
    %233 = tpu.matmul %232, %12, %cst_68 {dimension_numbers = #tpu.dot_dimension_numbers<[1], [0], [0], [1], [0, 0, 1, 1], [], []>} : vector<4x128xf32>, vector<128x128xf32>, vector<4x128xf32> -> vector<4x128xf32>
    %234 = arith.mulf %232, %232 : vector<4x128xf32>
    %cst_69 = arith.constant dense<0.000000e+00> : vector<4x128xf32>
    %235 = tpu.matmul %234, %12, %cst_69 {dimension_numbers = #tpu.dot_dimension_numbers<[1], [0], [0], [1], [0, 0, 1, 1], [], []>} : vector<4x128xf32>, vector<128x128xf32>, vector<4x128xf32> -> vector<4x128xf32>
    %236 = arith.mulf %233, %233 : vector<4x128xf32>
    %237 = arith.subf %235, %236 : vector<4x128xf32>
    %cst_70 = arith.constant 9.99999974E-6 : f32
    %238 = vector.broadcast %cst_70 : f32 to vector<4x128xf32>
    %239 = arith.addf %237, %238 : vector<4x128xf32>
    %240 = math.rsqrt %239 : vector<4x128xf32>
    %241 = arith.subf %232, %233 : vector<4x128xf32>
    %242 = arith.mulf %241, %240 : vector<4x128xf32>
    %243 = vector.extract_strided_slice %13 {offsets = [9, 0], sizes = [1, 128], strides = [1, 1]} : vector<20x128xf32> to vector<1x128xf32>
    %244 = vector.extract_strided_slice %13 {offsets = [18, 0], sizes = [1, 128], strides = [1, 1]} : vector<20x128xf32> to vector<1x128xf32>
    %cst_71 = arith.constant 1.11111116 : f32
    %245 = vector.broadcast %cst_71 : f32 to vector<4x128xf32>
    %246 = arith.mulf %222, %245 : vector<4x128xf32>
    %247 = vector.broadcast %243 : vector<1x128xf32> to vector<4x128xf32>
    %248 = arith.mulf %242, %247 : vector<4x128xf32>
    %249 = arith.addf %246, %248 : vector<4x128xf32>
    %250 = vector.broadcast %244 : vector<1x128xf32> to vector<4x128xf32>
    %251 = arith.addf %249, %250 : vector<4x128xf32>
    %cst_72 = arith.constant dense<0.000000e+00> : vector<4x128xf32>
    %252 = tpu.matmul %251, %10, %cst_72 {dimension_numbers = #tpu.dot_dimension_numbers<[1], [0], [0], [1], [0, 0, 1, 1], [], []>} : vector<4x128xf32>, vector<128x128xf32>, vector<4x128xf32> -> vector<4x128xf32>
    %253 = arith.addf %252, %16 : vector<4x128xf32>
    %254 = arith.negf %253 : vector<4x128xf32>
    %255 = math.exp %254 : vector<4x128xf32>
    %cst_73 = arith.constant 1.000000e+00 : f32
    %256 = vector.broadcast %cst_73 : f32 to vector<4x128xf32>
    %257 = arith.addf %256, %255 : vector<4x128xf32>
    %258 = arith.divf %256, %257 : vector<4x128xf32>
    %259 = arith.mulf %253, %258 : vector<4x128xf32>
    %cst_74 = arith.constant dense<0.000000e+00> : vector<4x128xf32>
    %260 = tpu.matmul %259, %11, %cst_74 {dimension_numbers = #tpu.dot_dimension_numbers<[1], [0], [0], [1], [0, 0, 1, 1], [], []>} : vector<4x128xf32>, vector<128x128xf32>, vector<4x128xf32> -> vector<4x128xf32>
    %261 = arith.addf %260, %19 : vector<4x128xf32>
    %cst_75 = arith.constant dense<0.000000e+00> : vector<4x128xf32>
    %262 = tpu.matmul %261, %12, %cst_75 {dimension_numbers = #tpu.dot_dimension_numbers<[1], [0], [0], [1], [0, 0, 1, 1], [], []>} : vector<4x128xf32>, vector<128x128xf32>, vector<4x128xf32> -> vector<4x128xf32>
    %263 = arith.mulf %261, %261 : vector<4x128xf32>
    %cst_76 = arith.constant dense<0.000000e+00> : vector<4x128xf32>
    %264 = tpu.matmul %263, %12, %cst_76 {dimension_numbers = #tpu.dot_dimension_numbers<[1], [0], [0], [1], [0, 0, 1, 1], [], []>} : vector<4x128xf32>, vector<128x128xf32>, vector<4x128xf32> -> vector<4x128xf32>
    %265 = arith.mulf %262, %262 : vector<4x128xf32>
    %266 = arith.subf %264, %265 : vector<4x128xf32>
    %cst_77 = arith.constant 9.99999974E-6 : f32
    %267 = vector.broadcast %cst_77 : f32 to vector<4x128xf32>
    %268 = arith.addf %266, %267 : vector<4x128xf32>
    %269 = math.rsqrt %268 : vector<4x128xf32>
    %270 = arith.subf %261, %262 : vector<4x128xf32>
    %271 = arith.mulf %270, %269 : vector<4x128xf32>
    %272 = vector.extract_strided_slice %13 {offsets = [10, 0], sizes = [1, 128], strides = [1, 1]} : vector<20x128xf32> to vector<1x128xf32>
    %273 = vector.extract_strided_slice %13 {offsets = [19, 0], sizes = [1, 128], strides = [1, 1]} : vector<20x128xf32> to vector<1x128xf32>
    %cst_78 = arith.constant 1.11111116 : f32
    %274 = vector.broadcast %cst_78 : f32 to vector<4x128xf32>
    %275 = arith.mulf %251, %274 : vector<4x128xf32>
    %276 = vector.broadcast %272 : vector<1x128xf32> to vector<4x128xf32>
    %277 = arith.mulf %271, %276 : vector<4x128xf32>
    %278 = arith.addf %275, %277 : vector<4x128xf32>
    %279 = vector.broadcast %273 : vector<1x128xf32> to vector<4x128xf32>
    %280 = arith.addf %278, %279 : vector<4x128xf32>
    %c0_79 = arith.constant 0 : index
    %c0_80 = arith.constant 0 : index
    %281 = vector.load %arg9[%c0_79, %c0_80] : memref<4x128xf32, #tpu.memory_space<vmem>>, vector<4x128xf32>
    tpu.vector_store %arg9[%c0_79, %c0_80], %280 {strides = array<i32>} : memref<4x128xf32, #tpu.memory_space<vmem>>, vector<4x128xf32>,
    return
  }
  func.func @transform_0(%arg0: i32) -> (i32, i32) {
    %c0_i32 = arith.constant 0 : i32
    %c0_i32_0 = arith.constant 0 : i32
    return %arg0, %c0_i32 : i32, i32
  }
  func.func @transform_1(%arg0: i32) -> (i32, i32) {
    %c0_i32 = arith.constant 0 : i32
    %c0_i32_0 = arith.constant 0 : i32
    %c0_i32_1 = arith.constant 0 : i32
    return %c0_i32, %c0_i32_0 : i32, i32
  }
  func.func @transform_2(%arg0: i32) -> (i32, i32) {
    %c0_i32 = arith.constant 0 : i32
    %c0_i32_0 = arith.constant 0 : i32
    %c0_i32_1 = arith.constant 0 : i32
    return %c0_i32, %c0_i32_0 : i32, i32
  }
  func.func @transform_3(%arg0: i32) -> (i32, i32) {
    %c0_i32 = arith.constant 0 : i32
    %c0_i32_0 = arith.constant 0 : i32
    %c0_i32_1 = arith.constant 0 : i32
    return %c0_i32, %c0_i32_0 : i32, i32
  }
  func.func @transform_4(%arg0: i32) -> (i32, i32) {
    %c0_i32 = arith.constant 0 : i32
    %c0_i32_0 = arith.constant 0 : i32
    %c0_i32_1 = arith.constant 0 : i32
    return %c0_i32, %c0_i32_0 : i32, i32
  }
  func.func @transform_5(%arg0: i32) -> (i32, i32) {
    %c0_i32 = arith.constant 0 : i32
    %c0_i32_0 = arith.constant 0 : i32
    return %arg0, %c0_i32 : i32, i32
  }
  func.func @transform_6(%arg0: i32) -> (i32, i32) {
    %c0_i32 = arith.constant 0 : i32
    %c0_i32_0 = arith.constant 0 : i32
    return %arg0, %c0_i32 : i32, i32
  }
  func.func @transform_7(%arg0: i32) -> (i32, i32) {
    %c0_i32 = arith.constant 0 : i32
    %c0_i32_0 = arith.constant 0 : i32
    %c0_i32_1 = arith.constant 0 : i32
    return %c0_i32, %c0_i32_0 : i32, i32
  }
  func.func @transform_8(%arg0: i32) -> (i32, i32) {
    %c0_i32 = arith.constant 0 : i32
    %c0_i32_0 = arith.constant 0 : i32
    return %arg0, %c0_i32 : i32, i32
  }
}

</mosaic_0001>

<llo_original>
// kernel: tpu_custom_call.1
$region0: #{tpu_custom_call.1}
  #allocation0 [shape = 'u32[]', space=smem, size = 0x4, offset = 0x4, fixed_abs, tag = 'smem constant byte address 0x4 - core index']
  #allocation1 [shape = 'u32[144,128]{1,0:T(1,128)}', space=vmem, size = 0x12000, scoped, tag = 'internal scratch']
  %s0 = inlined_call_operand.hbm [shape: f32[4,64], index: 0, kind: input, shape index: {}]
  %s1 = inlined_call_operand.hbm [shape: f32[64,128], index: 1, kind: input, shape index: {}]
  %s2 = inlined_call_operand.hbm [shape: f32[128,128], index: 2, kind: input, shape index: {}]
  %s3 = inlined_call_operand.hbm [shape: f32[128,128], index: 3, kind: input, shape index: {}]
  %s4 = inlined_call_operand.hbm [shape: f32[128,128], index: 4, kind: input, shape index: {}]
  %s5 = inlined_call_operand.hbm [shape: f32[4,128], index: 5, kind: input, shape index: {}]
  %s6 = inlined_call_operand.hbm [shape: f32[4,128], index: 6, kind: input, shape index: {}]
  %s7 = inlined_call_operand.vmem [shape: f32[20,128], index: 7, kind: input, shape index: {}]
  %s8 = inlined_call_operand.hbm [shape: f32[4,128], index: 8, kind: output, shape index: {}]
  %s9 = sld [smem:[#allocation0]]
  $region70: #{tpu_custom_call.1} parent=0
    _
  %s11 = ssub.s32 1, %s9
  %s12 = scalar_select 0, %s11, %s9
  $region1: #{tpu_custom_call.1} parent=0
    #allocation2 [shape = 'u8[2048]{0}', space=vmem, size = 0x800, scoped, tag = 'input window, operand 0, single buffered']
    #allocation3 [shape = 's32[1]{0}', space=sflag, size = 0x4, scoped, tag = 'scoped memory for tpu_custom_call.1']
    #allocation4 [shape = 's32[1]{0}', space=sflag, size = 0x4, scoped, tag = 'scoped memory for tpu_custom_call.1']
    #allocation5 [shape = 'u8[32768]{0}', space=vmem, size = 0x8000, scoped, tag = 'input window, operand 1, single buffered']
    #allocation6 [shape = 's32[1]{0}', space=sflag, size = 0x4, scoped, tag = 'scoped memory for tpu_custom_call.1']
    #allocation7 [shape = 'u8[65536]{0}', space=vmem, size = 0x10000, scoped, tag = 'input window, operand 2, single buffered']
    #allocation8 [shape = 'u8[65536]{0}', space=vmem, size = 0x10000, scoped, tag = 'input window, operand 3, single buffered']
    #allocation9 [shape = 's32[1]{0}', space=sflag, size = 0x4, scoped, tag = 'scoped memory for tpu_custom_call.1']
    #allocation10 [shape = 'u8[65536]{0}', space=vmem, size = 0x10000, scoped, tag = 'input window, operand 4, single buffered']
    #allocation11 [shape = 'u8[2048]{0}', space=vmem, size = 0x800, scoped, tag = 'input window, operand 5, single buffered']
    #allocation12 [shape = 's32[1]{0}', space=sflag, size = 0x4, scoped, tag = 'scoped memory for tpu_custom_call.1']
    #allocation13 [shape = 'u8[2048]{0}', space=vmem, size = 0x800, scoped, tag = 'input window, operand 6, single buffered']
    #allocation14 [shape = 'u8[2048]{0}', space=vmem, size = 0x800, scoped, tag = 'output window, operand 0, single buffered']
    %13 = vsyncpa [#allocation3], 0
    %14 = vsyncpa [#allocation6], 0
    %15 = vsyncpa [#allocation9], 0
    %16 = vsyncpa [#allocation12], 0
    %17 = vsyncpa [#allocation4], 0
    // Predicated region
    $region2: #{tpu_custom_call.1} parent=1 // pred_check
      _
    $region3: #{tpu_custom_call.1} parent=1 // pred_check_branch
      %19 = sbr.rel (0) target = $region5
    $region4: #{tpu_custom_call.1} parent=1 // pred_region
      %s21 = ssub.s32 64, 64
      %22 = vsyncadd [#allocation3], %s21
      %s24 = sshll.u32 [#allocation2], 4
      %s25 = int_to_ptr.vmem [resolvable:$true] %s24
      %27 = dma.hbm_to_vmem [thread:$0]  %s0, 64, %s25, [#allocation3]
    $region5: #{tpu_custom_call.1} parent=1 // pred_fallthru
      _
    // Predicated region
    $region6: #{tpu_custom_call.1} parent=1 // pred_check
      _
    $region7: #{tpu_custom_call.1} parent=1 // pred_check_branch
      %29 = sbr.rel (0) target = $region9
    $region8: #{tpu_custom_call.1} parent=1 // pred_region
      %s31 = ssub.s32 1024, 1024
      %32 = vsyncadd [#allocation6], %s31
      %s33 = sshll.u32 [#allocation5], 4
      %s34 = int_to_ptr.vmem [resolvable:$true] %s33
      %39 = dma.hbm_to_vmem [thread:$0]  %s1, 1024, %s34, [#allocation6], 128, 128, 8
    $region9: #{tpu_custom_call.1} parent=1 // pred_fallthru
      _
    // Predicated region
    $region10: #{tpu_custom_call.1} parent=1 // pred_check
      _
    $region11: #{tpu_custom_call.1} parent=1 // pred_check_branch
      %41 = sbr.rel (0) target = $region13
    $region12: #{tpu_custom_call.1} parent=1 // pred_region
      %s43 = ssub.s32 2048, 2048
      %44 = vsyncadd [#allocation6], %s43
      %s45 = sshll.u32 [#allocation7], 4
      %s46 = int_to_ptr.vmem [resolvable:$true] %s45
      %51 = dma.hbm_to_vmem [thread:$0]  %s2, 2048, %s46, [#allocation6], 128, 128, 8
    $region13: #{tpu_custom_call.1} parent=1 // pred_fallthru
      _
    // Predicated region
    $region14: #{tpu_custom_call.1} parent=1 // pred_check
      _
    $region15: #{tpu_custom_call.1} parent=1 // pred_check_branch
      %53 = sbr.rel (0) target = $region17
    $region16: #{tpu_custom_call.1} parent=1 // pred_region
      %s55 = ssub.s32 2048, 2048
      %56 = vsyncadd [#allocation9], %s55
      %s57 = sshll.u32 [#allocation8], 4
      %s58 = int_to_ptr.vmem [resolvable:$true] %s57
      %63 = dma.hbm_to_vmem [thread:$0]  %s3, 2048, %s58, [#allocation9], 128, 128, 8
    $region17: #{tpu_custom_call.1} parent=1 // pred_fallthru
      _
    // Predicated region
    $region18: #{tpu_custom_call.1} parent=1 // pred_check
      _
    $region19: #{tpu_custom_call.1} parent=1 // pred_check_branch
      %65 = sbr.rel (0) target = $region21
    $region20: #{tpu_custom_call.1} parent=1 // pred_region
      %s67 = ssub.s32 2048, 2048
      %68 = vsyncadd [#allocation9], %s67
      %s69 = sshll.u32 [#allocation10], 4
      %s70 = int_to_ptr.vmem [resolvable:$true] %s69
      %75 = dma.hbm_to_vmem [thread:$0]  %s4, 2048, %s70, [#allocation9], 128, 128, 8
    $region21: #{tpu_custom_call.1} parent=1 // pred_fallthru
      _
    // Predicated region
    $region22: #{tpu_custom_call.1} parent=1 // pred_check
      _
    $region23: #{tpu_custom_call.1} parent=1 // pred_check_branch
      %77 = sbr.rel (0) target = $region25
    $region24: #{tpu_custom_call.1} parent=1 // pred_region
      %s79 = ssub.s32 64, 64
      %80 = vsyncadd [#allocation12], %s79
      %s82 = sshll.u32 [#allocation11], 4
      %s83 = int_to_ptr.vmem [resolvable:$true] %s82
      %85 = dma.hbm_to_vmem [thread:$0]  %s5, 64, %s83, [#allocation12]
    $region25: #{tpu_custom_call.1} parent=1 // pred_fallthru
      _
    // Predicated region
    $region26: #{tpu_custom_call.1} parent=1 // pred_check
      _
    $region27: #{tpu_custom_call.1} parent=1 // pred_check_branch
      %87 = sbr.rel (0) target = $region29
    $region28: #{tpu_custom_call.1} parent=1 // pred_region
      %s89 = ssub.s32 64, 64
      %90 = vsyncadd [#allocation12], %s89
      %s92 = sshll.u32 [#allocation13], 4
      %s93 = int_to_ptr.vmem [resolvable:$true] %s92
      %95 = dma.hbm_to_vmem [thread:$0]  %s6, 64, %s93, [#allocation12]
    $region29: #{tpu_custom_call.1} parent=1 // pred_fallthru
      _
    // Predicated region
    $region30: #{tpu_custom_call.1} parent=1 // pred_check
      _
    $region31: #{tpu_custom_call.1} parent=1 // pred_check_branch
      %97 = sbr.rel (0) target = $region33
    $region32: #{tpu_custom_call.1} parent=1 // pred_region
      _
    $region33: #{tpu_custom_call.1} parent=1 // pred_fallthru
      _
    // Predicated region
    $region34: #{tpu_custom_call.1} parent=1 // pred_check
      _
    $region35: #{tpu_custom_call.1} parent=1 // pred_check_branch
      %99 = sbr.rel (0) target = $region37
    $region36: #{tpu_custom_call.1} parent=1 // pred_region
      %100 = dma.done [#allocation3], 64
    $region37: #{tpu_custom_call.1} parent=1 // pred_fallthru
      _
    // Predicated region
    $region38: #{tpu_custom_call.1} parent=1 // pred_check
      _
    $region39: #{tpu_custom_call.1} parent=1 // pred_check_branch
      %102 = sbr.rel (0) target = $region41
    $region40: #{tpu_custom_call.1} parent=1 // pred_region
      %103 = dma.done [#allocation6], 1024
    $region41: #{tpu_custom_call.1} parent=1 // pred_fallthru
      _
    // Predicated region
    $region42: #{tpu_custom_call.1} parent=1 // pred_check
      _
    $region43: #{tpu_custom_call.1} parent=1 // pred_check_branch
      %105 = sbr.rel (0) target = $region45
    $region44: #{tpu_custom_call.1} parent=1 // pred_region
      %106 = dma.done [#allocation6], 2048
    $region45: #{tpu_custom_call.1} parent=1 // pred_fallthru
      _
    // Predicated region
    $region46: #{tpu_custom_call.1} parent=1 // pred_check
      _
    $region47: #{tpu_custom_call.1} parent=1 // pred_check_branch
      %108 = sbr.rel (0) target = $region49
    $region48: #{tpu_custom_call.1} parent=1 // pred_region
      %109 = dma.done [#allocation9], 2048
    $region49: #{tpu_custom_call.1} parent=1 // pred_fallthru
      _
    // Predicated region
    $region50: #{tpu_custom_call.1} parent=1 // pred_check
      _
    $region51: #{tpu_custom_call.1} parent=1 // pred_check_branch
      %111 = sbr.rel (0) target = $region53
    $region52: #{tpu_custom_call.1} parent=1 // pred_region
      %112 = dma.done [#allocation9], 2048
    $region53: #{tpu_custom_call.1} parent=1 // pred_fallthru
      _
    // Predicated region
    $region54: #{tpu_custom_call.1} parent=1 // pred_check
      _
    $region55: #{tpu_custom_call.1} parent=1 // pred_check_branch
      %114 = sbr.rel (0) target = $region57
    $region56: #{tpu_custom_call.1} parent=1 // pred_region
      %115 = dma.done [#allocation12], 64
    $region57: #{tpu_custom_call.1} parent=1 // pred_fallthru
      _
    // Predicated region
    $region58: #{tpu_custom_call.1} parent=1 // pred_check
      _
    $region59: #{tpu_custom_call.1} parent=1 // pred_check_branch
      %117 = sbr.rel (0) target = $region61
    $region60: #{tpu_custom_call.1} parent=1 // pred_region
      %118 = dma.done [#allocation12], 64
    $region61: #{tpu_custom_call.1} parent=1 // pred_fallthru
      _
    %v119 = vld [vmem:[#allocation2] sm:$0xf]
    %v120 = vld [vmem:[#allocation5] sm:$0xff]
    %v121 = vld [vmem:[#allocation5 + $0x8] sm:$0xff]
    %v122 = vld [vmem:[#allocation5 + $0x10] sm:$0xff]
    %v123 = vld [vmem:[#allocation5 + $0x18] sm:$0xff]
    %v124 = vld [vmem:[#allocation5 + $0x20] sm:$0xff]
    %v125 = vld [vmem:[#allocation5 + $0x28] sm:$0xff]
    %v126 = vld [vmem:[#allocation5 + $0x30] sm:$0xff]
    %v127 = vld [vmem:[#allocation5 + $0x38] sm:$0xff]
    %vm128 = vcmask 523264
    %v130 = vsel %vm128, %v119, 0
    %132 = vmatprep.subr.mxu0 0.0
    %133 = vmatpush1.msra.mxu0 %v120
    %134 = vmatprep.subr.mxu0 0.0
    %135 = vmatpush1.msra.mxu0 %v121
    %136 = vmatprep.subr.mxu0 0.0
    %137 = vmatpush1.msra.mxu0 %v122
    %138 = vmatprep.subr.mxu0 0.0
    %139 = vmatpush1.msra.mxu0 %v123
    %140 = vmatprep.subr.mxu0 0.0
    %141 = vmatpush1.msra.mxu0 %v124
    %142 = vmatprep.subr.mxu0 0.0
    %143 = vmatpush1.msra.mxu0 %v125
    %144 = vmatprep.subr.mxu0 0.0
    %145 = vmatpush1.msra.mxu0 %v126
    %146 = vmatprep.subr.mxu0 0.0
    %147 = vmatpush1.msra.mxu0 %v127
    %148 = vmatprep.subr.mxu0 0.0
    %149 = vmatpush1.msra.mxu0 0.0
    %150 = vmatprep.subr.mxu0 0.0
    %151 = vmatpush1.msra.mxu0 0.0
    %152 = vmatprep.subr.mxu0 0.0
    %153 = vmatpush1.msra.mxu0 0.0
    %154 = vmatprep.subr.mxu0 0.0
    %155 = vmatpush1.msra.mxu0 0.0
    %156 = vmatprep.subr.mxu0 0.0
    %157 = vmatpush1.msra.mxu0 0.0
    %158 = vmatprep.subr.mxu0 0.0
    %159 = vmatpush1.msra.mxu0 0.0
    %160 = vmatprep.subr.mxu0 0.0
    %161 = vmatpush1.msra.mxu0 0.0
    %162 = vmatprep.subr.mxu0 0.0
    %163 = vmatpush1.msra.mxu0 0.0
    %164 = vmatprep.subr.mxu0 0.0
    %165 = vmatpush1.msra.mxu0 0.0
    %166 = vmatprep.subr.mxu0 0.0
    %167 = vmatpush1.msra.mxu0 0.0
    %168 = vmatprep.subr.mxu0 0.0
    %169 = vmatpush1.msra.mxu0 0.0
    %170 = vmatprep.subr.mxu0 0.0
    %171 = vmatpush1.msra.mxu0 0.0
    %172 = vmatprep.subr.mxu0 0.0
    %173 = vmatpush1.msra.mxu0 0.0
    %174 = vmatprep.subr.mxu0 0.0
    %175 = vmatpush1.msra.mxu0 0.0
    %176 = vmatprep.subr.mxu0 0.0
    %177 = vmatpush1.msra.mxu0 0.0
    %178 = vmatprep.subr.mxu0 0.0
    %179 = vmatpush1.msra.mxu0 0.0
    %180 = vmatprep.subr.mxu0 0.0
    %181 = vmatpush1.msra.mxu0 0.0
    %182 = vmatprep.subr.mxu0 0.0
    %183 = vmatpush1.msra.mxu0 0.0
    %184 = vmatprep.subr.mxu0 0.0
    %185 = vmatpush1.msra.mxu0 0.0
    %186 = vmatprep.subr.mxu0 0.0
    %187 = vmatpush1.msra.mxu0 0.0
    %188 = vmatprep.subr.mxu0 0.0
    %189 = vmatpush1.msra.mxu0 0.0
    %190 = vmatprep.subr.mxu0 0.0
    %191 = vmatpush1.msra.mxu0 0.0
    %192 = vmatprep.subr.mxu0 0.0
    %193 = vmatpush1.msra.mxu0 0.0
    %194 = vmatprep.subr.mxu0 0.0
    %195 = vmatpush1.msra.mxu0 0.0
    %196 = vmatprep.mubr.f32.mxu0 0.0
    %197 = vmatmul.mubr.f32.gmra.mrb[0].mxu0 %v130
    %v198 = vpop.f32.mrb[0].mxu0
    %v199 = vadd.f32 0.0, %v198
    %v200 = vpop.f32.mrb[0].mxu0
    %201 = vdwg.mxu0
    %v202 = vld [vmem:[#allocation11] sm:$0xf]
    %v203 = vmul.f32 %v199, %v202
    %v204 = vld [vmem:[#allocation13] sm:$0xf]
    %v205 = vadd.f32 %v203, %v204
    %v206 = vmul.f32 %v205, 0.2
    %v207 = vmax.f32 %v205, %v206
    %v208 = vld [vmem:[#allocation7] sm:$0xff]
    %v209 = vld [vmem:[#allocation7 + $0x8] sm:$0xff]
    %v210 = vld [vmem:[#allocation7 + $0x10] sm:$0xff]
    %v211 = vld [vmem:[#allocation7 + $0x18] sm:$0xff]
    %v212 = vld [vmem:[#allocation7 + $0x20] sm:$0xff]
    %v213 = vld [vmem:[#allocation7 + $0x28] sm:$0xff]
    %v214 = vld [vmem:[#allocation7 + $0x30] sm:$0xff]
    %v215 = vld [vmem:[#allocation7 + $0x38] sm:$0xff]
    %v216 = vld [vmem:[#allocation7 + $0x40] sm:$0xff]
    %v217 = vld [vmem:[#allocation7 + $0x48] sm:$0xff]
    %v218 = vld [vmem:[#allocation7 + $0x50] sm:$0xff]
    %v219 = vld [vmem:[#allocation7 + $0x58] sm:$0xff]
    %v220 = vld [vmem:[#allocation7 + $0x60] sm:$0xff]
    %v221 = vld [vmem:[#allocation7 + $0x68] sm:$0xff]
    %v222 = vld [vmem:[#allocation7 + $0x70] sm:$0xff]
    %v223 = vld [vmem:[#allocation7 + $0x78] sm:$0xff]
    %v224 = vld [vmem:[#allocation8] sm:$0xff]
    %v225 = vld [vmem:[#allocation8 + $0x8] sm:$0xff]
    %v226 = vld [vmem:[#allocation8 + $0x10] sm:$0xff]
    %v227 = vld [vmem:[#allocation8 + $0x18] sm:$0xff]
    %v228 = vld [vmem:[#allocation8 + $0x20] sm:$0xff]
    %v229 = vld [vmem:[#allocation8 + $0x28] sm:$0xff]
    %v230 = vld [vmem:[#allocation8 + $0x30] sm:$0xff]
    %v231 = vld [vmem:[#allocation8 + $0x38] sm:$0xff]
    %v232 = vld [vmem:[#allocation8 + $0x40] sm:$0xff]
    %v233 = vld [vmem:[#allocation8 + $0x48] sm:$0xff]
    %v234 = vld [vmem:[#allocation8 + $0x50] sm:$0xff]
    %v235 = vld [vmem:[#allocation8 + $0x58] sm:$0xff]
    %v236 = vld [vmem:[#allocation8 + $0x60] sm:$0xff]
    %v237 = vld [vmem:[#allocation8 + $0x68] sm:$0xff]
    %v238 = vld [vmem:[#allocation8 + $0x70] sm:$0xff]
    %v239 = vld [vmem:[#allocation8 + $0x78] sm:$0xff]
    %v240 = vld [vmem:[#allocation10] sm:$0xff]
    %v241 = vld [vmem:[#allocation10 + $0x8] sm:$0xff]
    %v242 = vld [vmem:[#allocation10 + $0x10] sm:$0xff]
    %v243 = vld [vmem:[#allocation10 + $0x18] sm:$0xff]
    %v244 = vld [vmem:[#allocation10 + $0x20] sm:$0xff]
    %v245 = vld [vmem:[#allocation10 + $0x28] sm:$0xff]
    %v246 = vld [vmem:[#allocation10 + $0x30] sm:$0xff]
    %v247 = vld [vmem:[#allocation10 + $0x38] sm:$0xff]
    %v248 = vld [vmem:[#allocation10 + $0x40] sm:$0xff]
    %v249 = vld [vmem:[#allocation10 + $0x48] sm:$0xff]
    %v250 = vld [vmem:[#allocation10 + $0x50] sm:$0xff]
    %v251 = vld [vmem:[#allocation10 + $0x58] sm:$0xff]
    %v252 = vld [vmem:[#allocation10 + $0x60] sm:$0xff]
    %v253 = vld [vmem:[#allocation10 + $0x68] sm:$0xff]
    %v254 = vld [vmem:[#allocation10 + $0x70] sm:$0xff]
    %v255 = vld [vmem:[#allocation10 + $0x78] sm:$0xff]
    %v256 = vld [vmem:[%s7] sm:$0xff]
    %v257 = vld [vmem:[%s7 + $0x8] sm:$0xff]
    %v258 = vld [vmem:[%s7 + $0x10] sm:$0xf]
    %v259 = vlaneseq
    %v260 = vshrl.u32 %v259, 7
    %v261 = vsub.s32 0, %v260
    %v262 = vrot.slane %v256, %v261
    %v263 = vlaneseq
    %v264 = vshrl.u32 %v263, 7
    %v265 = vsub.s32 1, %v264
    %v266 = vrot.slane %v256, %v265
    %267 = vmatprep.subr.mxu0 0.0
    %268 = vmatpush1.msra.mxu0 %v208
    %269 = vmatprep.subr.mxu0 0.0
    %270 = vmatpush1.msra.mxu0 %v209
    %271 = vmatprep.subr.mxu0 0.0
    %272 = vmatpush1.msra.mxu0 %v210
    %273 = vmatprep.subr.mxu0 0.0
    %274 = vmatpush1.msra.mxu0 %v211
    %275 = vmatprep.subr.mxu0 0.0
    %276 = vmatpush1.msra.mxu0 %v212
    %277 = vmatprep.subr.mxu0 0.0
    %278 = vmatpush1.msra.mxu0 %v213
    %279 = vmatprep.subr.mxu0 0.0
    %280 = vmatpush1.msra.mxu0 %v214
    %281 = vmatprep.subr.mxu0 0.0
    %282 = vmatpush1.msra.mxu0 %v215
    %283 = vmatprep.subr.mxu0 0.0
    %284 = vmatpush1.msra.mxu0 %v216
    %285 = vmatprep.subr.mxu0 0.0
    %286 = vmatpush1.msra.mxu0 %v217
    %287 = vmatprep.subr.mxu0 0.0
    %288 = vmatpush1.msra.mxu0 %v218
    %289 = vmatprep.subr.mxu0 0.0
    %290 = vmatpush1.msra.mxu0 %v219
    %291 = vmatprep.subr.mxu0 0.0
    %292 = vmatpush1.msra.mxu0 %v220
    %293 = vmatprep.subr.mxu0 0.0
    %294 = vmatpush1.msra.mxu0 %v221
    %295 = vmatprep.subr.mxu0 0.0
    %296 = vmatpush1.msra.mxu0 %v222
    %297 = vmatprep.subr.mxu0 0.0
    %298 = vmatpush1.msra.mxu0 %v223
    %299 = vmatprep.subr.mxu0 0.0
    %300 = vmatpush1.msra.mxu0 0.0
    %301 = vmatprep.subr.mxu0 0.0
    %302 = vmatpush1.msra.mxu0 0.0
    %303 = vmatprep.subr.mxu0 0.0
    %304 = vmatpush1.msra.mxu0 0.0
    %305 = vmatprep.subr.mxu0 0.0
    %306 = vmatpush1.msra.mxu0 0.0
    %307 = vmatprep.subr.mxu0 0.0
    %308 = vmatpush1.msra.mxu0 0.0
    %309 = vmatprep.subr.mxu0 0.0
    %310 = vmatpush1.msra.mxu0 0.0
    %311 = vmatprep.subr.mxu0 0.0
    %312 = vmatpush1.msra.mxu0 0.0
    %313 = vmatprep.subr.mxu0 0.0
    %314 = vmatpush1.msra.mxu0 0.0
    %315 = vmatprep.subr.mxu0 0.0
    %316 = vmatpush1.msra.mxu0 0.0
    %317 = vmatprep.subr.mxu0 0.0
    %318 = vmatpush1.msra.mxu0 0.0
    %319 = vmatprep.subr.mxu0 0.0
    %320 = vmatpush1.msra.mxu0 0.0
    %321 = vmatprep.subr.mxu0 0.0
    %322 = vmatpush1.msra.mxu0 0.0
    %323 = vmatprep.subr.mxu0 0.0
    %324 = vmatpush1.msra.mxu0 0.0
    %325 = vmatprep.subr.mxu0 0.0
    %326 = vmatpush1.msra.mxu0 0.0
    %327 = vmatprep.subr.mxu0 0.0
    %328 = vmatpush1.msra.mxu0 0.0
    %329 = vmatprep.subr.mxu0 0.0
    %330 = vmatpush1.msra.mxu0 0.0
    %331 = vmatprep.mubr.f32.mxu0 0.0
    %332 = vmatmul.mubr.f32.gmra.mrb[0].mxu0 %v207
    %v333 = vpop.f32.mrb[0].mxu0
    %v334 = vadd.f32 %v262, %v333
    %v335 = vpop.f32.mrb[0].mxu0
    %336 = vdwg.mxu0
    %v337 = vxor.u32 %v334, 2147483648
    %v338 = vmul.f32 %v337, 1.442695
    %v339 = vpow.pop %v338
    %v340 = vadd.f32 %v339, 1.0
    %v341 = vrcp.pop %v340
    %v342 = vmul.f32 1.0, %v341
    %v343 = vmul.f32 %v334, %v342
    %344 = vmatprep.subr.mxu0 0.0
    %345 = vmatpush1.msra.mxu0 %v224
    %346 = vmatprep.subr.mxu0 0.0
    %347 = vmatpush1.msra.mxu0 %v225
    %348 = vmatprep.subr.mxu0 0.0
    %349 = vmatpush1.msra.mxu0 %v226
    %350 = vmatprep.subr.mxu0 0.0
    %351 = vmatpush1.msra.mxu0 %v227
    %352 = vmatprep.subr.mxu0 0.0
    %353 = vmatpush1.msra.mxu0 %v228
    %354 = vmatprep.subr.mxu0 0.0
    %355 = vmatpush1.msra.mxu0 %v229
    %356 = vmatprep.subr.mxu0 0.0
    %357 = vmatpush1.msra.mxu0 %v230
    %358 = vmatprep.subr.mxu0 0.0
    %359 = vmatpush1.msra.mxu0 %v231
    %360 = vmatprep.subr.mxu0 0.0
    %361 = vmatpush1.msra.mxu0 %v232
    %362 = vmatprep.subr.mxu0 0.0
    %363 = vmatpush1.msra.mxu0 %v233
    %364 = vmatprep.subr.mxu0 0.0
    %365 = vmatpush1.msra.mxu0 %v234
    %366 = vmatprep.subr.mxu0 0.0
    %367 = vmatpush1.msra.mxu0 %v235
    %368 = vmatprep.subr.mxu0 0.0
    %369 = vmatpush1.msra.mxu0 %v236
    %370 = vmatprep.subr.mxu0 0.0
    %371 = vmatpush1.msra.mxu0 %v237
    %372 = vmatprep.subr.mxu0 0.0
    %373 = vmatpush1.msra.mxu0 %v238
    %374 = vmatprep.subr.mxu0 0.0
    %375 = vmatpush1.msra.mxu0 %v239
    %376 = vmatprep.subr.mxu0 0.0
    %377 = vmatpush1.msra.mxu0 0.0
    %378 = vmatprep.subr.mxu0 0.0
    %379 = vmatpush1.msra.mxu0 0.0
    %380 = vmatprep.subr.mxu0 0.0
    %381 = vmatpush1.msra.mxu0 0.0
    %382 = vmatprep.subr.mxu0 0.0
    %383 = vmatpush1.msra.mxu0 0.0
    %384 = vmatprep.subr.mxu0 0.0
    %385 = vmatpush1.msra.mxu0 0.0
    %386 = vmatprep.subr.mxu0 0.0
    %387 = vmatpush1.msra.mxu0 0.0
    %388 = vmatprep.subr.mxu0 0.0
    %389 = vmatpush1.msra.mxu0 0.0
    %390 = vmatprep.subr.mxu0 0.0
    %391 = vmatpush1.msra.mxu0 0.0
    %392 = vmatprep.subr.mxu0 0.0
    %393 = vmatpush1.msra.mxu0 0.0
    %394 = vmatprep.subr.mxu0 0.0
    %395 = vmatpush1.msra.mxu0 0.0
    %396 = vmatprep.subr.mxu0 0.0
    %397 = vmatpush1.msra.mxu0 0.0
    %398 = vmatprep.subr.mxu0 0.0
    %399 = vmatpush1.msra.mxu0 0.0
    %400 = vmatprep.subr.mxu0 0.0
    %401 = vmatpush1.msra.mxu0 0.0
    %402 = vmatprep.subr.mxu0 0.0
    %403 = vmatpush1.msra.mxu0 0.0
    %404 = vmatprep.subr.mxu0 0.0
    %405 = vmatpush1.msra.mxu0 0.0
    %406 = vmatprep.subr.mxu0 0.0
    %407 = vmatpush1.msra.mxu0 0.0
    %408 = vmatprep.mubr.f32.mxu0 0.0
    %409 = vmatmul.mubr.f32.gmra.mrb[0].mxu0 %v343
    %v410 = vpop.f32.mrb[0].mxu0
    %v411 = vadd.f32 %v266, %v410
    %v412 = vpop.f32.mrb[0].mxu0
    %413 = vdwg.mxu0
    %414 = vmatprep.subr.mxu0 0.0
    %415 = vmatpush1.msra.mxu0 %v240
    %416 = vmatprep.subr.mxu0 0.0
    %417 = vmatpush1.msra.mxu0 %v241
    %418 = vmatprep.subr.mxu0 0.0
    %419 = vmatpush1.msra.mxu0 %v242
    %420 = vmatprep.subr.mxu0 0.0
    %421 = vmatpush1.msra.mxu0 %v243
    %422 = vmatprep.subr.mxu0 0.0
    %423 = vmatpush1.msra.mxu0 %v244
    %424 = vmatprep.subr.mxu0 0.0
    %425 = vmatpush1.msra.mxu0 %v245
    %426 = vmatprep.subr.mxu0 0.0
    %427 = vmatpush1.msra.mxu0 %v246
    %428 = vmatprep.subr.mxu0 0.0
    %429 = vmatpush1.msra.mxu0 %v247
    %430 = vmatprep.subr.mxu0 0.0
    %431 = vmatpush1.msra.mxu0 %v248
    %432 = vmatprep.subr.mxu0 0.0
    %433 = vmatpush1.msra.mxu0 %v249
    %434 = vmatprep.subr.mxu0 0.0
    %435 = vmatpush1.msra.mxu0 %v250
    %436 = vmatprep.subr.mxu0 0.0
    %437 = vmatpush1.msra.mxu0 %v251
    %438 = vmatprep.subr.mxu0 0.0
    %439 = vmatpush1.msra.mxu0 %v252
    %440 = vmatprep.subr.mxu0 0.0
    %441 = vmatpush1.msra.mxu0 %v253
    %442 = vmatprep.subr.mxu0 0.0
    %443 = vmatpush1.msra.mxu0 %v254
    %444 = vmatprep.subr.mxu0 0.0
    %445 = vmatpush1.msra.mxu0 %v255
    %446 = vmatprep.subr.mxu0 0.0
    %447 = vmatpush1.msra.mxu0 0.0
    %448 = vmatprep.subr.mxu0 0.0
    %449 = vmatpush1.msra.mxu0 0.0
    %450 = vmatprep.subr.mxu0 0.0
    %451 = vmatpush1.msra.mxu0 0.0
    %452 = vmatprep.subr.mxu0 0.0
    %453 = vmatpush1.msra.mxu0 0.0
    %454 = vmatprep.subr.mxu0 0.0
    %455 = vmatpush1.msra.mxu0 0.0
    %456 = vmatprep.subr.mxu0 0.0
    %457 = vmatpush1.msra.mxu0 0.0
    %458 = vmatprep.subr.mxu0 0.0
    %459 = vmatpush1.msra.mxu0 0.0
    %460 = vmatprep.subr.mxu0 0.0
    %461 = vmatpush1.msra.mxu0 0.0
    %462 = vmatprep.subr.mxu0 0.0
    %463 = vmatpush1.msra.mxu0 0.0
    %464 = vmatprep.subr.mxu0 0.0
    %465 = vmatpush1.msra.mxu0 0.0
    %466 = vmatprep.subr.mxu0 0.0
    %467 = vmatpush1.msra.mxu0 0.0
    %468 = vmatprep.subr.mxu0 0.0
    %469 = vmatpush1.msra.mxu0 0.0
    %470 = vmatprep.subr.mxu0 0.0
    %471 = vmatpush1.msra.mxu0 0.0
    %472 = vmatprep.subr.mxu0 0.0
    %473 = vmatpush1.msra.mxu0 0.0
    %474 = vmatprep.subr.mxu0 0.0
    %475 = vmatpush1.msra.mxu0 0.0
    %476 = vmatprep.subr.mxu0 0.0
    %477 = vmatpush1.msra.mxu0 0.0
    %478 = vmatprep.mubr.f32.mxu0 0.0
    %479 = vmatmul.mubr.f32.gmra.mrb[0].mxu0 %v411
    %v480 = vpop.f32.mrb[0].mxu0
    %v481 = vadd.f32 0.0, %v480
    %v482 = vpop.f32.mrb[0].mxu0
    %483 = vdwg.mxu0
    %v484 = vmul.f32 %v411, %v411
    %485 = vmatprep.subr.mxu0 0.0
    %486 = vmatpush1.msra.mxu0 %v240
    %487 = vmatprep.subr.mxu0 0.0
    %488 = vmatpush1.msra.mxu0 %v241
    %489 = vmatprep.subr.mxu0 0.0
    %490 = vmatpush1.msra.mxu0 %v242
    %491 = vmatprep.subr.mxu0 0.0
    %492 = vmatpush1.msra.mxu0 %v243
    %493 = vmatprep.subr.mxu0 0.0
    %494 = vmatpush1.msra.mxu0 %v244
    %495 = vmatprep.subr.mxu0 0.0
    %496 = vmatpush1.msra.mxu0 %v245
    %497 = vmatprep.subr.mxu0 0.0
    %498 = vmatpush1.msra.mxu0 %v246
    %499 = vmatprep.subr.mxu0 0.0
    %500 = vmatpush1.msra.mxu0 %v247
    %501 = vmatprep.subr.mxu0 0.0
    %502 = vmatpush1.msra.mxu0 %v248
    %503 = vmatprep.subr.mxu0 0.0
    %504 = vmatpush1.msra.mxu0 %v249
    %505 = vmatprep.subr.mxu0 0.0
    %506 = vmatpush1.msra.mxu0 %v250
    %507 = vmatprep.subr.mxu0 0.0
    %508 = vmatpush1.msra.mxu0 %v251
    %509 = vmatprep.subr.mxu0 0.0
    %510 = vmatpush1.msra.mxu0 %v252
    %511 = vmatprep.subr.mxu0 0.0
    %512 = vmatpush1.msra.mxu0 %v253
    %513 = vmatprep.subr.mxu0 0.0
    %514 = vmatpush1.msra.mxu0 %v254
    %515 = vmatprep.subr.mxu0 0.0
    %516 = vmatpush1.msra.mxu0 %v255
    %517 = vmatprep.subr.mxu0 0.0
    %518 = vmatpush1.msra.mxu0 0.0
    %519 = vmatprep.subr.mxu0 0.0
    %520 = vmatpush1.msra.mxu0 0.0
    %521 = vmatprep.subr.mxu0 0.0
    %522 = vmatpush1.msra.mxu0 0.0
    %523 = vmatprep.subr.mxu0 0.0
    %524 = vmatpush1.msra.mxu0 0.0
    %525 = vmatprep.subr.mxu0 0.0
    %526 = vmatpush1.msra.mxu0 0.0
    %527 = vmatprep.subr.mxu0 0.0
    %528 = vmatpush1.msra.mxu0 0.0
    %529 = vmatprep.subr.mxu0 0.0
    %530 = vmatpush1.msra.mxu0 0.0
    %531 = vmatprep.subr.mxu0 0.0
    %532 = vmatpush1.msra.mxu0 0.0
    %533 = vmatprep.subr.mxu0 0.0
    %534 = vmatpush1.msra.mxu0 0.0
    %535 = vmatprep.subr.mxu0 0.0
    %536 = vmatpush1.msra.mxu0 0.0
    %537 = vmatprep.subr.mxu0 0.0
    %538 = vmatpush1.msra.mxu0 0.0
    %539 = vmatprep.subr.mxu0 0.0
    %540 = vmatpush1.msra.mxu0 0.0
    %541 = vmatprep.subr.mxu0 0.0
    %542 = vmatpush1.msra.mxu0 0.0
    %543 = vmatprep.subr.mxu0 0.0
    %544 = vmatpush1.msra.mxu0 0.0
    %545 = vmatprep.subr.mxu0 0.0
    %546 = vmatpush1.msra.mxu0 0.0
    %547 = vmatprep.subr.mxu0 0.0
    %548 = vmatpush1.msra.mxu0 0.0
    %549 = vmatprep.mubr.f32.mxu0 0.0
    %550 = vmatmul.mubr.f32.gmra.mrb[0].mxu0 %v484
    %v551 = vpop.f32.mrb[0].mxu0
    %v552 = vadd.f32 0.0, %v551
    %v553 = vpop.f32.mrb[0].mxu0
    %554 = vdwg.mxu0
    %v555 = vmul.f32 %v481, %v481
    %v556 = vsub.f32 %v552, %v555
    %v557 = vadd.f32 %v556, 1e-05
    %v558 = vrsqrt.pop %v557
    %v559 = vsub.f32 %v411, %v481
    %v560 = vmul.f32 %v559, %v558
    %v561 = vmul.f32 %v207, 1.1111112
    %v562 = vlaneseq
    %v563 = vshrl.u32 %v562, 7
    %v564 = vsub.s32 2, %v563
    %v565 = vrot.slane %v256, %v564
    %v566 = vmul.f32 %v560, %v565
    %v567 = vadd.f32 %v561, %v566
    %v568 = vlaneseq
    %v569 = vshrl.u32 %v568, 7
    %v570 = vsub.s32 3, %v569
    %v571 = vrot.slane %v257, %v570
    %v572 = vadd.f32 %v567, %v571
    %573 = vmatprep.subr.mxu0 0.0
    %574 = vmatpush1.msra.mxu0 %v208
    %575 = vmatprep.subr.mxu0 0.0
    %576 = vmatpush1.msra.mxu0 %v209
    %577 = vmatprep.subr.mxu0 0.0
    %578 = vmatpush1.msra.mxu0 %v210
    %579 = vmatprep.subr.mxu0 0.0
    %580 = vmatpush1.msra.mxu0 %v211
    %581 = vmatprep.subr.mxu0 0.0
    %582 = vmatpush1.msra.mxu0 %v212
    %583 = vmatprep.subr.mxu0 0.0
    %584 = vmatpush1.msra.mxu0 %v213
    %585 = vmatprep.subr.mxu0 0.0
    %586 = vmatpush1.msra.mxu0 %v214
    %587 = vmatprep.subr.mxu0 0.0
    %588 = vmatpush1.msra.mxu0 %v215
    %589 = vmatprep.subr.mxu0 0.0
    %590 = vmatpush1.msra.mxu0 %v216
    %591 = vmatprep.subr.mxu0 0.0
    %592 = vmatpush1.msra.mxu0 %v217
    %593 = vmatprep.subr.mxu0 0.0
    %594 = vmatpush1.msra.mxu0 %v218
    %595 = vmatprep.subr.mxu0 0.0
    %596 = vmatpush1.msra.mxu0 %v219
    %597 = vmatprep.subr.mxu0 0.0
    %598 = vmatpush1.msra.mxu0 %v220
    %599 = vmatprep.subr.mxu0 0.0
    %600 = vmatpush1.msra.mxu0 %v221
    %601 = vmatprep.subr.mxu0 0.0
    %602 = vmatpush1.msra.mxu0 %v222
    %603 = vmatprep.subr.mxu0 0.0
    %604 = vmatpush1.msra.mxu0 %v223
    %605 = vmatprep.subr.mxu0 0.0
    %606 = vmatpush1.msra.mxu0 0.0
    %607 = vmatprep.subr.mxu0 0.0
    %608 = vmatpush1.msra.mxu0 0.0
    %609 = vmatprep.subr.mxu0 0.0
    %610 = vmatpush1.msra.mxu0 0.0
    %611 = vmatprep.subr.mxu0 0.0
    %612 = vmatpush1.msra.mxu0 0.0
    %613 = vmatprep.subr.mxu0 0.0
    %614 = vmatpush1.msra.mxu0 0.0
    %615 = vmatprep.subr.mxu0 0.0
    %616 = vmatpush1.msra.mxu0 0.0
    %617 = vmatprep.subr.mxu0 0.0
    %618 = vmatpush1.msra.mxu0 0.0
    %619 = vmatprep.subr.mxu0 0.0
    %620 = vmatpush1.msra.mxu0 0.0
    %621 = vmatprep.subr.mxu0 0.0
    %622 = vmatpush1.msra.mxu0 0.0
    %623 = vmatprep.subr.mxu0 0.0
    %624 = vmatpush1.msra.mxu0 0.0
    %625 = vmatprep.subr.mxu0 0.0
    %626 = vmatpush1.msra.mxu0 0.0
    %627 = vmatprep.subr.mxu0 0.0
    %628 = vmatpush1.msra.mxu0 0.0
    %629 = vmatprep.subr.mxu0 0.0
    %630 = vmatpush1.msra.mxu0 0.0
    %631 = vmatprep.subr.mxu0 0.0
    %632 = vmatpush1.msra.mxu0 0.0
    %633 = vmatprep.subr.mxu0 0.0
    %634 = vmatpush1.msra.mxu0 0.0
    %635 = vmatprep.subr.mxu0 0.0
    %636 = vmatpush1.msra.mxu0 0.0
    %637 = vmatprep.mubr.f32.mxu0 0.0
    %638 = vmatmul.mubr.f32.gmra.mrb[0].mxu0 %v572
    %v639 = vpop.f32.mrb[0].mxu0
    %v640 = vadd.f32 %v262, %v639
    %v641 = vpop.f32.mrb[0].mxu0
    %642 = vdwg.mxu0
    %v643 = vxor.u32 %v640, 2147483648
    %v644 = vmul.f32 %v643, 1.442695
    %v645 = vpow.pop %v644
    %v646 = vadd.f32 %v645, 1.0
    %v647 = vrcp.pop %v646
    %v648 = vmul.f32 1.0, %v647
    %v649 = vmul.f32 %v640, %v648
    %650 = vmatprep.subr.mxu0 0.0
    %651 = vmatpush1.msra.mxu0 %v224
    %652 = vmatprep.subr.mxu0 0.0
    %653 = vmatpush1.msra.mxu0 %v225
    %654 = vmatprep.subr.mxu0 0.0
    %655 = vmatpush1.msra.mxu0 %v226
    %656 = vmatprep.subr.mxu0 0.0
    %657 = vmatpush1.msra.mxu0 %v227
    %658 = vmatprep.subr.mxu0 0.0
    %659 = vmatpush1.msra.mxu0 %v228
    %660 = vmatprep.subr.mxu0 0.0
    %661 = vmatpush1.msra.mxu0 %v229
    %662 = vmatprep.subr.mxu0 0.0
    %663 = vmatpush1.msra.mxu0 %v230
    %664 = vmatprep.subr.mxu0 0.0
    %665 = vmatpush1.msra.mxu0 %v231
    %666 = vmatprep.subr.mxu0 0.0
    %667 = vmatpush1.msra.mxu0 %v232
    %668 = vmatprep.subr.mxu0 0.0
    %669 = vmatpush1.msra.mxu0 %v233
    %670 = vmatprep.subr.mxu0 0.0
    %671 = vmatpush1.msra.mxu0 %v234
    %672 = vmatprep.subr.mxu0 0.0
    %673 = vmatpush1.msra.mxu0 %v235
    %674 = vmatprep.subr.mxu0 0.0
    %675 = vmatpush1.msra.mxu0 %v236
    %676 = vmatprep.subr.mxu0 0.0
    %677 = vmatpush1.msra.mxu0 %v237
    %678 = vmatprep.subr.mxu0 0.0
    %679 = vmatpush1.msra.mxu0 %v238
    %680 = vmatprep.subr.mxu0 0.0
    %681 = vmatpush1.msra.mxu0 %v239
    %682 = vmatprep.subr.mxu0 0.0
    %683 = vmatpush1.msra.mxu0 0.0
    %684 = vmatprep.subr.mxu0 0.0
    %685 = vmatpush1.msra.mxu0 0.0
    %686 = vmatprep.subr.mxu0 0.0
    %687 = vmatpush1.msra.mxu0 0.0
    %688 = vmatprep.subr.mxu0 0.0
    %689 = vmatpush1.msra.mxu0 0.0
    %690 = vmatprep.subr.mxu0 0.0
    %691 = vmatpush1.msra.mxu0 0.0
    %692 = vmatprep.subr.mxu0 0.0
    %693 = vmatpush1.msra.mxu0 0.0
    %694 = vmatprep.subr.mxu0 0.0
    %695 = vmatpush1.msra.mxu0 0.0
    %696 = vmatprep.subr.mxu0 0.0
    %697 = vmatpush1.msra.mxu0 0.0
    %698 = vmatprep.subr.mxu0 0.0
    %699 = vmatpush1.msra.mxu0 0.0
    %700 = vmatprep.subr.mxu0 0.0
    %701 = vmatpush1.msra.mxu0 0.0
    %702 = vmatprep.subr.mxu0 0.0
    %703 = vmatpush1.msra.mxu0 0.0
    %704 = vmatprep.subr.mxu0 0.0
    %705 = vmatpush1.msra.mxu0 0.0
    %706 = vmatprep.subr.mxu0 0.0
    %707 = vmatpush1.msra.mxu0 0.0
    %708 = vmatprep.subr.mxu0 0.0
    %709 = vmatpush1.msra.mxu0 0.0
    %710 = vmatprep.subr.mxu0 0.0
    %711 = vmatpush1.msra.mxu0 0.0
    %712 = vmatprep.subr.mxu0 0.0
    %713 = vmatpush1.msra.mxu0 0.0
    %714 = vmatprep.mubr.f32.mxu0 0.0
    %715 = vmatmul.mubr.f32.gmra.mrb[0].mxu0 %v649
    %v716 = vpop.f32.mrb[0].mxu0
    %v717 = vadd.f32 %v266, %v716
    %v718 = vpop.f32.mrb[0].mxu0
    %719 = vdwg.mxu0
    %720 = vmatprep.subr.mxu0 0.0
    %721 = vmatpush1.msra.mxu0 %v240
    %722 = vmatprep.subr.mxu0 0.0
    %723 = vmatpush1.msra.mxu0 %v241
    %724 = vmatprep.subr.mxu0 0.0
    %725 = vmatpush1.msra.mxu0 %v242
    %726 = vmatprep.subr.mxu0 0.0
    %727 = vmatpush1.msra.mxu0 %v243
    %728 = vmatprep.subr.mxu0 0.0
    %729 = vmatpush1.msra.mxu0 %v244
    %730 = vmatprep.subr.mxu0 0.0
    %731 = vmatpush1.msra.mxu0 %v245
    %732 = vmatprep.subr.mxu0 0.0
    %733 = vmatpush1.msra.mxu0 %v246
    %734 = vmatprep.subr.mxu0 0.0
    %735 = vmatpush1.msra.mxu0 %v247
    %736 = vmatprep.subr.mxu0 0.0
    %737 = vmatpush1.msra.mxu0 %v248
    %738 = vmatprep.subr.mxu0 0.0
    %739 = vmatpush1.msra.mxu0 %v249
    %740 = vmatprep.subr.mxu0 0.0
    %741 = vmatpush1.msra.mxu0 %v250
    %742 = vmatprep.subr.mxu0 0.0
    %743 = vmatpush1.msra.mxu0 %v251
    %744 = vmatprep.subr.mxu0 0.0
    %745 = vmatpush1.msra.mxu0 %v252
    %746 = vmatprep.subr.mxu0 0.0
    %747 = vmatpush1.msra.mxu0 %v253
    %748 = vmatprep.subr.mxu0 0.0
    %749 = vmatpush1.msra.mxu0 %v254
    %750 = vmatprep.subr.mxu0 0.0
    %751 = vmatpush1.msra.mxu0 %v255
    %752 = vmatprep.subr.mxu0 0.0
    %753 = vmatpush1.msra.mxu0 0.0
    %754 = vmatprep.subr.mxu0 0.0
    %755 = vmatpush1.msra.mxu0 0.0
    %756 = vmatprep.subr.mxu0 0.0
    %757 = vmatpush1.msra.mxu0 0.0
    %758 = vmatprep.subr.mxu0 0.0
    %759 = vmatpush1.msra.mxu0 0.0
    %760 = vmatprep.subr.mxu0 0.0
    %761 = vmatpush1.msra.mxu0 0.0
    %762 = vmatprep.subr.mxu0 0.0
    %763 = vmatpush1.msra.mxu0 0.0
    %764 = vmatprep.subr.mxu0 0.0
    %765 = vmatpush1.msra.mxu0 0.0
    %766 = vmatprep.subr.mxu0 0.0
    %767 = vmatpush1.msra.mxu0 0.0
    %768 = vmatprep.subr.mxu0 0.0
    %769 = vmatpush1.msra.mxu0 0.0
    %770 = vmatprep.subr.mxu0 0.0
    %771 = vmatpush1.msra.mxu0 0.0
    %772 = vmatprep.subr.mxu0 0.0
    %773 = vmatpush1.msra.mxu0 0.0
    %774 = vmatprep.subr.mxu0 0.0
    %775 = vmatpush1.msra.mxu0 0.0
    %776 = vmatprep.subr.mxu0 0.0
    %777 = vmatpush1.msra.mxu0 0.0
    %778 = vmatprep.subr.mxu0 0.0
    %779 = vmatpush1.msra.mxu0 0.0
    %780 = vmatprep.subr.mxu0 0.0
    %781 = vmatpush1.msra.mxu0 0.0
    %782 = vmatprep.subr.mxu0 0.0
    %783 = vmatpush1.msra.mxu0 0.0
    %784 = vmatprep.mubr.f32.mxu0 0.0
    %785 = vmatmul.mubr.f32.gmra.mrb[0].mxu0 %v717
    %v786 = vpop.f32.mrb[0].mxu0
    %v787 = vadd.f32 0.0, %v786
    %v788 = vpop.f32.mrb[0].mxu0
    %789 = vdwg.mxu0
    %v790 = vmul.f32 %v717, %v717
    %791 = vmatprep.subr.mxu0 0.0
    %792 = vmatpush1.msra.mxu0 %v240
    %793 = vmatprep.subr.mxu0 0.0
    %794 = vmatpush1.msra.mxu0 %v241
    %795 = vmatprep.subr.mxu0 0.0
    %796 = vmatpush1.msra.mxu0 %v242
    %797 = vmatprep.subr.mxu0 0.0
    %798 = vmatpush1.msra.mxu0 %v243
    %799 = vmatprep.subr.mxu0 0.0
    %800 = vmatpush1.msra.mxu0 %v244
    %801 = vmatprep.subr.mxu0 0.0
    %802 = vmatpush1.msra.mxu0 %v245
    %803 = vmatprep.subr.mxu0 0.0
    %804 = vmatpush1.msra.mxu0 %v246
    %805 = vmatprep.subr.mxu0 0.0
    %806 = vmatpush1.msra.mxu0 %v247
    %807 = vmatprep.subr.mxu0 0.0
    %808 = vmatpush1.msra.mxu0 %v248
    %809 = vmatprep.subr.mxu0 0.0
    %810 = vmatpush1.msra.mxu0 %v249
    %811 = vmatprep.subr.mxu0 0.0
    %812 = vmatpush1.msra.mxu0 %v250
    %813 = vmatprep.subr.mxu0 0.0
    %814 = vmatpush1.msra.mxu0 %v251
    %815 = vmatprep.subr.mxu0 0.0
    %816 = vmatpush1.msra.mxu0 %v252
    %817 = vmatprep.subr.mxu0 0.0
    %818 = vmatpush1.msra.mxu0 %v253
    %819 = vmatprep.subr.mxu0 0.0
    %820 = vmatpush1.msra.mxu0 %v254
    %821 = vmatprep.subr.mxu0 0.0
    %822 = vmatpush1.msra.mxu0 %v255
    %823 = vmatprep.subr.mxu0 0.0
    %824 = vmatpush1.msra.mxu0 0.0
    %825 = vmatprep.subr.mxu0 0.0
    %826 = vmatpush1.msra.mxu0 0.0
    %827 = vmatprep.subr.mxu0 0.0
    %828 = vmatpush1.msra.mxu0 0.0
    %829 = vmatprep.subr.mxu0 0.0
    %830 = vmatpush1.msra.mxu0 0.0
    %831 = vmatprep.subr.mxu0 0.0
    %832 = vmatpush1.msra.mxu0 0.0
    %833 = vmatprep.subr.mxu0 0.0
    %834 = vmatpush1.msra.mxu0 0.0
    %835 = vmatprep.subr.mxu0 0.0
    %836 = vmatpush1.msra.mxu0 0.0
    %837 = vmatprep.subr.mxu0 0.0
    %838 = vmatpush1.msra.mxu0 0.0
    %839 = vmatprep.subr.mxu0 0.0
    %840 = vmatpush1.msra.mxu0 0.0
    %841 = vmatprep.subr.mxu0 0.0
    %842 = vmatpush1.msra.mxu0 0.0
    %843 = vmatprep.subr.mxu0 0.0
    %844 = vmatpush1.msra.mxu0 0.0
    %845 = vmatprep.subr.mxu0 0.0
    %846 = vmatpush1.msra.mxu0 0.0
    %847 = vmatprep.subr.mxu0 0.0
    %848 = vmatpush1.msra.mxu0 0.0
    %849 = vmatprep.subr.mxu0 0.0
    %850 = vmatpush1.msra.mxu0 0.0
    %851 = vmatprep.subr.mxu0 0.0
    %852 = vmatpush1.msra.mxu0 0.0
    %853 = vmatprep.subr.mxu0 0.0
    %854 = vmatpush1.msra.mxu0 0.0
    %855 = vmatprep.mubr.f32.mxu0 0.0
    %856 = vmatmul.mubr.f32.gmra.mrb[0].mxu0 %v790
    %v857 = vpop.f32.mrb[0].mxu0
    %v858 = vadd.f32 0.0, %v857
    %v859 = vpop.f32.mrb[0].mxu0
    %860 = vdwg.mxu0
    %v861 = vmul.f32 %v787, %v787
    %v862 = vsub.f32 %v858, %v861
    %v863 = vadd.f32 %v862, 1e-05
    %v864 = vrsqrt.pop %v863
    %v865 = vsub.f32 %v717, %v787
    %v866 = vmul.f32 %v865, %v864
    %v867 = vmul.f32 %v572, 1.1111112
    %v868 = vlaneseq
    %v869 = vshrl.u32 %v868, 7
    %v870 = vsub.s32 3, %v869
    %v871 = vrot.slane %v256, %v870
    %v872 = vmul.f32 %v866, %v871
    %v873 = vadd.f32 %v867, %v872
    %v874 = vlaneseq
    %v875 = vshrl.u32 %v874, 7
    %v876 = vsub.s32 4, %v875
    %v877 = vrot.slane %v257, %v876
    %v878 = vadd.f32 %v873, %v877
    %879 = vmatprep.subr.mxu0 0.0
    %880 = vmatpush1.msra.mxu0 %v208
    %881 = vmatprep.subr.mxu0 0.0
    %882 = vmatpush1.msra.mxu0 %v209
    %883 = vmatprep.subr.mxu0 0.0
    %884 = vmatpush1.msra.mxu0 %v210
    %885 = vmatprep.subr.mxu0 0.0
    %886 = vmatpush1.msra.mxu0 %v211
    %887 = vmatprep.subr.mxu0 0.0
    %888 = vmatpush1.msra.mxu0 %v212
    %889 = vmatprep.subr.mxu0 0.0
    %890 = vmatpush1.msra.mxu0 %v213
    %891 = vmatprep.subr.mxu0 0.0
    %892 = vmatpush1.msra.mxu0 %v214
    %893 = vmatprep.subr.mxu0 0.0
    %894 = vmatpush1.msra.mxu0 %v215
    %895 = vmatprep.subr.mxu0 0.0
    %896 = vmatpush1.msra.mxu0 %v216
    %897 = vmatprep.subr.mxu0 0.0
    %898 = vmatpush1.msra.mxu0 %v217
    %899 = vmatprep.subr.mxu0 0.0
    %900 = vmatpush1.msra.mxu0 %v218
    %901 = vmatprep.subr.mxu0 0.0
    %902 = vmatpush1.msra.mxu0 %v219
    %903 = vmatprep.subr.mxu0 0.0
    %904 = vmatpush1.msra.mxu0 %v220
    %905 = vmatprep.subr.mxu0 0.0
    %906 = vmatpush1.msra.mxu0 %v221
    %907 = vmatprep.subr.mxu0 0.0
    %908 = vmatpush1.msra.mxu0 %v222
    %909 = vmatprep.subr.mxu0 0.0
    %910 = vmatpush1.msra.mxu0 %v223
    %911 = vmatprep.subr.mxu0 0.0
    %912 = vmatpush1.msra.mxu0 0.0
    %913 = vmatprep.subr.mxu0 0.0
    %914 = vmatpush1.msra.mxu0 0.0
    %915 = vmatprep.subr.mxu0 0.0
    %916 = vmatpush1.msra.mxu0 0.0
    %917 = vmatprep.subr.mxu0 0.0
    %918 = vmatpush1.msra.mxu0 0.0
    %919 = vmatprep.subr.mxu0 0.0
    %920 = vmatpush1.msra.mxu0 0.0
    %921 = vmatprep.subr.mxu0 0.0
    %922 = vmatpush1.msra.mxu0 0.0
    %923 = vmatprep.subr.mxu0 0.0
    %924 = vmatpush1.msra.mxu0 0.0
    %925 = vmatprep.subr.mxu0 0.0
    %926 = vmatpush1.msra.mxu0 0.0
    %927 = vmatprep.subr.mxu0 0.0
    %928 = vmatpush1.msra.mxu0 0.0
    %929 = vmatprep.subr.mxu0 0.0
    %930 = vmatpush1.msra.mxu0 0.0
    %931 = vmatprep.subr.mxu0 0.0
    %932 = vmatpush1.msra.mxu0 0.0
    %933 = vmatprep.subr.mxu0 0.0
    %934 = vmatpush1.msra.mxu0 0.0
    %935 = vmatprep.subr.mxu0 0.0
    %936 = vmatpush1.msra.mxu0 0.0
    %937 = vmatprep.subr.mxu0 0.0
    %938 = vmatpush1.msra.mxu0 0.0
    %939 = vmatprep.subr.mxu0 0.0
    %940 = vmatpush1.msra.mxu0 0.0
    %941 = vmatprep.subr.mxu0 0.0
    %942 = vmatpush1.msra.mxu0 0.0
    %943 = vmatprep.mubr.f32.mxu0 0.0
    %944 = vmatmul.mubr.f32.gmra.mrb[0].mxu0 %v878
    %v945 = vpop.f32.mrb[0].mxu0
    %v946 = vadd.f32 %v262, %v945
    %v947 = vpop.f32.mrb[0].mxu0
    %948 = vdwg.mxu0
    %v949 = vxor.u32 %v946, 2147483648
    %v950 = vmul.f32 %v949, 1.442695
    %v951 = vpow.pop %v950
    %v952 = vadd.f32 %v951, 1.0
    %v953 = vrcp.pop %v952
    %v954 = vmul.f32 1.0, %v953
    %v955 = vmul.f32 %v946, %v954
    %956 = vmatprep.subr.mxu0 0.0
    %957 = vmatpush1.msra.mxu0 %v224
    %958 = vmatprep.subr.mxu0 0.0
    %959 = vmatpush1.msra.mxu0 %v225
    %960 = vmatprep.subr.mxu0 0.0
    %961 = vmatpush1.msra.mxu0 %v226
    %962 = vmatprep.subr.mxu0 0.0
    %963 = vmatpush1.msra.mxu0 %v227
    %964 = vmatprep.subr.mxu0 0.0
    %965 = vmatpush1.msra.mxu0 %v228
    %966 = vmatprep.subr.mxu0 0.0
    %967 = vmatpush1.msra.mxu0 %v229
    %968 = vmatprep.subr.mxu0 0.0
    %969 = vmatpush1.msra.mxu0 %v230
    %970 = vmatprep.subr.mxu0 0.0
    %971 = vmatpush1.msra.mxu0 %v231
    %972 = vmatprep.subr.mxu0 0.0
    %973 = vmatpush1.msra.mxu0 %v232
    %974 = vmatprep.subr.mxu0 0.0
    %975 = vmatpush1.msra.mxu0 %v233
    %976 = vmatprep.subr.mxu0 0.0
    %977 = vmatpush1.msra.mxu0 %v234
    %978 = vmatprep.subr.mxu0 0.0
    %979 = vmatpush1.msra.mxu0 %v235
    %980 = vmatprep.subr.mxu0 0.0
    %981 = vmatpush1.msra.mxu0 %v236
    %982 = vmatprep.subr.mxu0 0.0
    %983 = vmatpush1.msra.mxu0 %v237
    %984 = vmatprep.subr.mxu0 0.0
    %985 = vmatpush1.msra.mxu0 %v238
    %986 = vmatprep.subr.mxu0 0.0
    %987 = vmatpush1.msra.mxu0 %v239
    %988 = vmatprep.subr.mxu0 0.0
    %989 = vmatpush1.msra.mxu0 0.0
    %990 = vmatprep.subr.mxu0 0.0
    %991 = vmatpush1.msra.mxu0 0.0
    %992 = vmatprep.subr.mxu0 0.0
    %993 = vmatpush1.msra.mxu0 0.0
    %994 = vmatprep.subr.mxu0 0.0
    %995 = vmatpush1.msra.mxu0 0.0
    %996 = vmatprep.subr.mxu0 0.0
    %997 = vmatpush1.msra.mxu0 0.0
    %998 = vmatprep.subr.mxu0 0.0
    %999 = vmatpush1.msra.mxu0 0.0
    %1000 = vmatprep.subr.mxu0 0.0
    %1001 = vmatpush1.msra.mxu0 0.0
    %1002 = vmatprep.subr.mxu0 0.0
    %1003 = vmatpush1.msra.mxu0 0.0
    %1004 = vmatprep.subr.mxu0 0.0
    %1005 = vmatpush1.msra.mxu0 0.0
    %1006 = vmatprep.subr.mxu0 0.0
    %1007 = vmatpush1.msra.mxu0 0.0
    %1008 = vmatprep.subr.mxu0 0.0
    %1009 = vmatpush1.msra.mxu0 0.0
    %1010 = vmatprep.subr.mxu0 0.0
    %1011 = vmatpush1.msra.mxu0 0.0
    %1012 = vmatprep.subr.mxu0 0.0
    %1013 = vmatpush1.msra.mxu0 0.0
    %1014 = vmatprep.subr.mxu0 0.0
    %1015 = vmatpush1.msra.mxu0 0.0
    %1016 = vmatprep.subr.mxu0 0.0
    %1017 = vmatpush1.msra.mxu0 0.0
    %1018 = vmatprep.subr.mxu0 0.0
    %1019 = vmatpush1.msra.mxu0 0.0
    %1020 = vmatprep.mubr.f32.mxu0 0.0
    %1021 = vmatmul.mubr.f32.gmra.mrb[0].mxu0 %v955
    %v1022 = vpop.f32.mrb[0].mxu0
    %v1023 = vadd.f32 %v266, %v1022
    %v1024 = vpop.f32.mrb[0].mxu0
    %1025 = vdwg.mxu0
    %1026 = vmatprep.subr.mxu0 0.0
    %1027 = vmatpush1.msra.mxu0 %v240
    %1028 = vmatprep.subr.mxu0 0.0
    %1029 = vmatpush1.msra.mxu0 %v241
    %1030 = vmatprep.subr.mxu0 0.0
    %1031 = vmatpush1.msra.mxu0 %v242
    %1032 = vmatprep.subr.mxu0 0.0
    %1033 = vmatpush1.msra.mxu0 %v243
    %1034 = vmatprep.subr.mxu0 0.0
    %1035 = vmatpush1.msra.mxu0 %v244
    %1036 = vmatprep.subr.mxu0 0.0
    %1037 = vmatpush1.msra.mxu0 %v245
    %1038 = vmatprep.subr.mxu0 0.0
    %1039 = vmatpush1.msra.mxu0 %v246
    %1040 = vmatprep.subr.mxu0 0.0
    %1041 = vmatpush1.msra.mxu0 %v247
    %1042 = vmatprep.subr.mxu0 0.0
    %1043 = vmatpush1.msra.mxu0 %v248
    %1044 = vmatprep.subr.mxu0 0.0
    %1045 = vmatpush1.msra.mxu0 %v249
    %1046 = vmatprep.subr.mxu0 0.0
    %1047 = vmatpush1.msra.mxu0 %v250
    %1048 = vmatprep.subr.mxu0 0.0
    %1049 = vmatpush1.msra.mxu0 %v251
    %1050 = vmatprep.subr.mxu0 0.0
    %1051 = vmatpush1.msra.mxu0 %v252
    %1052 = vmatprep.subr.mxu0 0.0
    %1053 = vmatpush1.msra.mxu0 %v253
    %1054 = vmatprep.subr.mxu0 0.0
    %1055 = vmatpush1.msra.mxu0 %v254
    %1056 = vmatprep.subr.mxu0 0.0
    %1057 = vmatpush1.msra.mxu0 %v255
    %1058 = vmatprep.subr.mxu0 0.0
    %1059 = vmatpush1.msra.mxu0 0.0
    %1060 = vmatprep.subr.mxu0 0.0
    %1061 = vmatpush1.msra.mxu0 0.0
    %1062 = vmatprep.subr.mxu0 0.0
    %1063 = vmatpush1.msra.mxu0 0.0
    %1064 = vmatprep.subr.mxu0 0.0
    %1065 = vmatpush1.msra.mxu0 0.0
    %1066 = vmatprep.subr.mxu0 0.0
    %1067 = vmatpush1.msra.mxu0 0.0
    %1068 = vmatprep.subr.mxu0 0.0
    %1069 = vmatpush1.msra.mxu0 0.0
    %1070 = vmatprep.subr.mxu0 0.0
    %1071 = vmatpush1.msra.mxu0 0.0
    %1072 = vmatprep.subr.mxu0 0.0
    %1073 = vmatpush1.msra.mxu0 0.0
    %1074 = vmatprep.subr.mxu0 0.0
    %1075 = vmatpush1.msra.mxu0 0.0
    %1076 = vmatprep.subr.mxu0 0.0
    %1077 = vmatpush1.msra.mxu0 0.0
    %1078 = vmatprep.subr.mxu0 0.0
    %1079 = vmatpush1.msra.mxu0 0.0
    %1080 = vmatprep.subr.mxu0 0.0
    %1081 = vmatpush1.msra.mxu0 0.0
    %1082 = vmatprep.subr.mxu0 0.0
    %1083 = vmatpush1.msra.mxu0 0.0
    %1084 = vmatprep.subr.mxu0 0.0
    %1085 = vmatpush1.msra.mxu0 0.0
    %1086 = vmatprep.subr.mxu0 0.0
    %1087 = vmatpush1.msra.mxu0 0.0
    %1088 = vmatprep.subr.mxu0 0.0
    %1089 = vmatpush1.msra.mxu0 0.0
    %1090 = vmatprep.mubr.f32.mxu0 0.0
    %1091 = vmatmul.mubr.f32.gmra.mrb[0].mxu0 %v1023
    %v1092 = vpop.f32.mrb[0].mxu0
    %v1093 = vadd.f32 0.0, %v1092
    %v1094 = vpop.f32.mrb[0].mxu0
    %1095 = vdwg.mxu0
    %v1096 = vmul.f32 %v1023, %v1023
    %1097 = vmatprep.subr.mxu0 0.0
    %1098 = vmatpush1.msra.mxu0 %v240
    %1099 = vmatprep.subr.mxu0 0.0
    %1100 = vmatpush1.msra.mxu0 %v241
    %1101 = vmatprep.subr.mxu0 0.0
    %1102 = vmatpush1.msra.mxu0 %v242
    %1103 = vmatprep.subr.mxu0 0.0
    %1104 = vmatpush1.msra.mxu0 %v243
    %1105 = vmatprep.subr.mxu0 0.0
    %1106 = vmatpush1.msra.mxu0 %v244
    %1107 = vmatprep.subr.mxu0 0.0
    %1108 = vmatpush1.msra.mxu0 %v245
    %1109 = vmatprep.subr.mxu0 0.0
    %1110 = vmatpush1.msra.mxu0 %v246
    %1111 = vmatprep.subr.mxu0 0.0
    %1112 = vmatpush1.msra.mxu0 %v247
    %1113 = vmatprep.subr.mxu0 0.0
    %1114 = vmatpush1.msra.mxu0 %v248
    %1115 = vmatprep.subr.mxu0 0.0
    %1116 = vmatpush1.msra.mxu0 %v249
    %1117 = vmatprep.subr.mxu0 0.0
    %1118 = vmatpush1.msra.mxu0 %v250
    %1119 = vmatprep.subr.mxu0 0.0
    %1120 = vmatpush1.msra.mxu0 %v251
    %1121 = vmatprep.subr.mxu0 0.0
    %1122 = vmatpush1.msra.mxu0 %v252
    %1123 = vmatprep.subr.mxu0 0.0
    %1124 = vmatpush1.msra.mxu0 %v253
    %1125 = vmatprep.subr.mxu0 0.0
    %1126 = vmatpush1.msra.mxu0 %v254
    %1127 = vmatprep.subr.mxu0 0.0
    %1128 = vmatpush1.msra.mxu0 %v255
    %1129 = vmatprep.subr.mxu0 0.0
    %1130 = vmatpush1.msra.mxu0 0.0
    %1131 = vmatprep.subr.mxu0 0.0
    %1132 = vmatpush1.msra.mxu0 0.0
    %1133 = vmatprep.subr.mxu0 0.0
    %1134 = vmatpush1.msra.mxu0 0.0
    %1135 = vmatprep.subr.mxu0 0.0
    %1136 = vmatpush1.msra.mxu0 0.0
    %1137 = vmatprep.subr.mxu0 0.0
    %1138 = vmatpush1.msra.mxu0 0.0
    %1139 = vmatprep.subr.mxu0 0.0
    %1140 = vmatpush1.msra.mxu0 0.0
    %1141 = vmatprep.subr.mxu0 0.0
    %1142 = vmatpush1.msra.mxu0 0.0
    %1143 = vmatprep.subr.mxu0 0.0
    %1144 = vmatpush1.msra.mxu0 0.0
    %1145 = vmatprep.subr.mxu0 0.0
    %1146 = vmatpush1.msra.mxu0 0.0
    %1147 = vmatprep.subr.mxu0 0.0
    %1148 = vmatpush1.msra.mxu0 0.0
    %1149 = vmatprep.subr.mxu0 0.0
    %1150 = vmatpush1.msra.mxu0 0.0
    %1151 = vmatprep.subr.mxu0 0.0
    %1152 = vmatpush1.msra.mxu0 0.0
    %1153 = vmatprep.subr.mxu0 0.0
    %1154 = vmatpush1.msra.mxu0 0.0
    %1155 = vmatprep.subr.mxu0 0.0
    %1156 = vmatpush1.msra.mxu0 0.0
    %1157 = vmatprep.subr.mxu0 0.0
    %1158 = vmatpush1.msra.mxu0 0.0
    %1159 = vmatprep.subr.mxu0 0.0
    %1160 = vmatpush1.msra.mxu0 0.0
    %1161 = vmatprep.mubr.f32.mxu0 0.0
    %1162 = vmatmul.mubr.f32.gmra.mrb[0].mxu0 %v1096
    %v1163 = vpop.f32.mrb[0].mxu0
    %v1164 = vadd.f32 0.0, %v1163
    %v1165 = vpop.f32.mrb[0].mxu0
    %1166 = vdwg.mxu0
    %v1167 = vmul.f32 %v1093, %v1093
    %v1168 = vsub.f32 %v1164, %v1167
    %v1169 = vadd.f32 %v1168, 1e-05
    %v1170 = vrsqrt.pop %v1169
    %v1171 = vsub.f32 %v1023, %v1093
    %v1172 = vmul.f32 %v1171, %v1170
    %v1173 = vmul.f32 %v878, 1.1111112
    %v1174 = vlaneseq
    %v1175 = vshrl.u32 %v1174, 7
    %v1176 = vsub.s32 4, %v1175
    %v1177 = vrot.slane %v256, %v1176
    %v1178 = vmul.f32 %v1172, %v1177
    %v1179 = vadd.f32 %v1173, %v1178
    %v1180 = vlaneseq
    %v1181 = vshrl.u32 %v1180, 7
    %v1182 = vsub.s32 5, %v1181
    %v1183 = vrot.slane %v257, %v1182
    %v1184 = vadd.f32 %v1179, %v1183
    %1185 = vmatprep.subr.mxu0 0.0
    %1186 = vmatpush1.msra.mxu0 %v208
    %1187 = vmatprep.subr.mxu0 0.0
    %1188 = vmatpush1.msra.mxu0 %v209
    %1189 = vmatprep.subr.mxu0 0.0
    %1190 = vmatpush1.msra.mxu0 %v210
    %1191 = vmatprep.subr.mxu0 0.0
    %1192 = vmatpush1.msra.mxu0 %v211
    %1193 = vmatprep.subr.mxu0 0.0
    %1194 = vmatpush1.msra.mxu0 %v212
    %1195 = vmatprep.subr.mxu0 0.0
    %1196 = vmatpush1.msra.mxu0 %v213
    %1197 = vmatprep.subr.mxu0 0.0
    %1198 = vmatpush1.msra.mxu0 %v214
    %1199 = vmatprep.subr.mxu0 0.0
    %1200 = vmatpush1.msra.mxu0 %v215
    %1201 = vmatprep.subr.mxu0 0.0
    %1202 = vmatpush1.msra.mxu0 %v216
    %1203 = vmatprep.subr.mxu0 0.0
    %1204 = vmatpush1.msra.mxu0 %v217
    %1205 = vmatprep.subr.mxu0 0.0
    %1206 = vmatpush1.msra.mxu0 %v218
    %1207 = vmatprep.subr.mxu0 0.0
    %1208 = vmatpush1.msra.mxu0 %v219
    %1209 = vmatprep.subr.mxu0 0.0
    %1210 = vmatpush1.msra.mxu0 %v220
    %1211 = vmatprep.subr.mxu0 0.0
    %1212 = vmatpush1.msra.mxu0 %v221
    %1213 = vmatprep.subr.mxu0 0.0
    %1214 = vmatpush1.msra.mxu0 %v222
    %1215 = vmatprep.subr.mxu0 0.0
    %1216 = vmatpush1.msra.mxu0 %v223
    %1217 = vmatprep.subr.mxu0 0.0
    %1218 = vmatpush1.msra.mxu0 0.0
    %1219 = vmatprep.subr.mxu0 0.0
    %1220 = vmatpush1.msra.mxu0 0.0
    %1221 = vmatprep.subr.mxu0 0.0
    %1222 = vmatpush1.msra.mxu0 0.0
    %1223 = vmatprep.subr.mxu0 0.0
    %1224 = vmatpush1.msra.mxu0 0.0
    %1225 = vmatprep.subr.mxu0 0.0
    %1226 = vmatpush1.msra.mxu0 0.0
    %1227 = vmatprep.subr.mxu0 0.0
    %1228 = vmatpush1.msra.mxu0 0.0
    %1229 = vmatprep.subr.mxu0 0.0
    %1230 = vmatpush1.msra.mxu0 0.0
    %1231 = vmatprep.subr.mxu0 0.0
    %1232 = vmatpush1.msra.mxu0 0.0
    %1233 = vmatprep.subr.mxu0 0.0
    %1234 = vmatpush1.msra.mxu0 0.0
    %1235 = vmatprep.subr.mxu0 0.0
    %1236 = vmatpush1.msra.mxu0 0.0
    %1237 = vmatprep.subr.mxu0 0.0
    %1238 = vmatpush1.msra.mxu0 0.0
    %1239 = vmatprep.subr.mxu0 0.0
    %1240 = vmatpush1.msra.mxu0 0.0
    %1241 = vmatprep.subr.mxu0 0.0
    %1242 = vmatpush1.msra.mxu0 0.0
    %1243 = vmatprep.subr.mxu0 0.0
    %1244 = vmatpush1.msra.mxu0 0.0
    %1245 = vmatprep.subr.mxu0 0.0
    %1246 = vmatpush1.msra.mxu0 0.0
    %1247 = vmatprep.subr.mxu0 0.0
    %1248 = vmatpush1.msra.mxu0 0.0
    %1249 = vmatprep.mubr.f32.mxu0 0.0
    %1250 = vmatmul.mubr.f32.gmra.mrb[0].mxu0 %v1184
    %v1251 = vpop.f32.mrb[0].mxu0
    %v1252 = vadd.f32 %v262, %v1251
    %v1253 = vpop.f32.mrb[0].mxu0
    %1254 = vdwg.mxu0
    %v1255 = vxor.u32 %v1252, 2147483648
    %v1256 = vmul.f32 %v1255, 1.442695
    %v1257 = vpow.pop %v1256
    %v1258 = vadd.f32 %v1257, 1.0
    %v1259 = vrcp.pop %v1258
    %v1260 = vmul.f32 1.0, %v1259
    %v1261 = vmul.f32 %v1252, %v1260
    %1262 = vmatprep.subr.mxu0 0.0
    %1263 = vmatpush1.msra.mxu0 %v224
    %1264 = vmatprep.subr.mxu0 0.0
    %1265 = vmatpush1.msra.mxu0 %v225
    %1266 = vmatprep.subr.mxu0 0.0
    %1267 = vmatpush1.msra.mxu0 %v226
    %1268 = vmatprep.subr.mxu0 0.0
    %1269 = vmatpush1.msra.mxu0 %v227
    %1270 = vmatprep.subr.mxu0 0.0
    %1271 = vmatpush1.msra.mxu0 %v228
    %1272 = vmatprep.subr.mxu0 0.0
    %1273 = vmatpush1.msra.mxu0 %v229
    %1274 = vmatprep.subr.mxu0 0.0
    %1275 = vmatpush1.msra.mxu0 %v230
    %1276 = vmatprep.subr.mxu0 0.0
    %1277 = vmatpush1.msra.mxu0 %v231
    %1278 = vmatprep.subr.mxu0 0.0
    %1279 = vmatpush1.msra.mxu0 %v232
    %1280 = vmatprep.subr.mxu0 0.0
    %1281 = vmatpush1.msra.mxu0 %v233
    %1282 = vmatprep.subr.mxu0 0.0
    %1283 = vmatpush1.msra.mxu0 %v234
    %1284 = vmatprep.subr.mxu0 0.0
    %1285 = vmatpush1.msra.mxu0 %v235
    %1286 = vmatprep.subr.mxu0 0.0
    %1287 = vmatpush1.msra.mxu0 %v236
    %1288 = vmatprep.subr.mxu0 0.0
    %1289 = vmatpush1.msra.mxu0 %v237
    %1290 = vmatprep.subr.mxu0 0.0
    %1291 = vmatpush1.msra.mxu0 %v238
    %1292 = vmatprep.subr.mxu0 0.0
    %1293 = vmatpush1.msra.mxu0 %v239
    %1294 = vmatprep.subr.mxu0 0.0
    %1295 = vmatpush1.msra.mxu0 0.0
    %1296 = vmatprep.subr.mxu0 0.0
    %1297 = vmatpush1.msra.mxu0 0.0
    %1298 = vmatprep.subr.mxu0 0.0
    %1299 = vmatpush1.msra.mxu0 0.0
    %1300 = vmatprep.subr.mxu0 0.0
    %1301 = vmatpush1.msra.mxu0 0.0
    %1302 = vmatprep.subr.mxu0 0.0
    %1303 = vmatpush1.msra.mxu0 0.0
    %1304 = vmatprep.subr.mxu0 0.0
    %1305 = vmatpush1.msra.mxu0 0.0
    %1306 = vmatprep.subr.mxu0 0.0
    %1307 = vmatpush1.msra.mxu0 0.0
    %1308 = vmatprep.subr.mxu0 0.0
    %1309 = vmatpush1.msra.mxu0 0.0
    %1310 = vmatprep.subr.mxu0 0.0
    %1311 = vmatpush1.msra.mxu0 0.0
    %1312 = vmatprep.subr.mxu0 0.0
    %1313 = vmatpush1.msra.mxu0 0.0
    %1314 = vmatprep.subr.mxu0 0.0
    %1315 = vmatpush1.msra.mxu0 0.0
    %1316 = vmatprep.subr.mxu0 0.0
    %1317 = vmatpush1.msra.mxu0 0.0
    %1318 = vmatprep.subr.mxu0 0.0
    %1319 = vmatpush1.msra.mxu0 0.0
    %1320 = vmatprep.subr.mxu0 0.0
    %1321 = vmatpush1.msra.mxu0 0.0
    %1322 = vmatprep.subr.mxu0 0.0
    %1323 = vmatpush1.msra.mxu0 0.0
    %1324 = vmatprep.subr.mxu0 0.0
    %1325 = vmatpush1.msra.mxu0 0.0
    %1326 = vmatprep.mubr.f32.mxu0 0.0
    %1327 = vmatmul.mubr.f32.gmra.mrb[0].mxu0 %v1261
    %v1328 = vpop.f32.mrb[0].mxu0
    %v1329 = vadd.f32 %v266, %v1328
    %v1330 = vpop.f32.mrb[0].mxu0
    %1331 = vdwg.mxu0
    %1332 = vmatprep.subr.mxu0 0.0
    %1333 = vmatpush1.msra.mxu0 %v240
    %1334 = vmatprep.subr.mxu0 0.0
    %1335 = vmatpush1.msra.mxu0 %v241
    %1336 = vmatprep.subr.mxu0 0.0
    %1337 = vmatpush1.msra.mxu0 %v242
    %1338 = vmatprep.subr.mxu0 0.0
    %1339 = vmatpush1.msra.mxu0 %v243
    %1340 = vmatprep.subr.mxu0 0.0
    %1341 = vmatpush1.msra.mxu0 %v244
    %1342 = vmatprep.subr.mxu0 0.0
    %1343 = vmatpush1.msra.mxu0 %v245
    %1344 = vmatprep.subr.mxu0 0.0
    %1345 = vmatpush1.msra.mxu0 %v246
    %1346 = vmatprep.subr.mxu0 0.0
    %1347 = vmatpush1.msra.mxu0 %v247
    %1348 = vmatprep.subr.mxu0 0.0
    %1349 = vmatpush1.msra.mxu0 %v248
    %1350 = vmatprep.subr.mxu0 0.0
    %1351 = vmatpush1.msra.mxu0 %v249
    %1352 = vmatprep.subr.mxu0 0.0
    %1353 = vmatpush1.msra.mxu0 %v250
    %1354 = vmatprep.subr.mxu0 0.0
    %1355 = vmatpush1.msra.mxu0 %v251
    %1356 = vmatprep.subr.mxu0 0.0
    %1357 = vmatpush1.msra.mxu0 %v252
    %1358 = vmatprep.subr.mxu0 0.0
    %1359 = vmatpush1.msra.mxu0 %v253
    %1360 = vmatprep.subr.mxu0 0.0
    %1361 = vmatpush1.msra.mxu0 %v254
    %1362 = vmatprep.subr.mxu0 0.0
    %1363 = vmatpush1.msra.mxu0 %v255
    %1364 = vmatprep.subr.mxu0 0.0
    %1365 = vmatpush1.msra.mxu0 0.0
    %1366 = vmatprep.subr.mxu0 0.0
    %1367 = vmatpush1.msra.mxu0 0.0
    %1368 = vmatprep.subr.mxu0 0.0
    %1369 = vmatpush1.msra.mxu0 0.0
    %1370 = vmatprep.subr.mxu0 0.0
    %1371 = vmatpush1.msra.mxu0 0.0
    %1372 = vmatprep.subr.mxu0 0.0
    %1373 = vmatpush1.msra.mxu0 0.0
    %1374 = vmatprep.subr.mxu0 0.0
    %1375 = vmatpush1.msra.mxu0 0.0
    %1376 = vmatprep.subr.mxu0 0.0
    %1377 = vmatpush1.msra.mxu0 0.0
    %1378 = vmatprep.subr.mxu0 0.0
    %1379 = vmatpush1.msra.mxu0 0.0
    %1380 = vmatprep.subr.mxu0 0.0
    %1381 = vmatpush1.msra.mxu0 0.0
    %1382 = vmatprep.subr.mxu0 0.0
    %1383 = vmatpush1.msra.mxu0 0.0
    %1384 = vmatprep.subr.mxu0 0.0
    %1385 = vmatpush1.msra.mxu0 0.0
    %1386 = vmatprep.subr.mxu0 0.0
    %1387 = vmatpush1.msra.mxu0 0.0
    %1388 = vmatprep.subr.mxu0 0.0
    %1389 = vmatpush1.msra.mxu0 0.0
    %1390 = vmatprep.subr.mxu0 0.0
    %1391 = vmatpush1.msra.mxu0 0.0
    %1392 = vmatprep.subr.mxu0 0.0
    %1393 = vmatpush1.msra.mxu0 0.0
    %1394 = vmatprep.subr.mxu0 0.0
    %1395 = vmatpush1.msra.mxu0 0.0
    %1396 = vmatprep.mubr.f32.mxu0 0.0
    %1397 = vmatmul.mubr.f32.gmra.mrb[0].mxu0 %v1329
    %v1398 = vpop.f32.mrb[0].mxu0
    %v1399 = vadd.f32 0.0, %v1398
    %v1400 = vpop.f32.mrb[0].mxu0
    %1401 = vdwg.mxu0
    %v1402 = vmul.f32 %v1329, %v1329
    %1403 = vmatprep.subr.mxu0 0.0
    %1404 = vmatpush1.msra.mxu0 %v240
    %1405 = vmatprep.subr.mxu0 0.0
    %1406 = vmatpush1.msra.mxu0 %v241
    %1407 = vmatprep.subr.mxu0 0.0
    %1408 = vmatpush1.msra.mxu0 %v242
    %1409 = vmatprep.subr.mxu0 0.0
    %1410 = vmatpush1.msra.mxu0 %v243
    %1411 = vmatprep.subr.mxu0 0.0
    %1412 = vmatpush1.msra.mxu0 %v244
    %1413 = vmatprep.subr.mxu0 0.0
    %1414 = vmatpush1.msra.mxu0 %v245
    %1415 = vmatprep.subr.mxu0 0.0
    %1416 = vmatpush1.msra.mxu0 %v246
    %1417 = vmatprep.subr.mxu0 0.0
    %1418 = vmatpush1.msra.mxu0 %v247
    %1419 = vmatprep.subr.mxu0 0.0
    %1420 = vmatpush1.msra.mxu0 %v248
    %1421 = vmatprep.subr.mxu0 0.0
    %1422 = vmatpush1.msra.mxu0 %v249
    %1423 = vmatprep.subr.mxu0 0.0
    %1424 = vmatpush1.msra.mxu0 %v250
    %1425 = vmatprep.subr.mxu0 0.0
    %1426 = vmatpush1.msra.mxu0 %v251
    %1427 = vmatprep.subr.mxu0 0.0
    %1428 = vmatpush1.msra.mxu0 %v252
    %1429 = vmatprep.subr.mxu0 0.0
    %1430 = vmatpush1.msra.mxu0 %v253
    %1431 = vmatprep.subr.mxu0 0.0
    %1432 = vmatpush1.msra.mxu0 %v254
    %1433 = vmatprep.subr.mxu0 0.0
    %1434 = vmatpush1.msra.mxu0 %v255
    %1435 = vmatprep.subr.mxu0 0.0
    %1436 = vmatpush1.msra.mxu0 0.0
    %1437 = vmatprep.subr.mxu0 0.0
    %1438 = vmatpush1.msra.mxu0 0.0
    %1439 = vmatprep.subr.mxu0 0.0
    %1440 = vmatpush1.msra.mxu0 0.0
    %1441 = vmatprep.subr.mxu0 0.0
    %1442 = vmatpush1.msra.mxu0 0.0
    %1443 = vmatprep.subr.mxu0 0.0
    %1444 = vmatpush1.msra.mxu0 0.0
    %1445 = vmatprep.subr.mxu0 0.0
    %1446 = vmatpush1.msra.mxu0 0.0
    %1447 = vmatprep.subr.mxu0 0.0
    %1448 = vmatpush1.msra.mxu0 0.0
    %1449 = vmatprep.subr.mxu0 0.0
    %1450 = vmatpush1.msra.mxu0 0.0
    %1451 = vmatprep.subr.mxu0 0.0
    %1452 = vmatpush1.msra.mxu0 0.0
    %1453 = vmatprep.subr.mxu0 0.0
    %1454 = vmatpush1.msra.mxu0 0.0
    %1455 = vmatprep.subr.mxu0 0.0
    %1456 = vmatpush1.msra.mxu0 0.0
    %1457 = vmatprep.subr.mxu0 0.0
    %1458 = vmatpush1.msra.mxu0 0.0
    %1459 = vmatprep.subr.mxu0 0.0
    %1460 = vmatpush1.msra.mxu0 0.0
    %1461 = vmatprep.subr.mxu0 0.0
    %1462 = vmatpush1.msra.mxu0 0.0
    %1463 = vmatprep.subr.mxu0 0.0
    %1464 = vmatpush1.msra.mxu0 0.0
    %1465 = vmatprep.subr.mxu0 0.0
    %1466 = vmatpush1.msra.mxu0 0.0
    %1467 = vmatprep.mubr.f32.mxu0 0.0
    %1468 = vmatmul.mubr.f32.gmra.mrb[0].mxu0 %v1402
    %v1469 = vpop.f32.mrb[0].mxu0
    %v1470 = vadd.f32 0.0, %v1469
    %v1471 = vpop.f32.mrb[0].mxu0
    %1472 = vdwg.mxu0
    %v1473 = vmul.f32 %v1399, %v1399
    %v1474 = vsub.f32 %v1470, %v1473
    %v1475 = vadd.f32 %v1474, 1e-05
    %v1476 = vrsqrt.pop %v1475
    %v1477 = vsub.f32 %v1329, %v1399
    %v1478 = vmul.f32 %v1477, %v1476
    %v1479 = vmul.f32 %v1184, 1.1111112
    %v1480 = vlaneseq
    %v1481 = vshrl.u32 %v1480, 7
    %v1482 = vsub.s32 5, %v1481
    %v1483 = vrot.slane %v256, %v1482
    %v1484 = vmul.f32 %v1478, %v1483
    %v1485 = vadd.f32 %v1479, %v1484
    %v1486 = vlaneseq
    %v1487 = vshrl.u32 %v1486, 7
    %v1488 = vsub.s32 6, %v1487
    %v1489 = vrot.slane %v257, %v1488
    %v1490 = vadd.f32 %v1485, %v1489
    %1491 = vmatprep.subr.mxu0 0.0
    %1492 = vmatpush1.msra.mxu0 %v208
    %1493 = vmatprep.subr.mxu0 0.0
    %1494 = vmatpush1.msra.mxu0 %v209
    %1495 = vmatprep.subr.mxu0 0.0
    %1496 = vmatpush1.msra.mxu0 %v210
    %1497 = vmatprep.subr.mxu0 0.0
    %1498 = vmatpush1.msra.mxu0 %v211
    %1499 = vmatprep.subr.mxu0 0.0
    %1500 = vmatpush1.msra.mxu0 %v212
    %1501 = vmatprep.subr.mxu0 0.0
    %1502 = vmatpush1.msra.mxu0 %v213
    %1503 = vmatprep.subr.mxu0 0.0
    %1504 = vmatpush1.msra.mxu0 %v214
    %1505 = vmatprep.subr.mxu0 0.0
    %1506 = vmatpush1.msra.mxu0 %v215
    %1507 = vmatprep.subr.mxu0 0.0
    %1508 = vmatpush1.msra.mxu0 %v216
    %1509 = vmatprep.subr.mxu0 0.0
    %1510 = vmatpush1.msra.mxu0 %v217
    %1511 = vmatprep.subr.mxu0 0.0
    %1512 = vmatpush1.msra.mxu0 %v218
    %1513 = vmatprep.subr.mxu0 0.0
    %1514 = vmatpush1.msra.mxu0 %v219
    %1515 = vmatprep.subr.mxu0 0.0
    %1516 = vmatpush1.msra.mxu0 %v220
    %1517 = vmatprep.subr.mxu0 0.0
    %1518 = vmatpush1.msra.mxu0 %v221
    %1519 = vmatprep.subr.mxu0 0.0
    %1520 = vmatpush1.msra.mxu0 %v222
    %1521 = vmatprep.subr.mxu0 0.0
    %1522 = vmatpush1.msra.mxu0 %v223
    %1523 = vmatprep.subr.mxu0 0.0
    %1524 = vmatpush1.msra.mxu0 0.0
    %1525 = vmatprep.subr.mxu0 0.0
    %1526 = vmatpush1.msra.mxu0 0.0
    %1527 = vmatprep.subr.mxu0 0.0
    %1528 = vmatpush1.msra.mxu0 0.0
    %1529 = vmatprep.subr.mxu0 0.0
    %1530 = vmatpush1.msra.mxu0 0.0
    %1531 = vmatprep.subr.mxu0 0.0
    %1532 = vmatpush1.msra.mxu0 0.0
    %1533 = vmatprep.subr.mxu0 0.0
    %1534 = vmatpush1.msra.mxu0 0.0
    %1535 = vmatprep.subr.mxu0 0.0
    %1536 = vmatpush1.msra.mxu0 0.0
    %1537 = vmatprep.subr.mxu0 0.0
    %1538 = vmatpush1.msra.mxu0 0.0
    %1539 = vmatprep.subr.mxu0 0.0
    %1540 = vmatpush1.msra.mxu0 0.0
    %1541 = vmatprep.subr.mxu0 0.0
    %1542 = vmatpush1.msra.mxu0 0.0
    %1543 = vmatprep.subr.mxu0 0.0
    %1544 = vmatpush1.msra.mxu0 0.0
    %1545 = vmatprep.subr.mxu0 0.0
    %1546 = vmatpush1.msra.mxu0 0.0
    %1547 = vmatprep.subr.mxu0 0.0
    %1548 = vmatpush1.msra.mxu0 0.0
    %1549 = vmatprep.subr.mxu0 0.0
    %1550 = vmatpush1.msra.mxu0 0.0
    %1551 = vmatprep.subr.mxu0 0.0
    %1552 = vmatpush1.msra.mxu0 0.0
    %1553 = vmatprep.subr.mxu0 0.0
    %1554 = vmatpush1.msra.mxu0 0.0
    %1555 = vmatprep.mubr.f32.mxu0 0.0
    %1556 = vmatmul.mubr.f32.gmra.mrb[0].mxu0 %v1490
    %v1557 = vpop.f32.mrb[0].mxu0
    %v1558 = vadd.f32 %v262, %v1557
    %v1559 = vpop.f32.mrb[0].mxu0
    %1560 = vdwg.mxu0
    %v1561 = vxor.u32 %v1558, 2147483648
    %v1562 = vmul.f32 %v1561, 1.442695
    %v1563 = vpow.pop %v1562
    %v1564 = vadd.f32 %v1563, 1.0
    %v1565 = vrcp.pop %v1564
    %v1566 = vmul.f32 1.0, %v1565
    %v1567 = vmul.f32 %v1558, %v1566
    %1568 = vmatprep.subr.mxu0 0.0
    %1569 = vmatpush1.msra.mxu0 %v224
    %1570 = vmatprep.subr.mxu0 0.0
    %1571 = vmatpush1.msra.mxu0 %v225
    %1572 = vmatprep.subr.mxu0 0.0
    %1573 = vmatpush1.msra.mxu0 %v226
    %1574 = vmatprep.subr.mxu0 0.0
    %1575 = vmatpush1.msra.mxu0 %v227
    %1576 = vmatprep.subr.mxu0 0.0
    %1577 = vmatpush1.msra.mxu0 %v228
    %1578 = vmatprep.subr.mxu0 0.0
    %1579 = vmatpush1.msra.mxu0 %v229
    %1580 = vmatprep.subr.mxu0 0.0
    %1581 = vmatpush1.msra.mxu0 %v230
    %1582 = vmatprep.subr.mxu0 0.0
    %1583 = vmatpush1.msra.mxu0 %v231
    %1584 = vmatprep.subr.mxu0 0.0
    %1585 = vmatpush1.msra.mxu0 %v232
    %1586 = vmatprep.subr.mxu0 0.0
    %1587 = vmatpush1.msra.mxu0 %v233
    %1588 = vmatprep.subr.mxu0 0.0
    %1589 = vmatpush1.msra.mxu0 %v234
    %1590 = vmatprep.subr.mxu0 0.0
    %1591 = vmatpush1.msra.mxu0 %v235
    %1592 = vmatprep.subr.mxu0 0.0
    %1593 = vmatpush1.msra.mxu0 %v236
    %1594 = vmatprep.subr.mxu0 0.0
    %1595 = vmatpush1.msra.mxu0 %v237
    %1596 = vmatprep.subr.mxu0 0.0
    %1597 = vmatpush1.msra.mxu0 %v238
    %1598 = vmatprep.subr.mxu0 0.0
    %1599 = vmatpush1.msra.mxu0 %v239
    %1600 = vmatprep.subr.mxu0 0.0
    %1601 = vmatpush1.msra.mxu0 0.0
    %1602 = vmatprep.subr.mxu0 0.0
    %1603 = vmatpush1.msra.mxu0 0.0
    %1604 = vmatprep.subr.mxu0 0.0
    %1605 = vmatpush1.msra.mxu0 0.0
    %1606 = vmatprep.subr.mxu0 0.0
    %1607 = vmatpush1.msra.mxu0 0.0
    %1608 = vmatprep.subr.mxu0 0.0
    %1609 = vmatpush1.msra.mxu0 0.0
    %1610 = vmatprep.subr.mxu0 0.0
    %1611 = vmatpush1.msra.mxu0 0.0
    %1612 = vmatprep.subr.mxu0 0.0
    %1613 = vmatpush1.msra.mxu0 0.0
    %1614 = vmatprep.subr.mxu0 0.0
    %1615 = vmatpush1.msra.mxu0 0.0
    %1616 = vmatprep.subr.mxu0 0.0
    %1617 = vmatpush1.msra.mxu0 0.0
    %1618 = vmatprep.subr.mxu0 0.0
    %1619 = vmatpush1.msra.mxu0 0.0
    %1620 = vmatprep.subr.mxu0 0.0
    %1621 = vmatpush1.msra.mxu0 0.0
    %1622 = vmatprep.subr.mxu0 0.0
    %1623 = vmatpush1.msra.mxu0 0.0
    %1624 = vmatprep.subr.mxu0 0.0
    %1625 = vmatpush1.msra.mxu0 0.0
    %1626 = vmatprep.subr.mxu0 0.0
    %1627 = vmatpush1.msra.mxu0 0.0
    %1628 = vmatprep.subr.mxu0 0.0
    %1629 = vmatpush1.msra.mxu0 0.0
    %1630 = vmatprep.subr.mxu0 0.0
    %1631 = vmatpush1.msra.mxu0 0.0
    %1632 = vmatprep.mubr.f32.mxu0 0.0
    %1633 = vmatmul.mubr.f32.gmra.mrb[0].mxu0 %v1567
    %v1634 = vpop.f32.mrb[0].mxu0
    %v1635 = vadd.f32 %v266, %v1634
    %v1636 = vpop.f32.mrb[0].mxu0
    %1637 = vdwg.mxu0
    %1638 = vmatprep.subr.mxu0 0.0
    %1639 = vmatpush1.msra.mxu0 %v240
    %1640 = vmatprep.subr.mxu0 0.0
    %1641 = vmatpush1.msra.mxu0 %v241
    %1642 = vmatprep.subr.mxu0 0.0
    %1643 = vmatpush1.msra.mxu0 %v242
    %1644 = vmatprep.subr.mxu0 0.0
    %1645 = vmatpush1.msra.mxu0 %v243
    %1646 = vmatprep.subr.mxu0 0.0
    %1647 = vmatpush1.msra.mxu0 %v244
    %1648 = vmatprep.subr.mxu0 0.0
    %1649 = vmatpush1.msra.mxu0 %v245
    %1650 = vmatprep.subr.mxu0 0.0
    %1651 = vmatpush1.msra.mxu0 %v246
    %1652 = vmatprep.subr.mxu0 0.0
    %1653 = vmatpush1.msra.mxu0 %v247
    %1654 = vmatprep.subr.mxu0 0.0
    %1655 = vmatpush1.msra.mxu0 %v248
    %1656 = vmatprep.subr.mxu0 0.0
    %1657 = vmatpush1.msra.mxu0 %v249
    %1658 = vmatprep.subr.mxu0 0.0
    %1659 = vmatpush1.msra.mxu0 %v250
    %1660 = vmatprep.subr.mxu0 0.0
    %1661 = vmatpush1.msra.mxu0 %v251
    %1662 = vmatprep.subr.mxu0 0.0
    %1663 = vmatpush1.msra.mxu0 %v252
    %1664 = vmatprep.subr.mxu0 0.0
    %1665 = vmatpush1.msra.mxu0 %v253
    %1666 = vmatprep.subr.mxu0 0.0
    %1667 = vmatpush1.msra.mxu0 %v254
    %1668 = vmatprep.subr.mxu0 0.0
    %1669 = vmatpush1.msra.mxu0 %v255
    %1670 = vmatprep.subr.mxu0 0.0
    %1671 = vmatpush1.msra.mxu0 0.0
    %1672 = vmatprep.subr.mxu0 0.0
    %1673 = vmatpush1.msra.mxu0 0.0
    %1674 = vmatprep.subr.mxu0 0.0
    %1675 = vmatpush1.msra.mxu0 0.0
    %1676 = vmatprep.subr.mxu0 0.0
    %1677 = vmatpush1.msra.mxu0 0.0
    %1678 = vmatprep.subr.mxu0 0.0
    %1679 = vmatpush1.msra.mxu0 0.0
    %1680 = vmatprep.subr.mxu0 0.0
    %1681 = vmatpush1.msra.mxu0 0.0
    %1682 = vmatprep.subr.mxu0 0.0
    %1683 = vmatpush1.msra.mxu0 0.0
    %1684 = vmatprep.subr.mxu0 0.0
    %1685 = vmatpush1.msra.mxu0 0.0
    %1686 = vmatprep.subr.mxu0 0.0
    %1687 = vmatpush1.msra.mxu0 0.0
    %1688 = vmatprep.subr.mxu0 0.0
    %1689 = vmatpush1.msra.mxu0 0.0
    %1690 = vmatprep.subr.mxu0 0.0
    %1691 = vmatpush1.msra.mxu0 0.0
    %1692 = vmatprep.subr.mxu0 0.0
    %1693 = vmatpush1.msra.mxu0 0.0
    %1694 = vmatprep.subr.mxu0 0.0
    %1695 = vmatpush1.msra.mxu0 0.0
    %1696 = vmatprep.subr.mxu0 0.0
    %1697 = vmatpush1.msra.mxu0 0.0
    %1698 = vmatprep.subr.mxu0 0.0
    %1699 = vmatpush1.msra.mxu0 0.0
    %1700 = vmatprep.subr.mxu0 0.0
    %1701 = vmatpush1.msra.mxu0 0.0
    %1702 = vmatprep.mubr.f32.mxu0 0.0
    %1703 = vmatmul.mubr.f32.gmra.mrb[0].mxu0 %v1635
    %v1704 = vpop.f32.mrb[0].mxu0
    %v1705 = vadd.f32 0.0, %v1704
    %v1706 = vpop.f32.mrb[0].mxu0
    %1707 = vdwg.mxu0
    %v1708 = vmul.f32 %v1635, %v1635
    %1709 = vmatprep.subr.mxu0 0.0
    %1710 = vmatpush1.msra.mxu0 %v240
    %1711 = vmatprep.subr.mxu0 0.0
    %1712 = vmatpush1.msra.mxu0 %v241
    %1713 = vmatprep.subr.mxu0 0.0
    %1714 = vmatpush1.msra.mxu0 %v242
    %1715 = vmatprep.subr.mxu0 0.0
    %1716 = vmatpush1.msra.mxu0 %v243
    %1717 = vmatprep.subr.mxu0 0.0
    %1718 = vmatpush1.msra.mxu0 %v244
    %1719 = vmatprep.subr.mxu0 0.0
    %1720 = vmatpush1.msra.mxu0 %v245
    %1721 = vmatprep.subr.mxu0 0.0
    %1722 = vmatpush1.msra.mxu0 %v246
    %1723 = vmatprep.subr.mxu0 0.0
    %1724 = vmatpush1.msra.mxu0 %v247
    %1725 = vmatprep.subr.mxu0 0.0
    %1726 = vmatpush1.msra.mxu0 %v248
    %1727 = vmatprep.subr.mxu0 0.0
    %1728 = vmatpush1.msra.mxu0 %v249
    %1729 = vmatprep.subr.mxu0 0.0
    %1730 = vmatpush1.msra.mxu0 %v250
    %1731 = vmatprep.subr.mxu0 0.0
    %1732 = vmatpush1.msra.mxu0 %v251
    %1733 = vmatprep.subr.mxu0 0.0
    %1734 = vmatpush1.msra.mxu0 %v252
    %1735 = vmatprep.subr.mxu0 0.0
    %1736 = vmatpush1.msra.mxu0 %v253
    %1737 = vmatprep.subr.mxu0 0.0
    %1738 = vmatpush1.msra.mxu0 %v254
    %1739 = vmatprep.subr.mxu0 0.0
    %1740 = vmatpush1.msra.mxu0 %v255
    %1741 = vmatprep.subr.mxu0 0.0
    %1742 = vmatpush1.msra.mxu0 0.0
    %1743 = vmatprep.subr.mxu0 0.0
    %1744 = vmatpush1.msra.mxu0 0.0
    %1745 = vmatprep.subr.mxu0 0.0
    %1746 = vmatpush1.msra.mxu0 0.0
    %1747 = vmatprep.subr.mxu0 0.0
    %1748 = vmatpush1.msra.mxu0 0.0
    %1749 = vmatprep.subr.mxu0 0.0
    %1750 = vmatpush1.msra.mxu0 0.0
    %1751 = vmatprep.subr.mxu0 0.0
    %1752 = vmatpush1.msra.mxu0 0.0
    %1753 = vmatprep.subr.mxu0 0.0
    %1754 = vmatpush1.msra.mxu0 0.0
    %1755 = vmatprep.subr.mxu0 0.0
    %1756 = vmatpush1.msra.mxu0 0.0
    %1757 = vmatprep.subr.mxu0 0.0
    %1758 = vmatpush1.msra.mxu0 0.0
    %1759 = vmatprep.subr.mxu0 0.0
    %1760 = vmatpush1.msra.mxu0 0.0
    %1761 = vmatprep.subr.mxu0 0.0
    %1762 = vmatpush1.msra.mxu0 0.0
    %1763 = vmatprep.subr.mxu0 0.0
    %1764 = vmatpush1.msra.mxu0 0.0
    %1765 = vmatprep.subr.mxu0 0.0
    %1766 = vmatpush1.msra.mxu0 0.0
    %1767 = vmatprep.subr.mxu0 0.0
    %1768 = vmatpush1.msra.mxu0 0.0
    %1769 = vmatprep.subr.mxu0 0.0
    %1770 = vmatpush1.msra.mxu0 0.0
    %1771 = vmatprep.subr.mxu0 0.0
    %1772 = vmatpush1.msra.mxu0 0.0
    %1773 = vmatprep.mubr.f32.mxu0 0.0
    %1774 = vmatmul.mubr.f32.gmra.mrb[0].mxu0 %v1708
    %v1775 = vpop.f32.mrb[0].mxu0
    %v1776 = vadd.f32 0.0, %v1775
    %v1777 = vpop.f32.mrb[0].mxu0
    %1778 = vdwg.mxu0
    %v1779 = vmul.f32 %v1705, %v1705
    %v1780 = vsub.f32 %v1776, %v1779
    %v1781 = vadd.f32 %v1780, 1e-05
    %v1782 = vrsqrt.pop %v1781
    %v1783 = vsub.f32 %v1635, %v1705
    %v1784 = vmul.f32 %v1783, %v1782
    %v1785 = vmul.f32 %v1490, 1.1111112
    %v1786 = vlaneseq
    %v1787 = vshrl.u32 %v1786, 7
    %v1788 = vsub.s32 6, %v1787
    %v1789 = vrot.slane %v256, %v1788
    %v1790 = vmul.f32 %v1784, %v1789
    %v1791 = vadd.f32 %v1785, %v1790
    %v1792 = vlaneseq
    %v1793 = vshrl.u32 %v1792, 7
    %v1794 = vsub.s32 7, %v1793
    %v1795 = vrot.slane %v257, %v1794
    %v1796 = vadd.f32 %v1791, %v1795
    %1797 = vmatprep.subr.mxu0 0.0
    %1798 = vmatpush1.msra.mxu0 %v208
    %1799 = vmatprep.subr.mxu0 0.0
    %1800 = vmatpush1.msra.mxu0 %v209
    %1801 = vmatprep.subr.mxu0 0.0
    %1802 = vmatpush1.msra.mxu0 %v210
    %1803 = vmatprep.subr.mxu0 0.0
    %1804 = vmatpush1.msra.mxu0 %v211
    %1805 = vmatprep.subr.mxu0 0.0
    %1806 = vmatpush1.msra.mxu0 %v212
    %1807 = vmatprep.subr.mxu0 0.0
    %1808 = vmatpush1.msra.mxu0 %v213
    %1809 = vmatprep.subr.mxu0 0.0
    %1810 = vmatpush1.msra.mxu0 %v214
    %1811 = vmatprep.subr.mxu0 0.0
    %1812 = vmatpush1.msra.mxu0 %v215
    %1813 = vmatprep.subr.mxu0 0.0
    %1814 = vmatpush1.msra.mxu0 %v216
    %1815 = vmatprep.subr.mxu0 0.0
    %1816 = vmatpush1.msra.mxu0 %v217
    %1817 = vmatprep.subr.mxu0 0.0
    %1818 = vmatpush1.msra.mxu0 %v218
    %1819 = vmatprep.subr.mxu0 0.0
    %1820 = vmatpush1.msra.mxu0 %v219
    %1821 = vmatprep.subr.mxu0 0.0
    %1822 = vmatpush1.msra.mxu0 %v220
    %1823 = vmatprep.subr.mxu0 0.0
    %1824 = vmatpush1.msra.mxu0 %v221
    %1825 = vmatprep.subr.mxu0 0.0
    %1826 = vmatpush1.msra.mxu0 %v222
    %1827 = vmatprep.subr.mxu0 0.0
    %1828 = vmatpush1.msra.mxu0 %v223
    %1829 = vmatprep.subr.mxu0 0.0
    %1830 = vmatpush1.msra.mxu0 0.0
    %1831 = vmatprep.subr.mxu0 0.0
    %1832 = vmatpush1.msra.mxu0 0.0
    %1833 = vmatprep.subr.mxu0 0.0
    %1834 = vmatpush1.msra.mxu0 0.0
    %1835 = vmatprep.subr.mxu0 0.0
    %1836 = vmatpush1.msra.mxu0 0.0
    %1837 = vmatprep.subr.mxu0 0.0
    %1838 = vmatpush1.msra.mxu0 0.0
    %1839 = vmatprep.subr.mxu0 0.0
    %1840 = vmatpush1.msra.mxu0 0.0
    %1841 = vmatprep.subr.mxu0 0.0
    %1842 = vmatpush1.msra.mxu0 0.0
    %1843 = vmatprep.subr.mxu0 0.0
    %1844 = vmatpush1.msra.mxu0 0.0
    %1845 = vmatprep.subr.mxu0 0.0
    %1846 = vmatpush1.msra.mxu0 0.0
    %1847 = vmatprep.subr.mxu0 0.0
    %1848 = vmatpush1.msra.mxu0 0.0
    %1849 = vmatprep.subr.mxu0 0.0
    %1850 = vmatpush1.msra.mxu0 0.0
    %1851 = vmatprep.subr.mxu0 0.0
    %1852 = vmatpush1.msra.mxu0 0.0
    %1853 = vmatprep.subr.mxu0 0.0
    %1854 = vmatpush1.msra.mxu0 0.0
    %1855 = vmatprep.subr.mxu0 0.0
    %1856 = vmatpush1.msra.mxu0 0.0
    %1857 = vmatprep.subr.mxu0 0.0
    %1858 = vmatpush1.msra.mxu0 0.0
    %1859 = vmatprep.subr.mxu0 0.0
    %1860 = vmatpush1.msra.mxu0 0.0
    %1861 = vmatprep.mubr.f32.mxu0 0.0
    %1862 = vmatmul.mubr.f32.gmra.mrb[0].mxu0 %v1796
    %v1863 = vpop.f32.mrb[0].mxu0
    %v1864 = vadd.f32 %v262, %v1863
    %v1865 = vpop.f32.mrb[0].mxu0
    %1866 = vdwg.mxu0
    %v1867 = vxor.u32 %v1864, 2147483648
    %v1868 = vmul.f32 %v1867, 1.442695
    %v1869 = vpow.pop %v1868
    %v1870 = vadd.f32 %v1869, 1.0
    %v1871 = vrcp.pop %v1870
    %v1872 = vmul.f32 1.0, %v1871
    %v1873 = vmul.f32 %v1864, %v1872
    %1874 = vmatprep.subr.mxu0 0.0
    %1875 = vmatpush1.msra.mxu0 %v224
    %1876 = vmatprep.subr.mxu0 0.0
    %1877 = vmatpush1.msra.mxu0 %v225
    %1878 = vmatprep.subr.mxu0 0.0
    %1879 = vmatpush1.msra.mxu0 %v226
    %1880 = vmatprep.subr.mxu0 0.0
    %1881 = vmatpush1.msra.mxu0 %v227
    %1882 = vmatprep.subr.mxu0 0.0
    %1883 = vmatpush1.msra.mxu0 %v228
    %1884 = vmatprep.subr.mxu0 0.0
    %1885 = vmatpush1.msra.mxu0 %v229
    %1886 = vmatprep.subr.mxu0 0.0
    %1887 = vmatpush1.msra.mxu0 %v230
    %1888 = vmatprep.subr.mxu0 0.0
    %1889 = vmatpush1.msra.mxu0 %v231
    %1890 = vmatprep.subr.mxu0 0.0
    %1891 = vmatpush1.msra.mxu0 %v232
    %1892 = vmatprep.subr.mxu0 0.0
    %1893 = vmatpush1.msra.mxu0 %v233
    %1894 = vmatprep.subr.mxu0 0.0
    %1895 = vmatpush1.msra.mxu0 %v234
    %1896 = vmatprep.subr.mxu0 0.0
    %1897 = vmatpush1.msra.mxu0 %v235
    %1898 = vmatprep.subr.mxu0 0.0
    %1899 = vmatpush1.msra.mxu0 %v236
    %1900 = vmatprep.subr.mxu0 0.0
    %1901 = vmatpush1.msra.mxu0 %v237
    %1902 = vmatprep.subr.mxu0 0.0
    %1903 = vmatpush1.msra.mxu0 %v238
    %1904 = vmatprep.subr.mxu0 0.0
    %1905 = vmatpush1.msra.mxu0 %v239
    %1906 = vmatprep.subr.mxu0 0.0
    %1907 = vmatpush1.msra.mxu0 0.0
    %1908 = vmatprep.subr.mxu0 0.0
    %1909 = vmatpush1.msra.mxu0 0.0
    %1910 = vmatprep.subr.mxu0 0.0
    %1911 = vmatpush1.msra.mxu0 0.0
    %1912 = vmatprep.subr.mxu0 0.0
    %1913 = vmatpush1.msra.mxu0 0.0
    %1914 = vmatprep.subr.mxu0 0.0
    %1915 = vmatpush1.msra.mxu0 0.0
    %1916 = vmatprep.subr.mxu0 0.0
    %1917 = vmatpush1.msra.mxu0 0.0
    %1918 = vmatprep.subr.mxu0 0.0
    %1919 = vmatpush1.msra.mxu0 0.0
    %1920 = vmatprep.subr.mxu0 0.0
    %1921 = vmatpush1.msra.mxu0 0.0
    %1922 = vmatprep.subr.mxu0 0.0
    %1923 = vmatpush1.msra.mxu0 0.0
    %1924 = vmatprep.subr.mxu0 0.0
    %1925 = vmatpush1.msra.mxu0 0.0
    %1926 = vmatprep.subr.mxu0 0.0
    %1927 = vmatpush1.msra.mxu0 0.0
    %1928 = vmatprep.subr.mxu0 0.0
    %1929 = vmatpush1.msra.mxu0 0.0
    %1930 = vmatprep.subr.mxu0 0.0
    %1931 = vmatpush1.msra.mxu0 0.0
    %1932 = vmatprep.subr.mxu0 0.0
    %1933 = vmatpush1.msra.mxu0 0.0
    %1934 = vmatprep.subr.mxu0 0.0
    %1935 = vmatpush1.msra.mxu0 0.0
    %1936 = vmatprep.subr.mxu0 0.0
    %1937 = vmatpush1.msra.mxu0 0.0
    %1938 = vmatprep.mubr.f32.mxu0 0.0
    %1939 = vmatmul.mubr.f32.gmra.mrb[0].mxu0 %v1873
    %v1940 = vpop.f32.mrb[0].mxu0
    %v1941 = vadd.f32 %v266, %v1940
    %v1942 = vpop.f32.mrb[0].mxu0
    %1943 = vdwg.mxu0
    %1944 = vmatprep.subr.mxu0 0.0
    %1945 = vmatpush1.msra.mxu0 %v240
    %1946 = vmatprep.subr.mxu0 0.0
    %1947 = vmatpush1.msra.mxu0 %v241
    %1948 = vmatprep.subr.mxu0 0.0
    %1949 = vmatpush1.msra.mxu0 %v242
    %1950 = vmatprep.subr.mxu0 0.0
    %1951 = vmatpush1.msra.mxu0 %v243
    %1952 = vmatprep.subr.mxu0 0.0
    %1953 = vmatpush1.msra.mxu0 %v244
    %1954 = vmatprep.subr.mxu0 0.0
    %1955 = vmatpush1.msra.mxu0 %v245
    %1956 = vmatprep.subr.mxu0 0.0
    %1957 = vmatpush1.msra.mxu0 %v246
    %1958 = vmatprep.subr.mxu0 0.0
    %1959 = vmatpush1.msra.mxu0 %v247
    %1960 = vmatprep.subr.mxu0 0.0
    %1961 = vmatpush1.msra.mxu0 %v248
    %1962 = vmatprep.subr.mxu0 0.0
    %1963 = vmatpush1.msra.mxu0 %v249
    %1964 = vmatprep.subr.mxu0 0.0
    %1965 = vmatpush1.msra.mxu0 %v250
    %1966 = vmatprep.subr.mxu0 0.0
    %1967 = vmatpush1.msra.mxu0 %v251
    %1968 = vmatprep.subr.mxu0 0.0
    %1969 = vmatpush1.msra.mxu0 %v252
    %1970 = vmatprep.subr.mxu0 0.0
    %1971 = vmatpush1.msra.mxu0 %v253
    %1972 = vmatprep.subr.mxu0 0.0
    %1973 = vmatpush1.msra.mxu0 %v254
    %1974 = vmatprep.subr.mxu0 0.0
    %1975 = vmatpush1.msra.mxu0 %v255
    %1976 = vmatprep.subr.mxu0 0.0
    %1977 = vmatpush1.msra.mxu0 0.0
    %1978 = vmatprep.subr.mxu0 0.0
    %1979 = vmatpush1.msra.mxu0 0.0
    %1980 = vmatprep.subr.mxu0 0.0
    %1981 = vmatpush1.msra.mxu0 0.0
    %1982 = vmatprep.subr.mxu0 0.0
    %1983 = vmatpush1.msra.mxu0 0.0
    %1984 = vmatprep.subr.mxu0 0.0
    %1985 = vmatpush1.msra.mxu0 0.0
    %1986 = vmatprep.subr.mxu0 0.0
    %1987 = vmatpush1.msra.mxu0 0.0
    %1988 = vmatprep.subr.mxu0 0.0
    %1989 = vmatpush1.msra.mxu0 0.0
    %1990 = vmatprep.subr.mxu0 0.0
    %1991 = vmatpush1.msra.mxu0 0.0
    %1992 = vmatprep.subr.mxu0 0.0
    %1993 = vmatpush1.msra.mxu0 0.0
    %1994 = vmatprep.subr.mxu0 0.0
    %1995 = vmatpush1.msra.mxu0 0.0
    %1996 = vmatprep.subr.mxu0 0.0
    %1997 = vmatpush1.msra.mxu0 0.0
    %1998 = vmatprep.subr.mxu0 0.0
    %1999 = vmatpush1.msra.mxu0 0.0
    %2000 = vmatprep.subr.mxu0 0.0
    %2001 = vmatpush1.msra.mxu0 0.0
    %2002 = vmatprep.subr.mxu0 0.0
    %2003 = vmatpush1.msra.mxu0 0.0
    %2004 = vmatprep.subr.mxu0 0.0
    %2005 = vmatpush1.msra.mxu0 0.0
    %2006 = vmatprep.subr.mxu0 0.0
    %2007 = vmatpush1.msra.mxu0 0.0
    %2008 = vmatprep.mubr.f32.mxu0 0.0
    %2009 = vmatmul.mubr.f32.gmra.mrb[0].mxu0 %v1941
    %v2010 = vpop.f32.mrb[0].mxu0
    %v2011 = vadd.f32 0.0, %v2010
    %v2012 = vpop.f32.mrb[0].mxu0
    %2013 = vdwg.mxu0
    %v2014 = vmul.f32 %v1941, %v1941
    %2015 = vmatprep.subr.mxu0 0.0
    %2016 = vmatpush1.msra.mxu0 %v240
    %2017 = vmatprep.subr.mxu0 0.0
    %2018 = vmatpush1.msra.mxu0 %v241
    %2019 = vmatprep.subr.mxu0 0.0
    %2020 = vmatpush1.msra.mxu0 %v242
    %2021 = vmatprep.subr.mxu0 0.0
    %2022 = vmatpush1.msra.mxu0 %v243
    %2023 = vmatprep.subr.mxu0 0.0
    %2024 = vmatpush1.msra.mxu0 %v244
    %2025 = vmatprep.subr.mxu0 0.0
    %2026 = vmatpush1.msra.mxu0 %v245
    %2027 = vmatprep.subr.mxu0 0.0
    %2028 = vmatpush1.msra.mxu0 %v246
    %2029 = vmatprep.subr.mxu0 0.0
    %2030 = vmatpush1.msra.mxu0 %v247
    %2031 = vmatprep.subr.mxu0 0.0
    %2032 = vmatpush1.msra.mxu0 %v248
    %2033 = vmatprep.subr.mxu0 0.0
    %2034 = vmatpush1.msra.mxu0 %v249
    %2035 = vmatprep.subr.mxu0 0.0
    %2036 = vmatpush1.msra.mxu0 %v250
    %2037 = vmatprep.subr.mxu0 0.0
    %2038 = vmatpush1.msra.mxu0 %v251
    %2039 = vmatprep.subr.mxu0 0.0
    %2040 = vmatpush1.msra.mxu0 %v252
    %2041 = vmatprep.subr.mxu0 0.0
    %2042 = vmatpush1.msra.mxu0 %v253
    %2043 = vmatprep.subr.mxu0 0.0
    %2044 = vmatpush1.msra.mxu0 %v254
    %2045 = vmatprep.subr.mxu0 0.0
    %2046 = vmatpush1.msra.mxu0 %v255
    %2047 = vmatprep.subr.mxu0 0.0
    %2048 = vmatpush1.msra.mxu0 0.0
    %2049 = vmatprep.subr.mxu0 0.0
    %2050 = vmatpush1.msra.mxu0 0.0
    %2051 = vmatprep.subr.mxu0 0.0
    %2052 = vmatpush1.msra.mxu0 0.0
    %2053 = vmatprep.subr.mxu0 0.0
    %2054 = vmatpush1.msra.mxu0 0.0
    %2055 = vmatprep.subr.mxu0 0.0
    %2056 = vmatpush1.msra.mxu0 0.0
    %2057 = vmatprep.subr.mxu0 0.0
    %2058 = vmatpush1.msra.mxu0 0.0
    %2059 = vmatprep.subr.mxu0 0.0
    %2060 = vmatpush1.msra.mxu0 0.0
    %2061 = vmatprep.subr.mxu0 0.0
    %2062 = vmatpush1.msra.mxu0 0.0
    %2063 = vmatprep.subr.mxu0 0.0
    %2064 = vmatpush1.msra.mxu0 0.0
    %2065 = vmatprep.subr.mxu0 0.0
    %2066 = vmatpush1.msra.mxu0 0.0
    %2067 = vmatprep.subr.mxu0 0.0
    %2068 = vmatpush1.msra.mxu0 0.0
    %2069 = vmatprep.subr.mxu0 0.0
    %2070 = vmatpush1.msra.mxu0 0.0
    %2071 = vmatprep.subr.mxu0 0.0
    %2072 = vmatpush1.msra.mxu0 0.0
    %2073 = vmatprep.subr.mxu0 0.0
    %2074 = vmatpush1.msra.mxu0 0.0
    %2075 = vmatprep.subr.mxu0 0.0
    %2076 = vmatpush1.msra.mxu0 0.0
    %2077 = vmatprep.subr.mxu0 0.0
    %2078 = vmatpush1.msra.mxu0 0.0
    %2079 = vmatprep.mubr.f32.mxu0 0.0
    %2080 = vmatmul.mubr.f32.gmra.mrb[0].mxu0 %v2014
    %v2081 = vpop.f32.mrb[0].mxu0
    %v2082 = vadd.f32 0.0, %v2081
    %v2083 = vpop.f32.mrb[0].mxu0
    %2084 = vdwg.mxu0
    %v2085 = vmul.f32 %v2011, %v2011
    %v2086 = vsub.f32 %v2082, %v2085
    %v2087 = vadd.f32 %v2086, 1e-05
    %v2088 = vrsqrt.pop %v2087
    %v2089 = vsub.f32 %v1941, %v2011
    %v2090 = vmul.f32 %v2089, %v2088
    %v2091 = vmul.f32 %v1796, 1.1111112
    %v2092 = vlaneseq
    %v2093 = vshrl.u32 %v2092, 7
    %v2094 = vsub.s32 7, %v2093
    %v2095 = vrot.slane %v256, %v2094
    %v2096 = vmul.f32 %v2090, %v2095
    %v2097 = vadd.f32 %v2091, %v2096
    %v2098 = vlaneseq
    %v2099 = vshrl.u32 %v2098, 7
    %v2100 = vsub.s32 0, %v2099
    %v2101 = vrot.slane %v258, %v2100
    %v2102 = vadd.f32 %v2097, %v2101
    %2103 = vmatprep.subr.mxu0 0.0
    %2104 = vmatpush1.msra.mxu0 %v208
    %2105 = vmatprep.subr.mxu0 0.0
    %2106 = vmatpush1.msra.mxu0 %v209
    %2107 = vmatprep.subr.mxu0 0.0
    %2108 = vmatpush1.msra.mxu0 %v210
    %2109 = vmatprep.subr.mxu0 0.0
    %2110 = vmatpush1.msra.mxu0 %v211
    %2111 = vmatprep.subr.mxu0 0.0
    %2112 = vmatpush1.msra.mxu0 %v212
    %2113 = vmatprep.subr.mxu0 0.0
    %2114 = vmatpush1.msra.mxu0 %v213
    %2115 = vmatprep.subr.mxu0 0.0
    %2116 = vmatpush1.msra.mxu0 %v214
    %2117 = vmatprep.subr.mxu0 0.0
    %2118 = vmatpush1.msra.mxu0 %v215
    %2119 = vmatprep.subr.mxu0 0.0
    %2120 = vmatpush1.msra.mxu0 %v216
    %2121 = vmatprep.subr.mxu0 0.0
    %2122 = vmatpush1.msra.mxu0 %v217
    %2123 = vmatprep.subr.mxu0 0.0
    %2124 = vmatpush1.msra.mxu0 %v218
    %2125 = vmatprep.subr.mxu0 0.0
    %2126 = vmatpush1.msra.mxu0 %v219
    %2127 = vmatprep.subr.mxu0 0.0
    %2128 = vmatpush1.msra.mxu0 %v220
    %2129 = vmatprep.subr.mxu0 0.0
    %2130 = vmatpush1.msra.mxu0 %v221
    %2131 = vmatprep.subr.mxu0 0.0
    %2132 = vmatpush1.msra.mxu0 %v222
    %2133 = vmatprep.subr.mxu0 0.0
    %2134 = vmatpush1.msra.mxu0 %v223
    %2135 = vmatprep.subr.mxu0 0.0
    %2136 = vmatpush1.msra.mxu0 0.0
    %2137 = vmatprep.subr.mxu0 0.0
    %2138 = vmatpush1.msra.mxu0 0.0
    %2139 = vmatprep.subr.mxu0 0.0
    %2140 = vmatpush1.msra.mxu0 0.0
    %2141 = vmatprep.subr.mxu0 0.0
    %2142 = vmatpush1.msra.mxu0 0.0
    %2143 = vmatprep.subr.mxu0 0.0
    %2144 = vmatpush1.msra.mxu0 0.0
    %2145 = vmatprep.subr.mxu0 0.0
    %2146 = vmatpush1.msra.mxu0 0.0
    %2147 = vmatprep.subr.mxu0 0.0
    %2148 = vmatpush1.msra.mxu0 0.0
    %2149 = vmatprep.subr.mxu0 0.0
    %2150 = vmatpush1.msra.mxu0 0.0
    %2151 = vmatprep.subr.mxu0 0.0
    %2152 = vmatpush1.msra.mxu0 0.0
    %2153 = vmatprep.subr.mxu0 0.0
    %2154 = vmatpush1.msra.mxu0 0.0
    %2155 = vmatprep.subr.mxu0 0.0
    %2156 = vmatpush1.msra.mxu0 0.0
    %2157 = vmatprep.subr.mxu0 0.0
    %2158 = vmatpush1.msra.mxu0 0.0
    %2159 = vmatprep.subr.mxu0 0.0
    %2160 = vmatpush1.msra.mxu0 0.0
    %2161 = vmatprep.subr.mxu0 0.0
    %2162 = vmatpush1.msra.mxu0 0.0
    %2163 = vmatprep.subr.mxu0 0.0
    %2164 = vmatpush1.msra.mxu0 0.0
    %2165 = vmatprep.subr.mxu0 0.0
    %2166 = vmatpush1.msra.mxu0 0.0
    %2167 = vmatprep.mubr.f32.mxu0 0.0
    %2168 = vmatmul.mubr.f32.gmra.mrb[0].mxu0 %v2102
    %v2169 = vpop.f32.mrb[0].mxu0
    %v2170 = vadd.f32 %v262, %v2169
    %v2171 = vpop.f32.mrb[0].mxu0
    %2172 = vdwg.mxu0
    %v2173 = vxor.u32 %v2170, 2147483648
    %v2174 = vmul.f32 %v2173, 1.442695
    %v2175 = vpow.pop %v2174
    %v2176 = vadd.f32 %v2175, 1.0
    %v2177 = vrcp.pop %v2176
    %v2178 = vmul.f32 1.0, %v2177
    %v2179 = vmul.f32 %v2170, %v2178
    %2180 = vmatprep.subr.mxu0 0.0
    %2181 = vmatpush1.msra.mxu0 %v224
    %2182 = vmatprep.subr.mxu0 0.0
    %2183 = vmatpush1.msra.mxu0 %v225
    %2184 = vmatprep.subr.mxu0 0.0
    %2185 = vmatpush1.msra.mxu0 %v226
    %2186 = vmatprep.subr.mxu0 0.0
    %2187 = vmatpush1.msra.mxu0 %v227
    %2188 = vmatprep.subr.mxu0 0.0
    %2189 = vmatpush1.msra.mxu0 %v228
    %2190 = vmatprep.subr.mxu0 0.0
    %2191 = vmatpush1.msra.mxu0 %v229
    %2192 = vmatprep.subr.mxu0 0.0
    %2193 = vmatpush1.msra.mxu0 %v230
    %2194 = vmatprep.subr.mxu0 0.0
    %2195 = vmatpush1.msra.mxu0 %v231
    %2196 = vmatprep.subr.mxu0 0.0
    %2197 = vmatpush1.msra.mxu0 %v232
    %2198 = vmatprep.subr.mxu0 0.0
    %2199 = vmatpush1.msra.mxu0 %v233
    %2200 = vmatprep.subr.mxu0 0.0
    %2201 = vmatpush1.msra.mxu0 %v234
    %2202 = vmatprep.subr.mxu0 0.0
    %2203 = vmatpush1.msra.mxu0 %v235
    %2204 = vmatprep.subr.mxu0 0.0
    %2205 = vmatpush1.msra.mxu0 %v236
    %2206 = vmatprep.subr.mxu0 0.0
    %2207 = vmatpush1.msra.mxu0 %v237
    %2208 = vmatprep.subr.mxu0 0.0
    %2209 = vmatpush1.msra.mxu0 %v238
    %2210 = vmatprep.subr.mxu0 0.0
    %2211 = vmatpush1.msra.mxu0 %v239
    %2212 = vmatprep.subr.mxu0 0.0
    %2213 = vmatpush1.msra.mxu0 0.0
    %2214 = vmatprep.subr.mxu0 0.0
    %2215 = vmatpush1.msra.mxu0 0.0
    %2216 = vmatprep.subr.mxu0 0.0
    %2217 = vmatpush1.msra.mxu0 0.0
    %2218 = vmatprep.subr.mxu0 0.0
    %2219 = vmatpush1.msra.mxu0 0.0
    %2220 = vmatprep.subr.mxu0 0.0
    %2221 = vmatpush1.msra.mxu0 0.0
    %2222 = vmatprep.subr.mxu0 0.0
    %2223 = vmatpush1.msra.mxu0 0.0
    %2224 = vmatprep.subr.mxu0 0.0
    %2225 = vmatpush1.msra.mxu0 0.0
    %2226 = vmatprep.subr.mxu0 0.0
    %2227 = vmatpush1.msra.mxu0 0.0
    %2228 = vmatprep.subr.mxu0 0.0
    %2229 = vmatpush1.msra.mxu0 0.0
    %2230 = vmatprep.subr.mxu0 0.0
    %2231 = vmatpush1.msra.mxu0 0.0
    %2232 = vmatprep.subr.mxu0 0.0
    %2233 = vmatpush1.msra.mxu0 0.0
    %2234 = vmatprep.subr.mxu0 0.0
    %2235 = vmatpush1.msra.mxu0 0.0
    %2236 = vmatprep.subr.mxu0 0.0
    %2237 = vmatpush1.msra.mxu0 0.0
    %2238 = vmatprep.subr.mxu0 0.0
    %2239 = vmatpush1.msra.mxu0 0.0
    %2240 = vmatprep.subr.mxu0 0.0
    %2241 = vmatpush1.msra.mxu0 0.0
    %2242 = vmatprep.subr.mxu0 0.0
    %2243 = vmatpush1.msra.mxu0 0.0
    %2244 = vmatprep.mubr.f32.mxu0 0.0
    %2245 = vmatmul.mubr.f32.gmra.mrb[0].mxu0 %v2179
    %v2246 = vpop.f32.mrb[0].mxu0
    %v2247 = vadd.f32 %v266, %v2246
    %v2248 = vpop.f32.mrb[0].mxu0
    %2249 = vdwg.mxu0
    %2250 = vmatprep.subr.mxu0 0.0
    %2251 = vmatpush1.msra.mxu0 %v240
    %2252 = vmatprep.subr.mxu0 0.0
    %2253 = vmatpush1.msra.mxu0 %v241
    %2254 = vmatprep.subr.mxu0 0.0
    %2255 = vmatpush1.msra.mxu0 %v242
    %2256 = vmatprep.subr.mxu0 0.0
    %2257 = vmatpush1.msra.mxu0 %v243
    %2258 = vmatprep.subr.mxu0 0.0
    %2259 = vmatpush1.msra.mxu0 %v244
    %2260 = vmatprep.subr.mxu0 0.0
    %2261 = vmatpush1.msra.mxu0 %v245
    %2262 = vmatprep.subr.mxu0 0.0
    %2263 = vmatpush1.msra.mxu0 %v246
    %2264 = vmatprep.subr.mxu0 0.0
    %2265 = vmatpush1.msra.mxu0 %v247
    %2266 = vmatprep.subr.mxu0 0.0
    %2267 = vmatpush1.msra.mxu0 %v248
    %2268 = vmatprep.subr.mxu0 0.0
    %2269 = vmatpush1.msra.mxu0 %v249
    %2270 = vmatprep.subr.mxu0 0.0
    %2271 = vmatpush1.msra.mxu0 %v250
    %2272 = vmatprep.subr.mxu0 0.0
    %2273 = vmatpush1.msra.mxu0 %v251
    %2274 = vmatprep.subr.mxu0 0.0
    %2275 = vmatpush1.msra.mxu0 %v252
    %2276 = vmatprep.subr.mxu0 0.0
    %2277 = vmatpush1.msra.mxu0 %v253
    %2278 = vmatprep.subr.mxu0 0.0
    %2279 = vmatpush1.msra.mxu0 %v254
    %2280 = vmatprep.subr.mxu0 0.0
    %2281 = vmatpush1.msra.mxu0 %v255
    %2282 = vmatprep.subr.mxu0 0.0
    %2283 = vmatpush1.msra.mxu0 0.0
    %2284 = vmatprep.subr.mxu0 0.0
    %2285 = vmatpush1.msra.mxu0 0.0
    %2286 = vmatprep.subr.mxu0 0.0
    %2287 = vmatpush1.msra.mxu0 0.0
    %2288 = vmatprep.subr.mxu0 0.0
    %2289 = vmatpush1.msra.mxu0 0.0
    %2290 = vmatprep.subr.mxu0 0.0
    %2291 = vmatpush1.msra.mxu0 0.0
    %2292 = vmatprep.subr.mxu0 0.0
    %2293 = vmatpush1.msra.mxu0 0.0
    %2294 = vmatprep.subr.mxu0 0.0
    %2295 = vmatpush1.msra.mxu0 0.0
    %2296 = vmatprep.subr.mxu0 0.0
    %2297 = vmatpush1.msra.mxu0 0.0
    %2298 = vmatprep.subr.mxu0 0.0
    %2299 = vmatpush1.msra.mxu0 0.0
    %2300 = vmatprep.subr.mxu0 0.0
    %2301 = vmatpush1.msra.mxu0 0.0
    %2302 = vmatprep.subr.mxu0 0.0
    %2303 = vmatpush1.msra.mxu0 0.0
    %2304 = vmatprep.subr.mxu0 0.0
    %2305 = vmatpush1.msra.mxu0 0.0
    %2306 = vmatprep.subr.mxu0 0.0
    %2307 = vmatpush1.msra.mxu0 0.0
    %2308 = vmatprep.subr.mxu0 0.0
    %2309 = vmatpush1.msra.mxu0 0.0
    %2310 = vmatprep.subr.mxu0 0.0
    %2311 = vmatpush1.msra.mxu0 0.0
    %2312 = vmatprep.subr.mxu0 0.0
    %2313 = vmatpush1.msra.mxu0 0.0
    %2314 = vmatprep.mubr.f32.mxu0 0.0
    %2315 = vmatmul.mubr.f32.gmra.mrb[0].mxu0 %v2247
    %v2316 = vpop.f32.mrb[0].mxu0
    %v2317 = vadd.f32 0.0, %v2316
    %v2318 = vpop.f32.mrb[0].mxu0
    %2319 = vdwg.mxu0
    %v2320 = vmul.f32 %v2247, %v2247
    %2321 = vmatprep.subr.mxu0 0.0
    %2322 = vmatpush1.msra.mxu0 %v240
    %2323 = vmatprep.subr.mxu0 0.0
    %2324 = vmatpush1.msra.mxu0 %v241
    %2325 = vmatprep.subr.mxu0 0.0
    %2326 = vmatpush1.msra.mxu0 %v242
    %2327 = vmatprep.subr.mxu0 0.0
    %2328 = vmatpush1.msra.mxu0 %v243
    %2329 = vmatprep.subr.mxu0 0.0
    %2330 = vmatpush1.msra.mxu0 %v244
    %2331 = vmatprep.subr.mxu0 0.0
    %2332 = vmatpush1.msra.mxu0 %v245
    %2333 = vmatprep.subr.mxu0 0.0
    %2334 = vmatpush1.msra.mxu0 %v246
    %2335 = vmatprep.subr.mxu0 0.0
    %2336 = vmatpush1.msra.mxu0 %v247
    %2337 = vmatprep.subr.mxu0 0.0
    %2338 = vmatpush1.msra.mxu0 %v248
    %2339 = vmatprep.subr.mxu0 0.0
    %2340 = vmatpush1.msra.mxu0 %v249
    %2341 = vmatprep.subr.mxu0 0.0
    %2342 = vmatpush1.msra.mxu0 %v250
    %2343 = vmatprep.subr.mxu0 0.0
    %2344 = vmatpush1.msra.mxu0 %v251
    %2345 = vmatprep.subr.mxu0 0.0
    %2346 = vmatpush1.msra.mxu0 %v252
    %2347 = vmatprep.subr.mxu0 0.0
    %2348 = vmatpush1.msra.mxu0 %v253
    %2349 = vmatprep.subr.mxu0 0.0
    %2350 = vmatpush1.msra.mxu0 %v254
    %2351 = vmatprep.subr.mxu0 0.0
    %2352 = vmatpush1.msra.mxu0 %v255
    %2353 = vmatprep.subr.mxu0 0.0
    %2354 = vmatpush1.msra.mxu0 0.0
    %2355 = vmatprep.subr.mxu0 0.0
    %2356 = vmatpush1.msra.mxu0 0.0
    %2357 = vmatprep.subr.mxu0 0.0
    %2358 = vmatpush1.msra.mxu0 0.0
    %2359 = vmatprep.subr.mxu0 0.0
    %2360 = vmatpush1.msra.mxu0 0.0
    %2361 = vmatprep.subr.mxu0 0.0
    %2362 = vmatpush1.msra.mxu0 0.0
    %2363 = vmatprep.subr.mxu0 0.0
    %2364 = vmatpush1.msra.mxu0 0.0
    %2365 = vmatprep.subr.mxu0 0.0
    %2366 = vmatpush1.msra.mxu0 0.0
    %2367 = vmatprep.subr.mxu0 0.0
    %2368 = vmatpush1.msra.mxu0 0.0
    %2369 = vmatprep.subr.mxu0 0.0
    %2370 = vmatpush1.msra.mxu0 0.0
    %2371 = vmatprep.subr.mxu0 0.0
    %2372 = vmatpush1.msra.mxu0 0.0
    %2373 = vmatprep.subr.mxu0 0.0
    %2374 = vmatpush1.msra.mxu0 0.0
    %2375 = vmatprep.subr.mxu0 0.0
    %2376 = vmatpush1.msra.mxu0 0.0
    %2377 = vmatprep.subr.mxu0 0.0
    %2378 = vmatpush1.msra.mxu0 0.0
    %2379 = vmatprep.subr.mxu0 0.0
    %2380 = vmatpush1.msra.mxu0 0.0
    %2381 = vmatprep.subr.mxu0 0.0
    %2382 = vmatpush1.msra.mxu0 0.0
    %2383 = vmatprep.subr.mxu0 0.0
    %2384 = vmatpush1.msra.mxu0 0.0
    %2385 = vmatprep.mubr.f32.mxu0 0.0
    %2386 = vmatmul.mubr.f32.gmra.mrb[0].mxu0 %v2320
    %v2387 = vpop.f32.mrb[0].mxu0
    %v2388 = vadd.f32 0.0, %v2387
    %v2389 = vpop.f32.mrb[0].mxu0
    %2390 = vdwg.mxu0
    %v2391 = vmul.f32 %v2317, %v2317
    %v2392 = vsub.f32 %v2388, %v2391
    %v2393 = vadd.f32 %v2392, 1e-05
    %v2394 = vrsqrt.pop %v2393
    %v2395 = vsub.f32 %v2247, %v2317
    %v2396 = vmul.f32 %v2395, %v2394
    %v2397 = vmul.f32 %v2102, 1.1111112
    %v2398 = vlaneseq
    %v2399 = vshrl.u32 %v2398, 7
    %v2400 = vsub.s32 0, %v2399
    %v2401 = vrot.slane %v257, %v2400
    %v2402 = vmul.f32 %v2396, %v2401
    %v2403 = vadd.f32 %v2397, %v2402
    %v2404 = vlaneseq
    %v2405 = vshrl.u32 %v2404, 7
    %v2406 = vsub.s32 1, %v2405
    %v2407 = vrot.slane %v258, %v2406
    %v2408 = vadd.f32 %v2403, %v2407
    %2409 = vmatprep.subr.mxu0 0.0
    %2410 = vmatpush1.msra.mxu0 %v208
    %2411 = vmatprep.subr.mxu0 0.0
    %2412 = vmatpush1.msra.mxu0 %v209
    %2413 = vmatprep.subr.mxu0 0.0
    %2414 = vmatpush1.msra.mxu0 %v210
    %2415 = vmatprep.subr.mxu0 0.0
    %2416 = vmatpush1.msra.mxu0 %v211
    %2417 = vmatprep.subr.mxu0 0.0
    %2418 = vmatpush1.msra.mxu0 %v212
    %2419 = vmatprep.subr.mxu0 0.0
    %2420 = vmatpush1.msra.mxu0 %v213
    %2421 = vmatprep.subr.mxu0 0.0
    %2422 = vmatpush1.msra.mxu0 %v214
    %2423 = vmatprep.subr.mxu0 0.0
    %2424 = vmatpush1.msra.mxu0 %v215
    %2425 = vmatprep.subr.mxu0 0.0
    %2426 = vmatpush1.msra.mxu0 %v216
    %2427 = vmatprep.subr.mxu0 0.0
    %2428 = vmatpush1.msra.mxu0 %v217
    %2429 = vmatprep.subr.mxu0 0.0
    %2430 = vmatpush1.msra.mxu0 %v218
    %2431 = vmatprep.subr.mxu0 0.0
    %2432 = vmatpush1.msra.mxu0 %v219
    %2433 = vmatprep.subr.mxu0 0.0
    %2434 = vmatpush1.msra.mxu0 %v220
    %2435 = vmatprep.subr.mxu0 0.0
    %2436 = vmatpush1.msra.mxu0 %v221
    %2437 = vmatprep.subr.mxu0 0.0
    %2438 = vmatpush1.msra.mxu0 %v222
    %2439 = vmatprep.subr.mxu0 0.0
    %2440 = vmatpush1.msra.mxu0 %v223
    %2441 = vmatprep.subr.mxu0 0.0
    %2442 = vmatpush1.msra.mxu0 0.0
    %2443 = vmatprep.subr.mxu0 0.0
    %2444 = vmatpush1.msra.mxu0 0.0
    %2445 = vmatprep.subr.mxu0 0.0
    %2446 = vmatpush1.msra.mxu0 0.0
    %2447 = vmatprep.subr.mxu0 0.0
    %2448 = vmatpush1.msra.mxu0 0.0
    %2449 = vmatprep.subr.mxu0 0.0
    %2450 = vmatpush1.msra.mxu0 0.0
    %2451 = vmatprep.subr.mxu0 0.0
    %2452 = vmatpush1.msra.mxu0 0.0
    %2453 = vmatprep.subr.mxu0 0.0
    %2454 = vmatpush1.msra.mxu0 0.0
    %2455 = vmatprep.subr.mxu0 0.0
    %2456 = vmatpush1.msra.mxu0 0.0
    %2457 = vmatprep.subr.mxu0 0.0
    %2458 = vmatpush1.msra.mxu0 0.0
    %2459 = vmatprep.subr.mxu0 0.0
    %2460 = vmatpush1.msra.mxu0 0.0
    %2461 = vmatprep.subr.mxu0 0.0
    %2462 = vmatpush1.msra.mxu0 0.0
    %2463 = vmatprep.subr.mxu0 0.0
    %2464 = vmatpush1.msra.mxu0 0.0
    %2465 = vmatprep.subr.mxu0 0.0
    %2466 = vmatpush1.msra.mxu0 0.0
    %2467 = vmatprep.subr.mxu0 0.0
    %2468 = vmatpush1.msra.mxu0 0.0
    %2469 = vmatprep.subr.mxu0 0.0
    %2470 = vmatpush1.msra.mxu0 0.0
    %2471 = vmatprep.subr.mxu0 0.0
    %2472 = vmatpush1.msra.mxu0 0.0
    %2473 = vmatprep.mubr.f32.mxu0 0.0
    %2474 = vmatmul.mubr.f32.gmra.mrb[0].mxu0 %v2408
    %v2475 = vpop.f32.mrb[0].mxu0
    %v2476 = vadd.f32 %v262, %v2475
    %v2477 = vpop.f32.mrb[0].mxu0
    %2478 = vdwg.mxu0
    %v2479 = vxor.u32 %v2476, 2147483648
    %v2480 = vmul.f32 %v2479, 1.442695
    %v2481 = vpow.pop %v2480
    %v2482 = vadd.f32 %v2481, 1.0
    %v2483 = vrcp.pop %v2482
    %v2484 = vmul.f32 1.0, %v2483
    %v2485 = vmul.f32 %v2476, %v2484
    %2486 = vmatprep.subr.mxu0 0.0
    %2487 = vmatpush1.msra.mxu0 %v224
    %2488 = vmatprep.subr.mxu0 0.0
    %2489 = vmatpush1.msra.mxu0 %v225
    %2490 = vmatprep.subr.mxu0 0.0
    %2491 = vmatpush1.msra.mxu0 %v226
    %2492 = vmatprep.subr.mxu0 0.0
    %2493 = vmatpush1.msra.mxu0 %v227
    %2494 = vmatprep.subr.mxu0 0.0
    %2495 = vmatpush1.msra.mxu0 %v228
    %2496 = vmatprep.subr.mxu0 0.0
    %2497 = vmatpush1.msra.mxu0 %v229
    %2498 = vmatprep.subr.mxu0 0.0
    %2499 = vmatpush1.msra.mxu0 %v230
    %2500 = vmatprep.subr.mxu0 0.0
    %2501 = vmatpush1.msra.mxu0 %v231
    %2502 = vmatprep.subr.mxu0 0.0
    %2503 = vmatpush1.msra.mxu0 %v232
    %2504 = vmatprep.subr.mxu0 0.0
    %2505 = vmatpush1.msra.mxu0 %v233
    %2506 = vmatprep.subr.mxu0 0.0
    %2507 = vmatpush1.msra.mxu0 %v234
    %2508 = vmatprep.subr.mxu0 0.0
    %2509 = vmatpush1.msra.mxu0 %v235
    %2510 = vmatprep.subr.mxu0 0.0
    %2511 = vmatpush1.msra.mxu0 %v236
    %2512 = vmatprep.subr.mxu0 0.0
    %2513 = vmatpush1.msra.mxu0 %v237
    %2514 = vmatprep.subr.mxu0 0.0
    %2515 = vmatpush1.msra.mxu0 %v238
    %2516 = vmatprep.subr.mxu0 0.0
    %2517 = vmatpush1.msra.mxu0 %v239
    %2518 = vmatprep.subr.mxu0 0.0
    %2519 = vmatpush1.msra.mxu0 0.0
    %2520 = vmatprep.subr.mxu0 0.0
    %2521 = vmatpush1.msra.mxu0 0.0
    %2522 = vmatprep.subr.mxu0 0.0
    %2523 = vmatpush1.msra.mxu0 0.0
    %2524 = vmatprep.subr.mxu0 0.0
    %2525 = vmatpush1.msra.mxu0 0.0
    %2526 = vmatprep.subr.mxu0 0.0
    %2527 = vmatpush1.msra.mxu0 0.0
    %2528 = vmatprep.subr.mxu0 0.0
    %2529 = vmatpush1.msra.mxu0 0.0
    %2530 = vmatprep.subr.mxu0 0.0
    %2531 = vmatpush1.msra.mxu0 0.0
    %2532 = vmatprep.subr.mxu0 0.0
    %2533 = vmatpush1.msra.mxu0 0.0
    %2534 = vmatprep.subr.mxu0 0.0
    %2535 = vmatpush1.msra.mxu0 0.0
    %2536 = vmatprep.subr.mxu0 0.0
    %2537 = vmatpush1.msra.mxu0 0.0
    %2538 = vmatprep.subr.mxu0 0.0
    %2539 = vmatpush1.msra.mxu0 0.0
    %2540 = vmatprep.subr.mxu0 0.0
    %2541 = vmatpush1.msra.mxu0 0.0
    %2542 = vmatprep.subr.mxu0 0.0
    %2543 = vmatpush1.msra.mxu0 0.0
    %2544 = vmatprep.subr.mxu0 0.0
    %2545 = vmatpush1.msra.mxu0 0.0
    %2546 = vmatprep.subr.mxu0 0.0
    %2547 = vmatpush1.msra.mxu0 0.0
    %2548 = vmatprep.subr.mxu0 0.0
    %2549 = vmatpush1.msra.mxu0 0.0
    %2550 = vmatprep.mubr.f32.mxu0 0.0
    %2551 = vmatmul.mubr.f32.gmra.mrb[0].mxu0 %v2485
    %v2552 = vpop.f32.mrb[0].mxu0
    %v2553 = vadd.f32 %v266, %v2552
    %v2554 = vpop.f32.mrb[0].mxu0
    %2555 = vdwg.mxu0
    %2556 = vmatprep.subr.mxu0 0.0
    %2557 = vmatpush1.msra.mxu0 %v240
    %2558 = vmatprep.subr.mxu0 0.0
    %2559 = vmatpush1.msra.mxu0 %v241
    %2560 = vmatprep.subr.mxu0 0.0
    %2561 = vmatpush1.msra.mxu0 %v242
    %2562 = vmatprep.subr.mxu0 0.0
    %2563 = vmatpush1.msra.mxu0 %v243
    %2564 = vmatprep.subr.mxu0 0.0
    %2565 = vmatpush1.msra.mxu0 %v244
    %2566 = vmatprep.subr.mxu0 0.0
    %2567 = vmatpush1.msra.mxu0 %v245
    %2568 = vmatprep.subr.mxu0 0.0
    %2569 = vmatpush1.msra.mxu0 %v246
    %2570 = vmatprep.subr.mxu0 0.0
    %2571 = vmatpush1.msra.mxu0 %v247
    %2572 = vmatprep.subr.mxu0 0.0
    %2573 = vmatpush1.msra.mxu0 %v248
    %2574 = vmatprep.subr.mxu0 0.0
    %2575 = vmatpush1.msra.mxu0 %v249
    %2576 = vmatprep.subr.mxu0 0.0
    %2577 = vmatpush1.msra.mxu0 %v250
    %2578 = vmatprep.subr.mxu0 0.0
    %2579 = vmatpush1.msra.mxu0 %v251
    %2580 = vmatprep.subr.mxu0 0.0
    %2581 = vmatpush1.msra.mxu0 %v252
    %2582 = vmatprep.subr.mxu0 0.0
    %2583 = vmatpush1.msra.mxu0 %v253
    %2584 = vmatprep.subr.mxu0 0.0
    %2585 = vmatpush1.msra.mxu0 %v254
    %2586 = vmatprep.subr.mxu0 0.0
    %2587 = vmatpush1.msra.mxu0 %v255
    %2588 = vmatprep.subr.mxu0 0.0
    %2589 = vmatpush1.msra.mxu0 0.0
    %2590 = vmatprep.subr.mxu0 0.0
    %2591 = vmatpush1.msra.mxu0 0.0
    %2592 = vmatprep.subr.mxu0 0.0
    %2593 = vmatpush1.msra.mxu0 0.0
    %2594 = vmatprep.subr.mxu0 0.0
    %2595 = vmatpush1.msra.mxu0 0.0
    %2596 = vmatprep.subr.mxu0 0.0
    %2597 = vmatpush1.msra.mxu0 0.0
    %2598 = vmatprep.subr.mxu0 0.0
    %2599 = vmatpush1.msra.mxu0 0.0
    %2600 = vmatprep.subr.mxu0 0.0
    %2601 = vmatpush1.msra.mxu0 0.0
    %2602 = vmatprep.subr.mxu0 0.0
    %2603 = vmatpush1.msra.mxu0 0.0
    %2604 = vmatprep.subr.mxu0 0.0
    %2605 = vmatpush1.msra.mxu0 0.0
    %2606 = vmatprep.subr.mxu0 0.0
    %2607 = vmatpush1.msra.mxu0 0.0
    %2608 = vmatprep.subr.mxu0 0.0
    %2609 = vmatpush1.msra.mxu0 0.0
    %2610 = vmatprep.subr.mxu0 0.0
    %2611 = vmatpush1.msra.mxu0 0.0
    %2612 = vmatprep.subr.mxu0 0.0
    %2613 = vmatpush1.msra.mxu0 0.0
    %2614 = vmatprep.subr.mxu0 0.0
    %2615 = vmatpush1.msra.mxu0 0.0
    %2616 = vmatprep.subr.mxu0 0.0
    %2617 = vmatpush1.msra.mxu0 0.0
    %2618 = vmatprep.subr.mxu0 0.0
    %2619 = vmatpush1.msra.mxu0 0.0
    %2620 = vmatprep.mubr.f32.mxu0 0.0
    %2621 = vmatmul.mubr.f32.gmra.mrb[0].mxu0 %v2553
    %v2622 = vpop.f32.mrb[0].mxu0
    %v2623 = vadd.f32 0.0, %v2622
    %v2624 = vpop.f32.mrb[0].mxu0
    %2625 = vdwg.mxu0
    %v2626 = vmul.f32 %v2553, %v2553
    %2627 = vmatprep.subr.mxu0 0.0
    %2628 = vmatpush1.msra.mxu0 %v240
    %2629 = vmatprep.subr.mxu0 0.0
    %2630 = vmatpush1.msra.mxu0 %v241
    %2631 = vmatprep.subr.mxu0 0.0
    %2632 = vmatpush1.msra.mxu0 %v242
    %2633 = vmatprep.subr.mxu0 0.0
    %2634 = vmatpush1.msra.mxu0 %v243
    %2635 = vmatprep.subr.mxu0 0.0
    %2636 = vmatpush1.msra.mxu0 %v244
    %2637 = vmatprep.subr.mxu0 0.0
    %2638 = vmatpush1.msra.mxu0 %v245
    %2639 = vmatprep.subr.mxu0 0.0
    %2640 = vmatpush1.msra.mxu0 %v246
    %2641 = vmatprep.subr.mxu0 0.0
    %2642 = vmatpush1.msra.mxu0 %v247
    %2643 = vmatprep.subr.mxu0 0.0
    %2644 = vmatpush1.msra.mxu0 %v248
    %2645 = vmatprep.subr.mxu0 0.0
    %2646 = vmatpush1.msra.mxu0 %v249
    %2647 = vmatprep.subr.mxu0 0.0
    %2648 = vmatpush1.msra.mxu0 %v250
    %2649 = vmatprep.subr.mxu0 0.0
    %2650 = vmatpush1.msra.mxu0 %v251
    %2651 = vmatprep.subr.mxu0 0.0
    %2652 = vmatpush1.msra.mxu0 %v252
    %2653 = vmatprep.subr.mxu0 0.0
    %2654 = vmatpush1.msra.mxu0 %v253
    %2655 = vmatprep.subr.mxu0 0.0
    %2656 = vmatpush1.msra.mxu0 %v254
    %2657 = vmatprep.subr.mxu0 0.0
    %2658 = vmatpush1.msra.mxu0 %v255
    %2659 = vmatprep.subr.mxu0 0.0
    %2660 = vmatpush1.msra.mxu0 0.0
    %2661 = vmatprep.subr.mxu0 0.0
    %2662 = vmatpush1.msra.mxu0 0.0
    %2663 = vmatprep.subr.mxu0 0.0
    %2664 = vmatpush1.msra.mxu0 0.0
    %2665 = vmatprep.subr.mxu0 0.0
    %2666 = vmatpush1.msra.mxu0 0.0
    %2667 = vmatprep.subr.mxu0 0.0
    %2668 = vmatpush1.msra.mxu0 0.0
    %2669 = vmatprep.subr.mxu0 0.0
    %2670 = vmatpush1.msra.mxu0 0.0
    %2671 = vmatprep.subr.mxu0 0.0
    %2672 = vmatpush1.msra.mxu0 0.0
    %2673 = vmatprep.subr.mxu0 0.0
    %2674 = vmatpush1.msra.mxu0 0.0
    %2675 = vmatprep.subr.mxu0 0.0
    %2676 = vmatpush1.msra.mxu0 0.0
    %2677 = vmatprep.subr.mxu0 0.0
    %2678 = vmatpush1.msra.mxu0 0.0
    %2679 = vmatprep.subr.mxu0 0.0
    %2680 = vmatpush1.msra.mxu0 0.0
    %2681 = vmatprep.subr.mxu0 0.0
    %2682 = vmatpush1.msra.mxu0 0.0
    %2683 = vmatprep.subr.mxu0 0.0
    %2684 = vmatpush1.msra.mxu0 0.0
    %2685 = vmatprep.subr.mxu0 0.0
    %2686 = vmatpush1.msra.mxu0 0.0
    %2687 = vmatprep.subr.mxu0 0.0
    %2688 = vmatpush1.msra.mxu0 0.0
    %2689 = vmatprep.subr.mxu0 0.0
    %2690 = vmatpush1.msra.mxu0 0.0
    %2691 = vmatprep.mubr.f32.mxu0 0.0
    %2692 = vmatmul.mubr.f32.gmra.mrb[0].mxu0 %v2626
    %v2693 = vpop.f32.mrb[0].mxu0
    %v2694 = vadd.f32 0.0, %v2693
    %v2695 = vpop.f32.mrb[0].mxu0
    %2696 = vdwg.mxu0
    %v2697 = vmul.f32 %v2623, %v2623
    %v2698 = vsub.f32 %v2694, %v2697
    %v2699 = vadd.f32 %v2698, 1e-05
    %v2700 = vrsqrt.pop %v2699
    %v2701 = vsub.f32 %v2553, %v2623
    %v2702 = vmul.f32 %v2701, %v2700
    %v2703 = vmul.f32 %v2408, 1.1111112
    %v2704 = vlaneseq
    %v2705 = vshrl.u32 %v2704, 7
    %v2706 = vsub.s32 1, %v2705
    %v2707 = vrot.slane %v257, %v2706
    %v2708 = vmul.f32 %v2702, %v2707
    %v2709 = vadd.f32 %v2703, %v2708
    %v2710 = vlaneseq
    %v2711 = vshrl.u32 %v2710, 7
    %v2712 = vsub.s32 2, %v2711
    %v2713 = vrot.slane %v258, %v2712
    %v2714 = vadd.f32 %v2709, %v2713
    %2715 = vmatprep.subr.mxu0 0.0
    %2716 = vmatpush1.msra.mxu0 %v208
    %2717 = vmatprep.subr.mxu0 0.0
    %2718 = vmatpush1.msra.mxu0 %v209
    %2719 = vmatprep.subr.mxu0 0.0
    %2720 = vmatpush1.msra.mxu0 %v210
    %2721 = vmatprep.subr.mxu0 0.0
    %2722 = vmatpush1.msra.mxu0 %v211
    %2723 = vmatprep.subr.mxu0 0.0
    %2724 = vmatpush1.msra.mxu0 %v212
    %2725 = vmatprep.subr.mxu0 0.0
    %2726 = vmatpush1.msra.mxu0 %v213
    %2727 = vmatprep.subr.mxu0 0.0
    %2728 = vmatpush1.msra.mxu0 %v214
    %2729 = vmatprep.subr.mxu0 0.0
    %2730 = vmatpush1.msra.mxu0 %v215
    %2731 = vmatprep.subr.mxu0 0.0
    %2732 = vmatpush1.msra.mxu0 %v216
    %2733 = vmatprep.subr.mxu0 0.0
    %2734 = vmatpush1.msra.mxu0 %v217
    %2735 = vmatprep.subr.mxu0 0.0
    %2736 = vmatpush1.msra.mxu0 %v218
    %2737 = vmatprep.subr.mxu0 0.0
    %2738 = vmatpush1.msra.mxu0 %v219
    %2739 = vmatprep.subr.mxu0 0.0
    %2740 = vmatpush1.msra.mxu0 %v220
    %2741 = vmatprep.subr.mxu0 0.0
    %2742 = vmatpush1.msra.mxu0 %v221
    %2743 = vmatprep.subr.mxu0 0.0
    %2744 = vmatpush1.msra.mxu0 %v222
    %2745 = vmatprep.subr.mxu0 0.0
    %2746 = vmatpush1.msra.mxu0 %v223
    %2747 = vmatprep.subr.mxu0 0.0
    %2748 = vmatpush1.msra.mxu0 0.0
    %2749 = vmatprep.subr.mxu0 0.0
    %2750 = vmatpush1.msra.mxu0 0.0
    %2751 = vmatprep.subr.mxu0 0.0
    %2752 = vmatpush1.msra.mxu0 0.0
    %2753 = vmatprep.subr.mxu0 0.0
    %2754 = vmatpush1.msra.mxu0 0.0
    %2755 = vmatprep.subr.mxu0 0.0
    %2756 = vmatpush1.msra.mxu0 0.0
    %2757 = vmatprep.subr.mxu0 0.0
    %2758 = vmatpush1.msra.mxu0 0.0
    %2759 = vmatprep.subr.mxu0 0.0
    %2760 = vmatpush1.msra.mxu0 0.0
    %2761 = vmatprep.subr.mxu0 0.0
    %2762 = vmatpush1.msra.mxu0 0.0
    %2763 = vmatprep.subr.mxu0 0.0
    %2764 = vmatpush1.msra.mxu0 0.0
    %2765 = vmatprep.subr.mxu0 0.0
    %2766 = vmatpush1.msra.mxu0 0.0
    %2767 = vmatprep.subr.mxu0 0.0
    %2768 = vmatpush1.msra.mxu0 0.0
    %2769 = vmatprep.subr.mxu0 0.0
    %2770 = vmatpush1.msra.mxu0 0.0
    %2771 = vmatprep.subr.mxu0 0.0
    %2772 = vmatpush1.msra.mxu0 0.0
    %2773 = vmatprep.subr.mxu0 0.0
    %2774 = vmatpush1.msra.mxu0 0.0
    %2775 = vmatprep.subr.mxu0 0.0
    %2776 = vmatpush1.msra.mxu0 0.0
    %2777 = vmatprep.subr.mxu0 0.0
    %2778 = vmatpush1.msra.mxu0 0.0
    %2779 = vmatprep.mubr.f32.mxu0 0.0
    %2780 = vmatmul.mubr.f32.gmra.mrb[0].mxu0 %v2714
    %v2781 = vpop.f32.mrb[0].mxu0
    %v2782 = vadd.f32 %v262, %v2781
    %v2783 = vpop.f32.mrb[0].mxu0
    %2784 = vdwg.mxu0
    %v2785 = vxor.u32 %v2782, 2147483648
    %v2786 = vmul.f32 %v2785, 1.442695
    %v2787 = vpow.pop %v2786
    %v2788 = vadd.f32 %v2787, 1.0
    %v2789 = vrcp.pop %v2788
    %v2790 = vmul.f32 1.0, %v2789
    %v2791 = vmul.f32 %v2782, %v2790
    %2792 = vmatprep.subr.mxu0 0.0
    %2793 = vmatpush1.msra.mxu0 %v224
    %2794 = vmatprep.subr.mxu0 0.0
    %2795 = vmatpush1.msra.mxu0 %v225
    %2796 = vmatprep.subr.mxu0 0.0
    %2797 = vmatpush1.msra.mxu0 %v226
    %2798 = vmatprep.subr.mxu0 0.0
    %2799 = vmatpush1.msra.mxu0 %v227
    %2800 = vmatprep.subr.mxu0 0.0
    %2801 = vmatpush1.msra.mxu0 %v228
    %2802 = vmatprep.subr.mxu0 0.0
    %2803 = vmatpush1.msra.mxu0 %v229
    %2804 = vmatprep.subr.mxu0 0.0
    %2805 = vmatpush1.msra.mxu0 %v230
    %2806 = vmatprep.subr.mxu0 0.0
    %2807 = vmatpush1.msra.mxu0 %v231
    %2808 = vmatprep.subr.mxu0 0.0
    %2809 = vmatpush1.msra.mxu0 %v232
    %2810 = vmatprep.subr.mxu0 0.0
    %2811 = vmatpush1.msra.mxu0 %v233
    %2812 = vmatprep.subr.mxu0 0.0
    %2813 = vmatpush1.msra.mxu0 %v234
    %2814 = vmatprep.subr.mxu0 0.0
    %2815 = vmatpush1.msra.mxu0 %v235
    %2816 = vmatprep.subr.mxu0 0.0
    %2817 = vmatpush1.msra.mxu0 %v236
    %2818 = vmatprep.subr.mxu0 0.0
    %2819 = vmatpush1.msra.mxu0 %v237
    %2820 = vmatprep.subr.mxu0 0.0
    %2821 = vmatpush1.msra.mxu0 %v238
    %2822 = vmatprep.subr.mxu0 0.0
    %2823 = vmatpush1.msra.mxu0 %v239
    %2824 = vmatprep.subr.mxu0 0.0
    %2825 = vmatpush1.msra.mxu0 0.0
    %2826 = vmatprep.subr.mxu0 0.0
    %2827 = vmatpush1.msra.mxu0 0.0
    %2828 = vmatprep.subr.mxu0 0.0
    %2829 = vmatpush1.msra.mxu0 0.0
    %2830 = vmatprep.subr.mxu0 0.0
    %2831 = vmatpush1.msra.mxu0 0.0
    %2832 = vmatprep.subr.mxu0 0.0
    %2833 = vmatpush1.msra.mxu0 0.0
    %2834 = vmatprep.subr.mxu0 0.0
    %2835 = vmatpush1.msra.mxu0 0.0
    %2836 = vmatprep.subr.mxu0 0.0
    %2837 = vmatpush1.msra.mxu0 0.0
    %2838 = vmatprep.subr.mxu0 0.0
    %2839 = vmatpush1.msra.mxu0 0.0
    %2840 = vmatprep.subr.mxu0 0.0
    %2841 = vmatpush1.msra.mxu0 0.0
    %2842 = vmatprep.subr.mxu0 0.0
    %2843 = vmatpush1.msra.mxu0 0.0
    %2844 = vmatprep.subr.mxu0 0.0
    %2845 = vmatpush1.msra.mxu0 0.0
    %2846 = vmatprep.subr.mxu0 0.0
    %2847 = vmatpush1.msra.mxu0 0.0
    %2848 = vmatprep.subr.mxu0 0.0
    %2849 = vmatpush1.msra.mxu0 0.0
    %2850 = vmatprep.subr.mxu0 0.0
    %2851 = vmatpush1.msra.mxu0 0.0
    %2852 = vmatprep.subr.mxu0 0.0
    %2853 = vmatpush1.msra.mxu0 0.0
    %2854 = vmatprep.subr.mxu0 0.0
    %2855 = vmatpush1.msra.mxu0 0.0
    %2856 = vmatprep.mubr.f32.mxu0 0.0
    %2857 = vmatmul.mubr.f32.gmra.mrb[0].mxu0 %v2791
    %v2858 = vpop.f32.mrb[0].mxu0
    %v2859 = vadd.f32 %v266, %v2858
    %v2860 = vpop.f32.mrb[0].mxu0
    %2861 = vdwg.mxu0
    %2862 = vmatprep.subr.mxu0 0.0
    %2863 = vmatpush1.msra.mxu0 %v240
    %2864 = vmatprep.subr.mxu0 0.0
    %2865 = vmatpush1.msra.mxu0 %v241
    %2866 = vmatprep.subr.mxu0 0.0
    %2867 = vmatpush1.msra.mxu0 %v242
    %2868 = vmatprep.subr.mxu0 0.0
    %2869 = vmatpush1.msra.mxu0 %v243
    %2870 = vmatprep.subr.mxu0 0.0
    %2871 = vmatpush1.msra.mxu0 %v244
    %2872 = vmatprep.subr.mxu0 0.0
    %2873 = vmatpush1.msra.mxu0 %v245
    %2874 = vmatprep.subr.mxu0 0.0
    %2875 = vmatpush1.msra.mxu0 %v246
    %2876 = vmatprep.subr.mxu0 0.0
    %2877 = vmatpush1.msra.mxu0 %v247
    %2878 = vmatprep.subr.mxu0 0.0
    %2879 = vmatpush1.msra.mxu0 %v248
    %2880 = vmatprep.subr.mxu0 0.0
    %2881 = vmatpush1.msra.mxu0 %v249
    %2882 = vmatprep.subr.mxu0 0.0
    %2883 = vmatpush1.msra.mxu0 %v250
    %2884 = vmatprep.subr.mxu0 0.0
    %2885 = vmatpush1.msra.mxu0 %v251
    %2886 = vmatprep.subr.mxu0 0.0
    %2887 = vmatpush1.msra.mxu0 %v252
    %2888 = vmatprep.subr.mxu0 0.0
    %2889 = vmatpush1.msra.mxu0 %v253
    %2890 = vmatprep.subr.mxu0 0.0
    %2891 = vmatpush1.msra.mxu0 %v254
    %2892 = vmatprep.subr.mxu0 0.0
    %2893 = vmatpush1.msra.mxu0 %v255
    %2894 = vmatprep.subr.mxu0 0.0
    %2895 = vmatpush1.msra.mxu0 0.0
    %2896 = vmatprep.subr.mxu0 0.0
    %2897 = vmatpush1.msra.mxu0 0.0
    %2898 = vmatprep.subr.mxu0 0.0
    %2899 = vmatpush1.msra.mxu0 0.0
    %2900 = vmatprep.subr.mxu0 0.0
    %2901 = vmatpush1.msra.mxu0 0.0
    %2902 = vmatprep.subr.mxu0 0.0
    %2903 = vmatpush1.msra.mxu0 0.0
    %2904 = vmatprep.subr.mxu0 0.0
    %2905 = vmatpush1.msra.mxu0 0.0
    %2906 = vmatprep.subr.mxu0 0.0
    %2907 = vmatpush1.msra.mxu0 0.0
    %2908 = vmatprep.subr.mxu0 0.0
    %2909 = vmatpush1.msra.mxu0 0.0
    %2910 = vmatprep.subr.mxu0 0.0
    %2911 = vmatpush1.msra.mxu0 0.0
    %2912 = vmatprep.subr.mxu0 0.0
    %2913 = vmatpush1.msra.mxu0 0.0
    %2914 = vmatprep.subr.mxu0 0.0
    %2915 = vmatpush1.msra.mxu0 0.0
    %2916 = vmatprep.subr.mxu0 0.0
    %2917 = vmatpush1.msra.mxu0 0.0
    %2918 = vmatprep.subr.mxu0 0.0
    %2919 = vmatpush1.msra.mxu0 0.0
    %2920 = vmatprep.subr.mxu0 0.0
    %2921 = vmatpush1.msra.mxu0 0.0
    %2922 = vmatprep.subr.mxu0 0.0
    %2923 = vmatpush1.msra.mxu0 0.0
    %2924 = vmatprep.subr.mxu0 0.0
    %2925 = vmatpush1.msra.mxu0 0.0
    %2926 = vmatprep.mubr.f32.mxu0 0.0
    %2927 = vmatmul.mubr.f32.gmra.mrb[0].mxu0 %v2859
    %v2928 = vpop.f32.mrb[0].mxu0
    %v2929 = vadd.f32 0.0, %v2928
    %v2930 = vpop.f32.mrb[0].mxu0
    %2931 = vdwg.mxu0
    %v2932 = vmul.f32 %v2859, %v2859
    %2933 = vmatprep.subr.mxu0 0.0
    %2934 = vmatpush1.msra.mxu0 %v240
    %2935 = vmatprep.subr.mxu0 0.0
    %2936 = vmatpush1.msra.mxu0 %v241
    %2937 = vmatprep.subr.mxu0 0.0
    %2938 = vmatpush1.msra.mxu0 %v242
    %2939 = vmatprep.subr.mxu0 0.0
    %2940 = vmatpush1.msra.mxu0 %v243
    %2941 = vmatprep.subr.mxu0 0.0
    %2942 = vmatpush1.msra.mxu0 %v244
    %2943 = vmatprep.subr.mxu0 0.0
    %2944 = vmatpush1.msra.mxu0 %v245
    %2945 = vmatprep.subr.mxu0 0.0
    %2946 = vmatpush1.msra.mxu0 %v246
    %2947 = vmatprep.subr.mxu0 0.0
    %2948 = vmatpush1.msra.mxu0 %v247
    %2949 = vmatprep.subr.mxu0 0.0
    %2950 = vmatpush1.msra.mxu0 %v248
    %2951 = vmatprep.subr.mxu0 0.0
    %2952 = vmatpush1.msra.mxu0 %v249
    %2953 = vmatprep.subr.mxu0 0.0
    %2954 = vmatpush1.msra.mxu0 %v250
    %2955 = vmatprep.subr.mxu0 0.0
    %2956 = vmatpush1.msra.mxu0 %v251
    %2957 = vmatprep.subr.mxu0 0.0
    %2958 = vmatpush1.msra.mxu0 %v252
    %2959 = vmatprep.subr.mxu0 0.0
    %2960 = vmatpush1.msra.mxu0 %v253
    %2961 = vmatprep.subr.mxu0 0.0
    %2962 = vmatpush1.msra.mxu0 %v254
    %2963 = vmatprep.subr.mxu0 0.0
    %2964 = vmatpush1.msra.mxu0 %v255
    %2965 = vmatprep.subr.mxu0 0.0
    %2966 = vmatpush1.msra.mxu0 0.0
    %2967 = vmatprep.subr.mxu0 0.0
    %2968 = vmatpush1.msra.mxu0 0.0
    %2969 = vmatprep.subr.mxu0 0.0
    %2970 = vmatpush1.msra.mxu0 0.0
    %2971 = vmatprep.subr.mxu0 0.0
    %2972 = vmatpush1.msra.mxu0 0.0
    %2973 = vmatprep.subr.mxu0 0.0
    %2974 = vmatpush1.msra.mxu0 0.0
    %2975 = vmatprep.subr.mxu0 0.0
    %2976 = vmatpush1.msra.mxu0 0.0
    %2977 = vmatprep.subr.mxu0 0.0
    %2978 = vmatpush1.msra.mxu0 0.0
    %2979 = vmatprep.subr.mxu0 0.0
    %2980 = vmatpush1.msra.mxu0 0.0
    %2981 = vmatprep.subr.mxu0 0.0
    %2982 = vmatpush1.msra.mxu0 0.0
    %2983 = vmatprep.subr.mxu0 0.0
    %2984 = vmatpush1.msra.mxu0 0.0
    %2985 = vmatprep.subr.mxu0 0.0
    %2986 = vmatpush1.msra.mxu0 0.0
    %2987 = vmatprep.subr.mxu0 0.0
    %2988 = vmatpush1.msra.mxu0 0.0
    %2989 = vmatprep.subr.mxu0 0.0
    %2990 = vmatpush1.msra.mxu0 0.0
    %2991 = vmatprep.subr.mxu0 0.0
    %2992 = vmatpush1.msra.mxu0 0.0
    %2993 = vmatprep.subr.mxu0 0.0
    %2994 = vmatpush1.msra.mxu0 0.0
    %2995 = vmatprep.subr.mxu0 0.0
    %2996 = vmatpush1.msra.mxu0 0.0
    %2997 = vmatprep.mubr.f32.mxu0 0.0
    %2998 = vmatmul.mubr.f32.gmra.mrb[0].mxu0 %v2932
    %v2999 = vpop.f32.mrb[0].mxu0
    %v3000 = vadd.f32 0.0, %v2999
    %v3001 = vpop.f32.mrb[0].mxu0
    %3002 = vdwg.mxu0
    %v3003 = vmul.f32 %v2929, %v2929
    %v3004 = vsub.f32 %v3000, %v3003
    %v3005 = vadd.f32 %v3004, 1e-05
    %v3006 = vrsqrt.pop %v3005
    %v3007 = vsub.f32 %v2859, %v2929
    %v3008 = vmul.f32 %v3007, %v3006
    %v3009 = vmul.f32 %v2714, 1.1111112
    %v3010 = vlaneseq
    %v3011 = vshrl.u32 %v3010, 7
    %v3012 = vsub.s32 2, %v3011
    %v3013 = vrot.slane %v257, %v3012
    %v3014 = vmul.f32 %v3008, %v3013
    %v3015 = vadd.f32 %v3009, %v3014
    %v3016 = vlaneseq
    %v3017 = vshrl.u32 %v3016, 7
    %v3018 = vsub.s32 3, %v3017
    %v3019 = vrot.slane %v258, %v3018
    %v3020 = vadd.f32 %v3015, %v3019
    %3021 = vst [vmem:[#allocation14] sm:$0xf] %v3020
    // Predicated region
    $region62: #{tpu_custom_call.1} parent=1 // pred_check
      _
    $region63: #{tpu_custom_call.1} parent=1 // pred_check_branch
      %3023 = sbr.rel (0) target = $region65
    $region64: #{tpu_custom_call.1} parent=1 // pred_region
      %s3025 = ssub.s32 64, 64
      %3026 = vsyncadd [#allocation4], %s3025
      %s3028 = sshll.u32 [#allocation14], 4
      %s3029 = int_to_ptr.vmem [resolvable:$true] %s3028
      %3031 = dma.vmem_to_hbm [thread:$0]  %s3029, 64, %s8, [#allocation4]
    $region65: #{tpu_custom_call.1} parent=1 // pred_fallthru
      _
    // Predicated region
    $region66: #{tpu_custom_call.1} parent=1 // pred_check
      _
    $region67: #{tpu_custom_call.1} parent=1 // pred_check_branch
      %3033 = sbr.rel (0) target = $region69
    $region68: #{tpu_custom_call.1} parent=1 // pred_region
      %3034 = dma.done [#allocation4], 64
    $region69: #{tpu_custom_call.1} parent=1 // pred_fallthru
      _
    %3035 = vsyncpa [#allocation3], 1
    %3036 = vsyncpa [#allocation6], 1
    %3037 = vsyncpa [#allocation9], 1
    %3038 = vsyncpa [#allocation12], 1
    %3039 = vsyncpa [#allocation4], 1

</llo_original>
